<compile_context>
chip_gen: v7x
topology: tpu7x:2x2x1
jax: 0.10.0
libtpu: 0.0.40
codegen_flags: <defaults>
</compile_context>

<pallas_src>
import functools

import jax
import jax.numpy as jnp
from jax.experimental import pallas as pl
from jax.experimental.pallas import tpu as pltpu


# --------------------------------------------------------------------------- #
# In-kernel helpers
# --------------------------------------------------------------------------- #

def _lane_group_reduce(x, group, count, op):
    """Reduce over `count` lane-groups of width `group` (lane index = k*group + c).

    Circular roll-tree on the XLU: rolling by multiples of `group` keeps lanes
    within the same channel residue class, so after the tree every lane holds
    its group's full reduction.
    """
    span = group * count
    if count & (count - 1) == 0:            # power-of-two neighbour count: log2 tree
        s = group
        while s < span:
            x = op(x, pltpu.roll(x, shift=s, axis=1))
            s *= 2
        return x
    acc = x
    r = x
    for _ in range(count - 1):              # general (rare) fallback: count-1 rolls
        r = pltpu.roll(r, shift=group, axis=1)
        acc = op(acc, r)
    return acc


def _wide_kernel(mxu_dtype,
                 feats_ref, gf_ref, diff_ref,
                 pe_w1_ref, pe_b1_ref, pe_w2_ref, pe_b2_ref,
                 qv_w_ref, qv_b_ref, k_w_ref, k_b_ref,
                 ae_w1_ref, ae_b1_ref, ae_w2_ref, ae_b2_ref,
                 out_ref):
    """Lane-dense path (C < 128): every big tensor is a (tm, Kn*C) 2-D slab."""
    kc = gf_ref.shape[1]
    c = out_ref.shape[1]
    kn = kc // c

    def mm(x, w_ref):
        if mxu_dtype is not None:
            x = x.astype(mxu_dtype)
        return jnp.dot(x, w_ref[...], preferred_element_type=jnp.float32)

    # position encoding: Conv(3->C) -> Conv(C->C) -> ReLU, per-neighbour weights
    # realised as block-diagonal (Kn*3, Kn*C) / (Kn*C, Kn*C) matrices.
    h = mm(diff_ref[...], pe_w1_ref) + pe_b1_ref[...]
    delta = jnp.maximum(mm(h, pe_w2_ref) + pe_b2_ref[...], 0.0)          # (tm, kc)

    # K replicated over neighbours via the pre-tiled (C, Kn*C) weight (no in-kernel
    # lane tiling); Q and V fused into one (Kn*C, 2*Kn*C) matmul.
    k_t = mm(feats_ref[...], k_w_ref) + k_b_ref[...]                     # (tm, kc)
    qv = mm(gf_ref[...], qv_w_ref) + qv_b_ref[...]                       # (tm, 2kc)
    v = qv[:, kc:] + delta

    att_in = k_t - qv[:, :kc] + delta
    h2 = mm(att_in, ae_w1_ref) + ae_b1_ref[...]
    att = jnp.maximum(mm(h2, ae_w2_ref) + ae_b2_ref[...], 0.0)           # (tm, kc)

    # softmax over the Kn neighbour groups (PyTorch dim=3) via roll-trees; the
    # normalising divide is deferred to the (tm, C) output and done exactly.
    att_max = _lane_group_reduce(att, c, kn, jnp.maximum)
    att_exp = jnp.exp(att - att_max)
    denom = _lane_group_reduce(att_exp, c, kn, jnp.add)
    num = _lane_group_reduce(att_exp * v, c, kn, jnp.add)
    out_ref[...] = (num[:, :c] / denom[:, :c]).astype(out_ref.dtype)


def _narrow_kernel(mxu_dtype,
                   feats_ref, gf_ref, diff_ref,
                   pe_w1_ref, pe_b1_ref, pe_w2_ref, pe_b2_ref,
                   qv_w_ref, qv_b_ref, k_w_ref, k_b_ref,
                   ae_w1_ref, ae_b1_ref, ae_w2_ref, ae_b2_ref,
                   out_ref):
    """Per-neighbour path for C >= 128 (channels already fill the 128 lanes)."""
    tm, kn, c = gf_ref.shape

    def mm(x, w_ref):
        if mxu_dtype is not None:
            x = x.astype(mxu_dtype)
        return jnp.dot(x, w_ref[...], preferred_element_type=jnp.float32)

    # position-encoding layer 1 as 3 VPU broadcast-FMAs (contraction dim is 3).
    h = pe_b1_ref[...][None]                                             # (1,1,C)
    for a in range(3):
        h = h + diff_ref[:, :, a:a + 1] * pe_w1_ref[a:a + 1, :][None]
    delta = jnp.maximum(mm(h.reshape(tm * kn, c), pe_w2_ref) + pe_b2_ref[...],
                        0.0).reshape(tm, kn, c)

    k_feat = mm(feats_ref[...], k_w_ref) + k_b_ref[...]                  # (tm, C)
    qv = mm(gf_ref[...].reshape(tm * kn, c), qv_w_ref) + qv_b_ref[...]   # (tm*kn,2C)
    q = qv[:, :c].reshape(tm, kn, c)
    v = qv[:, c:].reshape(tm, kn, c) + delta

    att_in = (k_feat[:, None, :] - q + delta).reshape(tm * kn, c)
    h2 = mm(att_in, ae_w1_ref) + ae_b1_ref[...]
    att = jnp.maximum(mm(h2, ae_w2_ref) + ae_b2_ref[...], 0.0).reshape(tm, kn, c)

    att_max = jnp.max(att, axis=1, keepdims=True)
    att_exp = jnp.exp(att - att_max)
    denom = jnp.sum(att_exp, axis=1)                                     # (tm, C)
    num = jnp.sum(att_exp * v, axis=1)                                   # (tm, C)
    out_ref[...] = (num / denom).astype(out_ref.dtype)


# --------------------------------------------------------------------------- #
# Host-side helpers
# --------------------------------------------------------------------------- #

def _round_up(x, m):
    return ((x + m - 1) // m) * m


def _choose_tile(M, kn, c, tm_req, vmem_budget_bytes):
    """Point tile: multiple of 8, prefers >=4 grid steps when M allows (v7x has
    2 TensorCores sharing the 'parallel' axis), then shrunk until the live
    in-kernel f32 temporaries (~18 (tm, Kn*C) slabs incl. double buffers) fit
    the VMEM budget (v7x has only 64 MiB physical / 32 MiB default scoped)."""
    tm = max(8, (int(tm_req) // 8) * 8)
    while tm > 64 and pl.cdiv(M, tm) < 4:
        tm //= 2
    tm = min(tm, _round_up(M, 8))
    while tm > 8 and tm * kn * c * 4 * 18 > vmem_budget_bytes:
        tm //= 2
    return max(8, (tm // 8) * 8)


def _prepare_weights(params, kn, wide, mxu_dtype):
    p = params
    if wide:
        eye = jnp.eye(kn, dtype=jnp.float32)
        bd = lambda w: jnp.kron(eye, w)            # Kn copies on the block diagonal
        rep = lambda b: jnp.tile(b, (1, kn))       # replicate over neighbour groups
        weights = [
            bd(p["pe_w1"]), rep(p["pe_b1"]),
            bd(p["pe_w2"]), rep(p["pe_b2"]),
            jnp.concatenate([bd(p["q_w"]), bd(p["v_w"])], axis=1),      # fused Q|V
            jnp.concatenate([rep(p["q_b"]), rep(p["v_b"])], axis=1),
            jnp.tile(p["k_w"], (1, kn)), rep(p["k_b"]),   # K replicated via weight
            bd(p["ae_w1"]), rep(p["ae_b1"]),
            bd(p["ae_w2"]), rep(p["ae_b2"]),
        ]
    else:
        weights = [
            p["pe_w1"], p["pe_b1"], p["pe_w2"], p["pe_b2"],
            jnp.concatenate([p["q_w"], p["v_w"]], axis=1),              # fused Q|V
            jnp.concatenate([p["q_b"], p["v_b"]], axis=1),
            p["k_w"], p["k_b"],
            p["ae_w1"], p["ae_b1"], p["ae_w2"], p["ae_b2"],
        ]
    if mxu_dtype is not None:
        # Cast only the matmul weights (even indices); biases stay f32 and are
        # added to the f32 accumulators.
        weights = [w.astype(mxu_dtype) if i % 2 == 0 else w
                   for i, w in enumerate(weights)]
    return weights


def point_transformer_layer_channels_last(
    feats_r, gf_r, pts_r, gp_r, params, *,
    tm=256,
    mxu_dtype=jnp.bfloat16,                 # bf16 MXU operands on all generations
    vmem_limit_bytes=32 * 1024 * 1024,      # explicit; safe on v5e/v6e/v7x
    vmem_budget_bytes=20 * 1024 * 1024,     # raise on v5e/v6e (128 MiB VMEM)
    gf_buffer_count=2,                      # set 3 on v7x if the gf DMA is exposed
    force_narrow=False,
):
    """Channels-last entry point (the preferred API -- callers that can emit this
    layout from the grouping op skip the NCHW transposes entirely).

    feats_r: (M, C), gf_r: (M, Kn, C), pts_r: (M, 3), gp_r: (M, Kn, 3).
    Returns (M, C).
    """
    M, C = feats_r.shape
    Kn = gf_r.shape[1]
    out_dtype = feats_r.dtype

    # Lane-dense path: fold Kn*C onto the lane axis with block-diagonal weights.
    # Only worthwhile when C alone under-fills the 128 lanes and the
    # block-diagonal weights stay small.
    wide = (not force_narrow) and (C < 128) and (Kn * C <= 512) and (Kn >= 2)

    tm = _choose_tile(M, Kn, C, tm, vmem_budget_bytes)
    M_pad = _round_up(M, tm)

    diff_r = pts_r[:, None, :] - gp_r                       # (M, Kn, 3)
    if wide:
        gf_in = gf_r.reshape(M, Kn * C)     # free: Kn and C are already trailing
        diff_in = diff_r.reshape(M, Kn * 3)
    else:
        gf_in = gf_r
        diff_in = diff_r
    feats_in = feats_r

    if mxu_dtype is not None:
        feats_in = feats_in.astype(mxu_dtype)
        gf_in = gf_in.astype(mxu_dtype)

    if M_pad != M:                          # pad rows instead of hunting divisors
        def pad_rows(x):
            return jnp.pad(x, ((0, M_pad - M),) + ((0, 0),) * (x.ndim - 1))
        feats_in, gf_in, diff_in = pad_rows(feats_in), pad_rows(gf_in), pad_rows(diff_in)

    weights = _prepare_weights(params, Kn, wide, mxu_dtype)

    def row_spec(shape, buffers=2):
        rest = tuple(int(s) for s in shape[1:])
        zeros = (0,) * len(rest)
        index_map = lambda i, _z=zeros: (i,) + _z
        if buffers > 2:
            return pl.BlockSpec((tm,) + rest, index_map,
                                pipeline_mode=pl.Buffered(buffers))
        return pl.BlockSpec((tm,) + rest, index_map)

    def full_spec(shape):
        zeros = (0,) * len(shape)
        return pl.BlockSpec(tuple(int(s) for s in shape), lambda i, _z=zeros: _z)

    in_specs = [row_spec(feats_in.shape),
                row_spec(gf_in.shape, buffers=gf_buffer_count),
                row_spec(diff_in.shape)]
    in_specs += [full_spec(w.shape) for w in weights]

    kernel = _wide_kernel if wide else _narrow_kernel

    out = pl.pallas_call(
        functools.partial(kernel, mxu_dtype),
        out_shape=jax.ShapeDtypeStruct((M_pad, C), out_dtype),
        grid_spec=pltpu.PrefetchScalarGridSpec(
            num_scalar_prefetch=0,
            grid=(M_pad // tm,),
            in_specs=in_specs,
            out_specs=pl.BlockSpec((tm, C), lambda i: (i, 0)),
        ),
        compiler_params=pltpu.CompilerParams(
            dimension_semantics=("parallel",),
            vmem_limit_bytes=vmem_limit_bytes,
        ),
    )(feats_in, gf_in, diff_in, *weights)

    return out[:M] if M_pad != M else out


def point_transformer_layer(feats, grouped_feats, points, grouped_points, params,
                            **kwargs):
    """NCHW entry point matching the PyTorch module signature. Returns (B, C, N).

    The NCHW -> channels-last transposes below are a full HBM round trip of the
    largest tensor; production callers should emit channels-last from the
    grouping op and call point_transformer_layer_channels_last directly.
    """
    B, C, N = feats.shape
    Kn = grouped_feats.shape[3]
    M = B * N

    feats_r = jnp.transpose(feats, (0, 2, 1)).reshape(M, C)
    gf_r = jnp.transpose(grouped_feats, (0, 2, 3, 1)).reshape(M, Kn, C)
    pts_r = jnp.transpose(points, (0, 2, 1)).reshape(M, 3)
    gp_r = jnp.transpose(grouped_points, (0, 2, 3, 1)).reshape(M, Kn, 3)

    out = point_transformer_layer_channels_last(feats_r, gf_r, pts_r, gp_r, params,
                                                **kwargs)
    return jnp.transpose(out.reshape(B, N, C), (0, 2, 1))               # (B, C, N)


def init_params(key, C):
    shapes = {
        "pe_w1": (3, C), "pe_b1": (1, C), "pe_w2": (C, C), "pe_b2": (1, C),
        "q_w": (C, C), "q_b": (1, C), "k_w": (C, C), "k_b": (1, C),
        "v_w": (C, C), "v_b": (1, C),
        "ae_w1": (C, C), "ae_b1": (1, C), "ae_w2": (C, C), "ae_b2": (1, C),
    }
    params = {}
    keys = jax.random.split(key, len(shapes))
    for k_, (name, shape) in zip(keys, sorted(shapes.items())):
        scale = (1.0 / jnp.sqrt(jnp.float32(shape[0]))) if "_w" in name else 0.1
        params[name] = jax.random.normal(k_, shape, jnp.float32) * scale
    return params


def reference(feats, grouped_feats, points, grouped_points, p):
    """Pure-JAX reference mirroring the PyTorch NCHW semantics."""
    def conv(x, w, b):                                  # x: (B, Cin, N, K)
        return jnp.einsum("bcnk,cd->bdnk", x, w) + b[0][None, :, None, None]

    f = feats[..., None]
    pt = points[..., None]
    delta = jnp.maximum(
        conv(conv(pt - grouped_points, p["pe_w1"], p["pe_b1"]), p["pe_w2"], p["pe_b2"]), 0.0)
    Kf = conv(f, p["k_w"], p["k_b"])
    Q = conv(grouped_feats, p["q_w"], p["q_b"])
    V = conv(grouped_feats, p["v_w"], p["v_b"]) + delta
    att = jnp.maximum(
        conv(conv(Kf - Q + delta, p["ae_w1"], p["ae_b1"]), p["ae_w2"], p["ae_b2"]), 0.0)
    att = jax.nn.softmax(att, axis=3)
    return jnp.sum(att * V, axis=3)


if __name__ == "__main__":
    # Small shapes: M = B*N = 512, C=32, Kn=8 -> wide (lane-dense) path,
    # Kn*C = 256 lanes, tile tm=128, grid of 4 parallel steps.
    B, C, N, Kn = 2, 32, 256, 8
    key = jax.random.PRNGKey(0)
    k1, k2, k3, k4, kp = jax.random.split(key, 5)

    feats = jax.random.normal(k1, (B, C, N), jnp.float32)
    grouped_feats = jax.random.normal(k2, (B, C, N, Kn), jnp.float32)
    points = jax.random.normal(k3, (B, 3, N), jnp.float32)
    grouped_points = jax.random.normal(k4, (B, 3, N, Kn), jnp.float32)
    params = init_params(kp, C)

    ref = reference(feats, grouped_feats, points, grouped_points, params)

    # 1) wide lane-dense path, f32 MXU operands (tight check, exact softmax divide)
    out_f32 = point_transformer_layer(feats, grouped_feats, points, grouped_points,
                                      params, mxu_dtype=None)
    out_f32 = jax.block_until_ready(out_f32)
    assert out_f32.shape == (B, C, N)
    assert jnp.allclose(out_f32, ref, rtol=2e-2, atol=2e-2), \
        float(jnp.max(jnp.abs(out_f32 - ref)))

    # 2) default path: bf16 MXU operands (ballpark check; f32 accumulation/elementwise)
    out_bf16 = point_transformer_layer(feats, grouped_feats, points, grouped_points,
                                       params)
    out_bf16 = jax.block_until_ready(out_bf16)
    assert jnp.allclose(out_bf16, ref, rtol=1e-1, atol=2e-1), \
        float(jnp.max(jnp.abs(out_bf16 - ref)))

    # 3) narrow per-neighbour fallback (the C >= 128 path), exercised for coverage
    out_nar = point_transformer_layer(feats, grouped_feats, points, grouped_points,
                                      params, mxu_dtype=None, force_narrow=True)
    out_nar = jax.block_until_ready(out_nar)
    assert jnp.allclose(out_nar, ref, rtol=2e-2, atol=2e-2), \
        float(jnp.max(jnp.abs(out_nar - ref)))

    print("KERNEL_OK")
</pallas_src>

<mosaic_0001>
module attributes {stable_mosaic.version = 11 : i64} {
  func.func @_wide_kernel(%arg0: i32, %arg1: memref<128x32xf32, #tpu.memory_space<vmem>>, %arg2: memref<128x256xf32, #tpu.memory_space<vmem>>, %arg3: memref<128x24xf32, #tpu.memory_space<vmem>>, %arg4: memref<24x256xf32, #tpu.memory_space<vmem>>, %arg5: memref<1x256xf32, #tpu.memory_space<vmem>>, %arg6: memref<256x256xf32, #tpu.memory_space<vmem>>, %arg7: memref<1x256xf32, #tpu.memory_space<vmem>>, %arg8: memref<256x512xf32, #tpu.memory_space<vmem>>, %arg9: memref<1x512xf32, #tpu.memory_space<vmem>>, %arg10: memref<32x256xf32, #tpu.memory_space<vmem>>, %arg11: memref<1x256xf32, #tpu.memory_space<vmem>>, %arg12: memref<256x256xf32, #tpu.memory_space<vmem>>, %arg13: memref<1x256xf32, #tpu.memory_space<vmem>>, %arg14: memref<256x256xf32, #tpu.memory_space<vmem>>, %arg15: memref<1x256xf32, #tpu.memory_space<vmem>>, %arg16: memref<128x32xf32, #tpu.memory_space<vmem>>) attributes {dimension_semantics = [#tpu.dimension_semantics<parallel>], iteration_bounds = array<i64: 4>, scalar_prefetch = 0 : i64, scratch_operands = 0 : i64, tpu.core_type = #tpu.core_type<tc>, window_params = [{transform_indices = @transform_0, window_bounds = array<i64: 128, 32>}, {transform_indices = @transform_1, window_bounds = array<i64: 128, 256>}, {transform_indices = @transform_2, window_bounds = array<i64: 128, 24>}, {pipeline_mode = #tpu.pipeline_mode<synchronous>, transform_indices = @transform_3, window_bounds = array<i64: 24, 256>}, {pipeline_mode = #tpu.pipeline_mode<synchronous>, transform_indices = @transform_4, window_bounds = array<i64: 1, 256>}, {pipeline_mode = #tpu.pipeline_mode<synchronous>, transform_indices = @transform_5, window_bounds = array<i64: 256, 256>}, {pipeline_mode = #tpu.pipeline_mode<synchronous>, transform_indices = @transform_6, window_bounds = array<i64: 1, 256>}, {pipeline_mode = #tpu.pipeline_mode<synchronous>, transform_indices = @transform_7, window_bounds = array<i64: 256, 512>}, {pipeline_mode = #tpu.pipeline_mode<synchronous>, transform_indices = @transform_8, window_bounds = array<i64: 1, 512>}, {pipeline_mode = #tpu.pipeline_mode<synchronous>, transform_indices = @transform_9, window_bounds = array<i64: 32, 256>}, {pipeline_mode = #tpu.pipeline_mode<synchronous>, transform_indices = @transform_10, window_bounds = array<i64: 1, 256>}, {pipeline_mode = #tpu.pipeline_mode<synchronous>, transform_indices = @transform_11, window_bounds = array<i64: 256, 256>}, {pipeline_mode = #tpu.pipeline_mode<synchronous>, transform_indices = @transform_12, window_bounds = array<i64: 1, 256>}, {pipeline_mode = #tpu.pipeline_mode<synchronous>, transform_indices = @transform_13, window_bounds = array<i64: 256, 256>}, {pipeline_mode = #tpu.pipeline_mode<synchronous>, transform_indices = @transform_14, window_bounds = array<i64: 1, 256>}, {transform_indices = @transform_15, window_bounds = array<i64: 128, 32>}]} {
    %c0 = arith.constant 0 : index
    %c0_0 = arith.constant 0 : index
    %0 = vector.load %arg3[%c0, %c0_0] : memref<128x24xf32, #tpu.memory_space<vmem>>, vector<128x24xf32>
    %c0_1 = arith.constant 0 : index
    %c0_2 = arith.constant 0 : index
    %1 = vector.load %arg4[%c0_1, %c0_2] : memref<24x256xf32, #tpu.memory_space<vmem>>, vector<24x256xf32>
    %cst = arith.constant dense<0.000000e+00> : vector<128x256xf32>
    %2 = tpu.matmul %0, %1, %cst {dimension_numbers = #tpu.dot_dimension_numbers<[1], [0], [0], [1], [0, 0, 1, 1], [], []>} : vector<128x24xf32>, vector<24x256xf32>, vector<128x256xf32> -> vector<128x256xf32>
    %c0_3 = arith.constant 0 : index
    %c0_4 = arith.constant 0 : index
    %3 = vector.load %arg5[%c0_3, %c0_4] : memref<1x256xf32, #tpu.memory_space<vmem>>, vector<1x256xf32>
    %4 = vector.broadcast %3 : vector<1x256xf32> to vector<128x256xf32>
    %5 = arith.addf %2, %4 : vector<128x256xf32>
    %c0_5 = arith.constant 0 : index
    %c0_6 = arith.constant 0 : index
    %6 = vector.load %arg6[%c0_5, %c0_6] : memref<256x256xf32, #tpu.memory_space<vmem>>, vector<256x256xf32>
    %cst_7 = arith.constant dense<0.000000e+00> : vector<128x256xf32>
    %7 = tpu.matmul %5, %6, %cst_7 {dimension_numbers = #tpu.dot_dimension_numbers<[1], [0], [0], [1], [0, 0, 1, 1], [], []>} : vector<128x256xf32>, vector<256x256xf32>, vector<128x256xf32> -> vector<128x256xf32>
    %c0_8 = arith.constant 0 : index
    %c0_9 = arith.constant 0 : index
    %8 = vector.load %arg7[%c0_8, %c0_9] : memref<1x256xf32, #tpu.memory_space<vmem>>, vector<1x256xf32>
    %9 = vector.broadcast %8 : vector<1x256xf32> to vector<128x256xf32>
    %10 = arith.addf %7, %9 : vector<128x256xf32>
    %cst_10 = arith.constant 0.000000e+00 : f32
    %11 = vector.broadcast %cst_10 : f32 to vector<128x256xf32>
    %12 = arith.maximumf %10, %11 : vector<128x256xf32>
    %c0_11 = arith.constant 0 : index
    %c0_12 = arith.constant 0 : index
    %13 = vector.load %arg1[%c0_11, %c0_12] : memref<128x32xf32, #tpu.memory_space<vmem>>, vector<128x32xf32>
    %c0_13 = arith.constant 0 : index
    %c0_14 = arith.constant 0 : index
    %14 = vector.load %arg10[%c0_13, %c0_14] : memref<32x256xf32, #tpu.memory_space<vmem>>, vector<32x256xf32>
    %cst_15 = arith.constant dense<0.000000e+00> : vector<128x256xf32>
    %15 = tpu.matmul %13, %14, %cst_15 {dimension_numbers = #tpu.dot_dimension_numbers<[1], [0], [0], [1], [0, 0, 1, 1], [], []>} : vector<128x32xf32>, vector<32x256xf32>, vector<128x256xf32> -> vector<128x256xf32>
    %c0_16 = arith.constant 0 : index
    %c0_17 = arith.constant 0 : index
    %16 = vector.load %arg11[%c0_16, %c0_17] : memref<1x256xf32, #tpu.memory_space<vmem>>, vector<1x256xf32>
    %17 = vector.broadcast %16 : vector<1x256xf32> to vector<128x256xf32>
    %18 = arith.addf %15, %17 : vector<128x256xf32>
    %c0_18 = arith.constant 0 : index
    %c0_19 = arith.constant 0 : index
    %19 = vector.load %arg2[%c0_18, %c0_19] : memref<128x256xf32, #tpu.memory_space<vmem>>, vector<128x256xf32>
    %c0_20 = arith.constant 0 : index
    %c0_21 = arith.constant 0 : index
    %20 = vector.load %arg8[%c0_20, %c0_21] : memref<256x512xf32, #tpu.memory_space<vmem>>, vector<256x512xf32>
    %cst_22 = arith.constant dense<0.000000e+00> : vector<128x512xf32>
    %21 = tpu.matmul %19, %20, %cst_22 {dimension_numbers = #tpu.dot_dimension_numbers<[1], [0], [0], [1], [0, 0, 1, 1], [], []>} : vector<128x256xf32>, vector<256x512xf32>, vector<128x512xf32> -> vector<128x512xf32>
    %c0_23 = arith.constant 0 : index
    %c0_24 = arith.constant 0 : index
    %22 = vector.load %arg9[%c0_23, %c0_24] : memref<1x512xf32, #tpu.memory_space<vmem>>, vector<1x512xf32>
    %23 = vector.broadcast %22 : vector<1x512xf32> to vector<128x512xf32>
    %24 = arith.addf %21, %23 : vector<128x512xf32>
    %25 = vector.extract_strided_slice %24 {offsets = [0, 256], sizes = [128, 256], strides = [1, 1]} : vector<128x512xf32> to vector<128x256xf32>
    %26 = arith.addf %25, %12 : vector<128x256xf32>
    %27 = vector.extract_strided_slice %24 {offsets = [0, 0], sizes = [128, 256], strides = [1, 1]} : vector<128x512xf32> to vector<128x256xf32>
    %28 = arith.subf %18, %27 : vector<128x256xf32>
    %29 = arith.addf %28, %12 : vector<128x256xf32>
    %c0_25 = arith.constant 0 : index
    %c0_26 = arith.constant 0 : index
    %30 = vector.load %arg12[%c0_25, %c0_26] : memref<256x256xf32, #tpu.memory_space<vmem>>, vector<256x256xf32>
    %cst_27 = arith.constant dense<0.000000e+00> : vector<128x256xf32>
    %31 = tpu.matmul %29, %30, %cst_27 {dimension_numbers = #tpu.dot_dimension_numbers<[1], [0], [0], [1], [0, 0, 1, 1], [], []>} : vector<128x256xf32>, vector<256x256xf32>, vector<128x256xf32> -> vector<128x256xf32>
    %c0_28 = arith.constant 0 : index
    %c0_29 = arith.constant 0 : index
    %32 = vector.load %arg13[%c0_28, %c0_29] : memref<1x256xf32, #tpu.memory_space<vmem>>, vector<1x256xf32>
    %33 = vector.broadcast %32 : vector<1x256xf32> to vector<128x256xf32>
    %34 = arith.addf %31, %33 : vector<128x256xf32>
    %c0_30 = arith.constant 0 : index
    %c0_31 = arith.constant 0 : index
    %35 = vector.load %arg14[%c0_30, %c0_31] : memref<256x256xf32, #tpu.memory_space<vmem>>, vector<256x256xf32>
    %cst_32 = arith.constant dense<0.000000e+00> : vector<128x256xf32>
    %36 = tpu.matmul %34, %35, %cst_32 {dimension_numbers = #tpu.dot_dimension_numbers<[1], [0], [0], [1], [0, 0, 1, 1], [], []>} : vector<128x256xf32>, vector<256x256xf32>, vector<128x256xf32> -> vector<128x256xf32>
    %c0_33 = arith.constant 0 : index
    %c0_34 = arith.constant 0 : index
    %37 = vector.load %arg15[%c0_33, %c0_34] : memref<1x256xf32, #tpu.memory_space<vmem>>, vector<1x256xf32>
    %38 = vector.broadcast %37 : vector<1x256xf32> to vector<128x256xf32>
    %39 = arith.addf %36, %38 : vector<128x256xf32>
    %cst_35 = arith.constant 0.000000e+00 : f32
    %40 = vector.broadcast %cst_35 : f32 to vector<128x256xf32>
    %41 = arith.maximumf %39, %40 : vector<128x256xf32>
    %c32_i32 = arith.constant 32 : i32
    %42 = tpu.dynamic_rotate %41 by %c32_i32 dim 1 : vector<128x256xf32>, i32 -> vector<128x256xf32>
    %43 = arith.maximumf %41, %42 : vector<128x256xf32>
    %c64_i32 = arith.constant 64 : i32
    %44 = tpu.dynamic_rotate %43 by %c64_i32 dim 1 : vector<128x256xf32>, i32 -> vector<128x256xf32>
    %45 = arith.maximumf %43, %44 : vector<128x256xf32>
    %c128_i32 = arith.constant 128 : i32
    %46 = tpu.dynamic_rotate %45 by %c128_i32 dim 1 : vector<128x256xf32>, i32 -> vector<128x256xf32>
    %47 = arith.maximumf %45, %46 : vector<128x256xf32>
    %48 = arith.subf %41, %47 : vector<128x256xf32>
    %49 = math.exp %48 : vector<128x256xf32>
    %c32_i32_36 = arith.constant 32 : i32
    %50 = tpu.dynamic_rotate %49 by %c32_i32_36 dim 1 : vector<128x256xf32>, i32 -> vector<128x256xf32>
    %51 = arith.addf %49, %50 : vector<128x256xf32>
    %c64_i32_37 = arith.constant 64 : i32
    %52 = tpu.dynamic_rotate %51 by %c64_i32_37 dim 1 : vector<128x256xf32>, i32 -> vector<128x256xf32>
    %53 = arith.addf %51, %52 : vector<128x256xf32>
    %c128_i32_38 = arith.constant 128 : i32
    %54 = tpu.dynamic_rotate %53 by %c128_i32_38 dim 1 : vector<128x256xf32>, i32 -> vector<128x256xf32>
    %55 = arith.addf %53, %54 : vector<128x256xf32>
    %56 = arith.mulf %49, %26 : vector<128x256xf32>
    %c32_i32_39 = arith.constant 32 : i32
    %57 = tpu.dynamic_rotate %56 by %c32_i32_39 dim 1 : vector<128x256xf32>, i32 -> vector<128x256xf32>
    %58 = arith.addf %56, %57 : vector<128x256xf32>
    %c64_i32_40 = arith.constant 64 : i32
    %59 = tpu.dynamic_rotate %58 by %c64_i32_40 dim 1 : vector<128x256xf32>, i32 -> vector<128x256xf32>
    %60 = arith.addf %58, %59 : vector<128x256xf32>
    %c128_i32_41 = arith.constant 128 : i32
    %61 = tpu.dynamic_rotate %60 by %c128_i32_41 dim 1 : vector<128x256xf32>, i32 -> vector<128x256xf32>
    %62 = arith.addf %60, %61 : vector<128x256xf32>
    %63 = vector.extract_strided_slice %62 {offsets = [0, 0], sizes = [128, 32], strides = [1, 1]} : vector<128x256xf32> to vector<128x32xf32>
    %64 = vector.extract_strided_slice %55 {offsets = [0, 0], sizes = [128, 32], strides = [1, 1]} : vector<128x256xf32> to vector<128x32xf32>
    %65 = arith.divf %63, %64 : vector<128x32xf32>
    %c0_42 = arith.constant 0 : index
    %c0_43 = arith.constant 0 : index
    %66 = vector.load %arg16[%c0_42, %c0_43] : memref<128x32xf32, #tpu.memory_space<vmem>>, vector<128x32xf32>
    tpu.vector_store %arg16[%c0_42, %c0_43], %65 {strides = array<i32>} : memref<128x32xf32, #tpu.memory_space<vmem>>, vector<128x32xf32>,
    return
  }
  func.func @transform_0(%arg0: i32) -> (i32, i32) {
    %c0_i32 = arith.constant 0 : i32
    %c0_i32_0 = arith.constant 0 : i32
    return %arg0, %c0_i32 : i32, i32
  }
  func.func @transform_1(%arg0: i32) -> (i32, i32) {
    %c0_i32 = arith.constant 0 : i32
    %c0_i32_0 = arith.constant 0 : i32
    return %arg0, %c0_i32 : i32, i32
  }
  func.func @transform_2(%arg0: i32) -> (i32, i32) {
    %c0_i32 = arith.constant 0 : i32
    %c0_i32_0 = arith.constant 0 : i32
    return %arg0, %c0_i32 : i32, i32
  }
  func.func @transform_3(%arg0: i32) -> (i32, i32) {
    %c0_i32 = arith.constant 0 : i32
    %c0_i32_0 = arith.constant 0 : i32
    %c0_i32_1 = arith.constant 0 : i32
    return %c0_i32, %c0_i32_0 : i32, i32
  }
  func.func @transform_4(%arg0: i32) -> (i32, i32) {
    %c0_i32 = arith.constant 0 : i32
    %c0_i32_0 = arith.constant 0 : i32
    %c0_i32_1 = arith.constant 0 : i32
    return %c0_i32, %c0_i32_0 : i32, i32
  }
  func.func @transform_5(%arg0: i32) -> (i32, i32) {
    %c0_i32 = arith.constant 0 : i32
    %c0_i32_0 = arith.constant 0 : i32
    %c0_i32_1 = arith.constant 0 : i32
    return %c0_i32, %c0_i32_0 : i32, i32
  }
  func.func @transform_6(%arg0: i32) -> (i32, i32) {
    %c0_i32 = arith.constant 0 : i32
    %c0_i32_0 = arith.constant 0 : i32
    %c0_i32_1 = arith.constant 0 : i32
    return %c0_i32, %c0_i32_0 : i32, i32
  }
  func.func @transform_7(%arg0: i32) -> (i32, i32) {
    %c0_i32 = arith.constant 0 : i32
    %c0_i32_0 = arith.constant 0 : i32
    %c0_i32_1 = arith.constant 0 : i32
    return %c0_i32, %c0_i32_0 : i32, i32
  }
  func.func @transform_8(%arg0: i32) -> (i32, i32) {
    %c0_i32 = arith.constant 0 : i32
    %c0_i32_0 = arith.constant 0 : i32
    %c0_i32_1 = arith.constant 0 : i32
    return %c0_i32, %c0_i32_0 : i32, i32
  }
  func.func @transform_9(%arg0: i32) -> (i32, i32) {
    %c0_i32 = arith.constant 0 : i32
    %c0_i32_0 = arith.constant 0 : i32
    %c0_i32_1 = arith.constant 0 : i32
    return %c0_i32, %c0_i32_0 : i32, i32
  }
  func.func @transform_10(%arg0: i32) -> (i32, i32) {
    %c0_i32 = arith.constant 0 : i32
    %c0_i32_0 = arith.constant 0 : i32
    %c0_i32_1 = arith.constant 0 : i32
    return %c0_i32, %c0_i32_0 : i32, i32
  }
  func.func @transform_11(%arg0: i32) -> (i32, i32) {
    %c0_i32 = arith.constant 0 : i32
    %c0_i32_0 = arith.constant 0 : i32
    %c0_i32_1 = arith.constant 0 : i32
    return %c0_i32, %c0_i32_0 : i32, i32
  }
  func.func @transform_12(%arg0: i32) -> (i32, i32) {
    %c0_i32 = arith.constant 0 : i32
    %c0_i32_0 = arith.constant 0 : i32
    %c0_i32_1 = arith.constant 0 : i32
    return %c0_i32, %c0_i32_0 : i32, i32
  }
  func.func @transform_13(%arg0: i32) -> (i32, i32) {
    %c0_i32 = arith.constant 0 : i32
    %c0_i32_0 = arith.constant 0 : i32
    %c0_i32_1 = arith.constant 0 : i32
    return %c0_i32, %c0_i32_0 : i32, i32
  }
  func.func @transform_14(%arg0: i32) -> (i32, i32) {
    %c0_i32 = arith.constant 0 : i32
    %c0_i32_0 = arith.constant 0 : i32
    %c0_i32_1 = arith.constant 0 : i32
    return %c0_i32, %c0_i32_0 : i32, i32
  }
  func.func @transform_15(%arg0: i32) -> (i32, i32) {
    %c0_i32 = arith.constant 0 : i32
    %c0_i32_0 = arith.constant 0 : i32
    return %arg0, %c0_i32 : i32, i32
  }
}

</mosaic_0001>

<llo_original>
// kernel: tpu_custom_call.1
$region0: #{tpu_custom_call.1}
  #allocation0 [shape = 'u32[]', space=smem, size = 0x4, offset = 0x4, fixed_abs, tag = 'smem constant byte address 0x4 - core index']
  #allocation1 [shape = 'u32[144,128]{1,0:T(1,128)}', space=vmem, size = 0x12000, scoped, tag = 'internal scratch']
  %s0 = inlined_call_operand.vmem [shape: f32[512,32], index: 0, kind: input, shape index: {}]
  %s1 = inlined_call_operand.vmem [shape: f32[512,256], index: 1, kind: input, shape index: {}]
  %s2 = inlined_call_operand.vmem [shape: f32[512,24], index: 2, kind: input, shape index: {}]
  %s3 = inlined_call_operand.vmem [shape: f32[24,256], index: 3, kind: input, shape index: {}]
  %s4 = inlined_call_operand.vmem [shape: f32[1,256], index: 4, kind: input, shape index: {}]
  %s5 = inlined_call_operand.hbm [shape: f32[256,256], index: 5, kind: input, shape index: {}]
  %s6 = inlined_call_operand.vmem [shape: f32[1,256], index: 6, kind: input, shape index: {}]
  %s7 = inlined_call_operand.hbm [shape: f32[256,512], index: 7, kind: input, shape index: {}]
  %s8 = inlined_call_operand.vmem [shape: f32[1,512], index: 8, kind: input, shape index: {}]
  %s9 = inlined_call_operand.vmem [shape: f32[32,256], index: 9, kind: input, shape index: {}]
  %s10 = inlined_call_operand.vmem [shape: f32[1,256], index: 10, kind: input, shape index: {}]
  %s11 = inlined_call_operand.hbm [shape: f32[256,256], index: 11, kind: input, shape index: {}]
  %s12 = inlined_call_operand.vmem [shape: f32[1,256], index: 12, kind: input, shape index: {}]
  %s13 = inlined_call_operand.hbm [shape: f32[256,256], index: 13, kind: input, shape index: {}]
  %s14 = inlined_call_operand.vmem [shape: f32[1,256], index: 14, kind: input, shape index: {}]
  %s15 = inlined_call_operand.vmem [shape: f32[512,32], index: 15, kind: output, shape index: {}]
  %s16 = sld [smem:[#allocation0]]
  $region109: #{tpu_custom_call.1} parent=0
    _
  %s18 = ssub.s32 1, %s16
  %s19 = scalar_select 0, %s18, %s16
  $region1: #{tpu_custom_call.1} parent=0
    #allocation2 [shape = 'u8[262144]{0}', space=vmem, size = 0x40000, scoped, tag = 'input window, operand 5, single buffered']
    #allocation3 [shape = 's32[2]{0}', space=sflag, size = 0x8, scoped, tag = 'scoped memory for tpu_custom_call.1']
    #allocation4 [shape = 'u8[524288]{0}', space=vmem, size = 0x80000, scoped, tag = 'input window, operand 7, single buffered']
    #allocation5 [shape = 's32[1]{0}', space=sflag, size = 0x4, scoped, tag = 'scoped memory for tpu_custom_call.1']
    #allocation6 [shape = 'u8[262144]{0}', space=vmem, size = 0x40000, scoped, tag = 'input window, operand 11, single buffered']
    #allocation7 [shape = 'u8[262144]{0}', space=vmem, size = 0x40000, scoped, tag = 'input window, operand 13, single buffered']
    #allocation8 [shape = 's32[1]{0}', space=sflag, size = 0x4, scoped, tag = 'scoped memory for tpu_custom_call.1']
    %20 = vsyncpa [#allocation3], 0
    %21 = vsyncpa [#allocation5], 0
    %22 = vsyncpa [#allocation8], 0
    loop: start=0, step=1, limit=6
    $region2: #{tpu_custom_call.1} parent=1 // loop_pre_header
      _
    $region3: #{tpu_custom_call.1} parent=1 // loop_header
      %s24 = sphi 0, %s28
      %p25 = scmp.ge.s32.totalorder %s24, 6
      %s34 = sphi 0, %s36
      %s37 = sphi 0, %s34
      %s38 = sphi 0, %s37
      %s54 = sphi 0, %s38
      %s60 = sphi 0, %s62
      %s63 = sphi 0, %s60
      %s64 = sphi 0, %s63
      %s80 = sphi 0, %s64
      %s86 = sphi 0, %s88
      %s89 = sphi 0, %s86
      %s90 = sphi 0, %s89
      %s106 = sphi 0, %s90
      %s110 = sphi 0, %s110
      %s112 = sphi 0, %s110
      %s113 = sphi 0, %s112
      %s127 = sphi 0, %s113
      %s131 = sphi 0, %s131
      %s133 = sphi 0, %s131
      %s134 = sphi 0, %s133
      %s148 = sphi 0, %s134
      %s152 = sphi 0, %s152
      %s154 = sphi 0, %s152
      %s155 = sphi 0, %s154
      %s169 = sphi 0, %s155
      %s173 = sphi 0, %s173
      %s175 = sphi 0, %s173
      %s176 = sphi 0, %s175
      %s190 = sphi 0, %s176
      %s194 = sphi 0, %s194
      %s196 = sphi 0, %s194
      %s197 = sphi 0, %s196
      %s211 = sphi 0, %s197
      %s215 = sphi 0, %s215
      %s217 = sphi 0, %s215
      %s218 = sphi 0, %s217
      %s232 = sphi 0, %s218
      %s236 = sphi 0, %s236
      %s238 = sphi 0, %s236
      %s239 = sphi 0, %s238
      %s253 = sphi 0, %s239
      %s257 = sphi 0, %s257
      %s259 = sphi 0, %s257
      %s260 = sphi 0, %s259
      %s274 = sphi 0, %s260
      %s278 = sphi 0, %s278
      %s280 = sphi 0, %s278
      %s281 = sphi 0, %s280
      %s295 = sphi 0, %s281
      %s299 = sphi 0, %s299
      %s301 = sphi 0, %s299
      %s302 = sphi 0, %s301
      %s316 = sphi 0, %s302
      %s320 = sphi 0, %s320
      %s322 = sphi 0, %s320
      %s323 = sphi 0, %s322
      %s337 = sphi 0, %s323
      %s341 = sphi 0, %s341
      %s343 = sphi 0, %s341
      %s344 = sphi 0, %s343
      %s358 = sphi 0, %s344
      %s364 = sphi 0, %s366
      %s367 = sphi 0, %s364
      %s368 = sphi 0, %s367
      %s384 = sphi 0, %s368
    $region4: #{tpu_custom_call.1} parent=1 // loop_header_branch
      %27 = sbr.rel (%p25) target = $region8
    $region5: #{tpu_custom_call.1} parent=1 // loop_body
      %s29 = ssub.s32 %s24, 1
      %s30 = ssub.s32 %s24, 2
      %s31 = sadd.s32 %s24, 1
      %s32 = ssub.s32 %s24, %s31
      %p33 = scmp.eq.s32.totalorder %s32, 0
      %s35 = sadd.s32 %s34, 1
      %s36 = scalar_select %p33, %s34, %s35
      %p39 = pneg %p33
      %p40 = scmp.eq.s32.totalorder %s24, 3
      %p41 = por %p39, %p40
      %p42 = scmp.ne.s32.totalorder %s34, %s37
      %p43 = scmp.eq.s32.totalorder %s24, 0
      %p44 = por %p42, %p43
      %p45 = scmp.ne.s32.totalorder %s34, %s37
      %p46 = scmp.eq.s32.totalorder %s29, 3
      %p47 = por %p45, %p46
      %p48 = scmp.ne.s32.totalorder %s37, %s38
      %p49 = scmp.eq.s32.totalorder %s29, 0
      %p50 = por %p48, %p49
      %p51 = scmp.ne.s32.totalorder %s37, %s38
      %p52 = scmp.eq.s32.totalorder %s30, 3
      %p53 = por %p51, %p52
      %p55 = scmp.ne.s32.totalorder %s38, %s54
      %p56 = scmp.eq.s32.totalorder %s30, 0
      %p57 = por %p55, %p56
      %s58 = ssub.s32 %s24, %s31
      %p59 = scmp.eq.s32.totalorder %s58, 0
      %s61 = sadd.s32 %s60, 1
      %s62 = scalar_select %p59, %s60, %s61
      %p65 = pneg %p59
      %p66 = scmp.eq.s32.totalorder %s24, 3
      %p67 = por %p65, %p66
      %p68 = scmp.ne.s32.totalorder %s60, %s63
      %p69 = scmp.eq.s32.totalorder %s24, 0
      %p70 = por %p68, %p69
      %p71 = scmp.ne.s32.totalorder %s60, %s63
      %p72 = scmp.eq.s32.totalorder %s29, 3
      %p73 = por %p71, %p72
      %p74 = scmp.ne.s32.totalorder %s63, %s64
      %p75 = scmp.eq.s32.totalorder %s29, 0
      %p76 = por %p74, %p75
      %p77 = scmp.ne.s32.totalorder %s63, %s64
      %p78 = scmp.eq.s32.totalorder %s30, 3
      %p79 = por %p77, %p78
      %p81 = scmp.ne.s32.totalorder %s64, %s80
      %p82 = scmp.eq.s32.totalorder %s30, 0
      %p83 = por %p81, %p82
      %s84 = ssub.s32 %s24, %s31
      %p85 = scmp.eq.s32.totalorder %s84, 0
      %s87 = sadd.s32 %s86, 1
      %s88 = scalar_select %p85, %s86, %s87
      %p91 = pneg %p85
      %p92 = scmp.eq.s32.totalorder %s24, 3
      %p93 = por %p91, %p92
      %p94 = scmp.ne.s32.totalorder %s86, %s89
      %p95 = scmp.eq.s32.totalorder %s24, 0
      %p96 = por %p94, %p95
      %p97 = scmp.ne.s32.totalorder %s86, %s89
      %p98 = scmp.eq.s32.totalorder %s29, 3
      %p99 = por %p97, %p98
      %p100 = scmp.ne.s32.totalorder %s89, %s90
      %p101 = scmp.eq.s32.totalorder %s29, 0
      %p102 = por %p100, %p101
      %p103 = scmp.ne.s32.totalorder %s89, %s90
      %p104 = scmp.eq.s32.totalorder %s30, 3
      %p105 = por %p103, %p104
      %p107 = scmp.ne.s32.totalorder %s90, %s106
      %p108 = scmp.eq.s32.totalorder %s30, 0
      %p109 = por %p107, %p108
      %s111 = sadd.s32 %s110, 1
      %p114 = scmp.eq.s32.totalorder %s24, 3
      %p115 = scmp.ne.s32.totalorder %s110, %s112
      %p116 = scmp.eq.s32.totalorder %s24, 0
      %p117 = por %p115, %p116
      %p118 = scmp.ne.s32.totalorder %s110, %s112
      %p119 = scmp.eq.s32.totalorder %s29, 3
      %p120 = por %p118, %p119
      %p121 = scmp.ne.s32.totalorder %s112, %s113
      %p122 = scmp.eq.s32.totalorder %s29, 0
      %p123 = por %p121, %p122
      %p124 = scmp.ne.s32.totalorder %s112, %s113
      %p125 = scmp.eq.s32.totalorder %s30, 3
      %p126 = por %p124, %p125
      %p128 = scmp.ne.s32.totalorder %s113, %s127
      %p129 = scmp.eq.s32.totalorder %s30, 0
      %p130 = por %p128, %p129
      %s132 = sadd.s32 %s131, 1
      %p135 = scmp.eq.s32.totalorder %s24, 3
      %p136 = scmp.ne.s32.totalorder %s131, %s133
      %p137 = scmp.eq.s32.totalorder %s24, 0
      %p138 = por %p136, %p137
      %p139 = scmp.ne.s32.totalorder %s131, %s133
      %p140 = scmp.eq.s32.totalorder %s29, 3
      %p141 = por %p139, %p140
      %p142 = scmp.ne.s32.totalorder %s133, %s134
      %p143 = scmp.eq.s32.totalorder %s29, 0
      %p144 = por %p142, %p143
      %p145 = scmp.ne.s32.totalorder %s133, %s134
      %p146 = scmp.eq.s32.totalorder %s30, 3
      %p147 = por %p145, %p146
      %p149 = scmp.ne.s32.totalorder %s134, %s148
      %p150 = scmp.eq.s32.totalorder %s30, 0
      %p151 = por %p149, %p150
      %s153 = sadd.s32 %s152, 1
      %p156 = scmp.eq.s32.totalorder %s24, 3
      %p157 = scmp.ne.s32.totalorder %s152, %s154
      %p158 = scmp.eq.s32.totalorder %s24, 0
      %p159 = por %p157, %p158
      %p160 = scmp.ne.s32.totalorder %s152, %s154
      %p161 = scmp.eq.s32.totalorder %s29, 3
      %p162 = por %p160, %p161
      %p163 = scmp.ne.s32.totalorder %s154, %s155
      %p164 = scmp.eq.s32.totalorder %s29, 0
      %p165 = por %p163, %p164
      %p166 = scmp.ne.s32.totalorder %s154, %s155
      %p167 = scmp.eq.s32.totalorder %s30, 3
      %p168 = por %p166, %p167
      %p170 = scmp.ne.s32.totalorder %s155, %s169
      %p171 = scmp.eq.s32.totalorder %s30, 0
      %p172 = por %p170, %p171
      %s174 = sadd.s32 %s173, 1
      %p177 = scmp.eq.s32.totalorder %s24, 3
      %p178 = scmp.ne.s32.totalorder %s173, %s175
      %p179 = scmp.eq.s32.totalorder %s24, 0
      %p180 = por %p178, %p179
      %p181 = scmp.ne.s32.totalorder %s173, %s175
      %p182 = scmp.eq.s32.totalorder %s29, 3
      %p183 = por %p181, %p182
      %p184 = scmp.ne.s32.totalorder %s175, %s176
      %p185 = scmp.eq.s32.totalorder %s29, 0
      %p186 = por %p184, %p185
      %p187 = scmp.ne.s32.totalorder %s175, %s176
      %p188 = scmp.eq.s32.totalorder %s30, 3
      %p189 = por %p187, %p188
      %p191 = scmp.ne.s32.totalorder %s176, %s190
      %p192 = scmp.eq.s32.totalorder %s30, 0
      %p193 = por %p191, %p192
      %s195 = sadd.s32 %s194, 1
      %p198 = scmp.eq.s32.totalorder %s24, 3
      %p199 = scmp.ne.s32.totalorder %s194, %s196
      %p200 = scmp.eq.s32.totalorder %s24, 0
      %p201 = por %p199, %p200
      %p202 = scmp.ne.s32.totalorder %s194, %s196
      %p203 = scmp.eq.s32.totalorder %s29, 3
      %p204 = por %p202, %p203
      %p205 = scmp.ne.s32.totalorder %s196, %s197
      %p206 = scmp.eq.s32.totalorder %s29, 0
      %p207 = por %p205, %p206
      %p208 = scmp.ne.s32.totalorder %s196, %s197
      %p209 = scmp.eq.s32.totalorder %s30, 3
      %p210 = por %p208, %p209
      %p212 = scmp.ne.s32.totalorder %s197, %s211
      %p213 = scmp.eq.s32.totalorder %s30, 0
      %p214 = por %p212, %p213
      %s216 = sadd.s32 %s215, 1
      %p219 = scmp.eq.s32.totalorder %s24, 3
      %p220 = scmp.ne.s32.totalorder %s215, %s217
      %p221 = scmp.eq.s32.totalorder %s24, 0
      %p222 = por %p220, %p221
      %p223 = scmp.ne.s32.totalorder %s215, %s217
      %p224 = scmp.eq.s32.totalorder %s29, 3
      %p225 = por %p223, %p224
      %p226 = scmp.ne.s32.totalorder %s217, %s218
      %p227 = scmp.eq.s32.totalorder %s29, 0
      %p228 = por %p226, %p227
      %p229 = scmp.ne.s32.totalorder %s217, %s218
      %p230 = scmp.eq.s32.totalorder %s30, 3
      %p231 = por %p229, %p230
      %p233 = scmp.ne.s32.totalorder %s218, %s232
      %p234 = scmp.eq.s32.totalorder %s30, 0
      %p235 = por %p233, %p234
      %s237 = sadd.s32 %s236, 1
      %p240 = scmp.eq.s32.totalorder %s24, 3
      %p241 = scmp.ne.s32.totalorder %s236, %s238
      %p242 = scmp.eq.s32.totalorder %s24, 0
      %p243 = por %p241, %p242
      %p244 = scmp.ne.s32.totalorder %s236, %s238
      %p245 = scmp.eq.s32.totalorder %s29, 3
      %p246 = por %p244, %p245
      %p247 = scmp.ne.s32.totalorder %s238, %s239
      %p248 = scmp.eq.s32.totalorder %s29, 0
      %p249 = por %p247, %p248
      %p250 = scmp.ne.s32.totalorder %s238, %s239
      %p251 = scmp.eq.s32.totalorder %s30, 3
      %p252 = por %p250, %p251
      %p254 = scmp.ne.s32.totalorder %s239, %s253
      %p255 = scmp.eq.s32.totalorder %s30, 0
      %p256 = por %p254, %p255
      %s258 = sadd.s32 %s257, 1
      %p261 = scmp.eq.s32.totalorder %s24, 3
      %p262 = scmp.ne.s32.totalorder %s257, %s259
      %p263 = scmp.eq.s32.totalorder %s24, 0
      %p264 = por %p262, %p263
      %p265 = scmp.ne.s32.totalorder %s257, %s259
      %p266 = scmp.eq.s32.totalorder %s29, 3
      %p267 = por %p265, %p266
      %p268 = scmp.ne.s32.totalorder %s259, %s260
      %p269 = scmp.eq.s32.totalorder %s29, 0
      %p270 = por %p268, %p269
      %p271 = scmp.ne.s32.totalorder %s259, %s260
      %p272 = scmp.eq.s32.totalorder %s30, 3
      %p273 = por %p271, %p272
      %p275 = scmp.ne.s32.totalorder %s260, %s274
      %p276 = scmp.eq.s32.totalorder %s30, 0
      %p277 = por %p275, %p276
      %s279 = sadd.s32 %s278, 1
      %p282 = scmp.eq.s32.totalorder %s24, 3
      %p283 = scmp.ne.s32.totalorder %s278, %s280
      %p284 = scmp.eq.s32.totalorder %s24, 0
      %p285 = por %p283, %p284
      %p286 = scmp.ne.s32.totalorder %s278, %s280
      %p287 = scmp.eq.s32.totalorder %s29, 3
      %p288 = por %p286, %p287
      %p289 = scmp.ne.s32.totalorder %s280, %s281
      %p290 = scmp.eq.s32.totalorder %s29, 0
      %p291 = por %p289, %p290
      %p292 = scmp.ne.s32.totalorder %s280, %s281
      %p293 = scmp.eq.s32.totalorder %s30, 3
      %p294 = por %p292, %p293
      %p296 = scmp.ne.s32.totalorder %s281, %s295
      %p297 = scmp.eq.s32.totalorder %s30, 0
      %p298 = por %p296, %p297
      %s300 = sadd.s32 %s299, 1
      %p303 = scmp.eq.s32.totalorder %s24, 3
      %p304 = scmp.ne.s32.totalorder %s299, %s301
      %p305 = scmp.eq.s32.totalorder %s24, 0
      %p306 = por %p304, %p305
      %p307 = scmp.ne.s32.totalorder %s299, %s301
      %p308 = scmp.eq.s32.totalorder %s29, 3
      %p309 = por %p307, %p308
      %p310 = scmp.ne.s32.totalorder %s301, %s302
      %p311 = scmp.eq.s32.totalorder %s29, 0
      %p312 = por %p310, %p311
      %p313 = scmp.ne.s32.totalorder %s301, %s302
      %p314 = scmp.eq.s32.totalorder %s30, 3
      %p315 = por %p313, %p314
      %p317 = scmp.ne.s32.totalorder %s302, %s316
      %p318 = scmp.eq.s32.totalorder %s30, 0
      %p319 = por %p317, %p318
      %s321 = sadd.s32 %s320, 1
      %p324 = scmp.eq.s32.totalorder %s24, 3
      %p325 = scmp.ne.s32.totalorder %s320, %s322
      %p326 = scmp.eq.s32.totalorder %s24, 0
      %p327 = por %p325, %p326
      %p328 = scmp.ne.s32.totalorder %s320, %s322
      %p329 = scmp.eq.s32.totalorder %s29, 3
      %p330 = por %p328, %p329
      %p331 = scmp.ne.s32.totalorder %s322, %s323
      %p332 = scmp.eq.s32.totalorder %s29, 0
      %p333 = por %p331, %p332
      %p334 = scmp.ne.s32.totalorder %s322, %s323
      %p335 = scmp.eq.s32.totalorder %s30, 3
      %p336 = por %p334, %p335
      %p338 = scmp.ne.s32.totalorder %s323, %s337
      %p339 = scmp.eq.s32.totalorder %s30, 0
      %p340 = por %p338, %p339
      %s342 = sadd.s32 %s341, 1
      %p345 = scmp.eq.s32.totalorder %s24, 3
      %p346 = scmp.ne.s32.totalorder %s341, %s343
      %p347 = scmp.eq.s32.totalorder %s24, 0
      %p348 = por %p346, %p347
      %p349 = scmp.ne.s32.totalorder %s341, %s343
      %p350 = scmp.eq.s32.totalorder %s29, 3
      %p351 = por %p349, %p350
      %p352 = scmp.ne.s32.totalorder %s343, %s344
      %p353 = scmp.eq.s32.totalorder %s29, 0
      %p354 = por %p352, %p353
      %p355 = scmp.ne.s32.totalorder %s343, %s344
      %p356 = scmp.eq.s32.totalorder %s30, 3
      %p357 = por %p355, %p356
      %p359 = scmp.ne.s32.totalorder %s344, %s358
      %p360 = scmp.eq.s32.totalorder %s30, 0
      %p361 = por %p359, %p360
      %s362 = ssub.s32 %s24, %s31
      %p363 = scmp.eq.s32.totalorder %s362, 0
      %s365 = sadd.s32 %s364, 1
      %s366 = scalar_select %p363, %s364, %s365
      %p369 = pneg %p363
      %p370 = scmp.eq.s32.totalorder %s24, 3
      %p371 = por %p369, %p370
      %p372 = scmp.ne.s32.totalorder %s364, %s367
      %p373 = scmp.eq.s32.totalorder %s24, 0
      %p374 = por %p372, %p373
      %p375 = scmp.ne.s32.totalorder %s364, %s367
      %p376 = scmp.eq.s32.totalorder %s29, 3
      %p377 = por %p375, %p376
      %p378 = scmp.ne.s32.totalorder %s367, %s368
      %p379 = scmp.eq.s32.totalorder %s29, 0
      %p380 = por %p378, %p379
      %p381 = scmp.ne.s32.totalorder %s367, %s368
      %p382 = scmp.eq.s32.totalorder %s30, 3
      %p383 = por %p381, %p382
      %p385 = scmp.ne.s32.totalorder %s368, %s384
      %p386 = scmp.eq.s32.totalorder %s30, 0
      %p387 = por %p385, %p386
      %p388 = scmp.le.s32.totalorder 1, %s24
      %p389 = scmp.lt.s32.totalorder %s24, 5
      %p390 = pnand %p388, %p389
      %p391 = pneg %p390
      // Predicated region
      $region9: #{tpu_custom_call.1} parent=5 // pred_check
        _
      $region10: #{tpu_custom_call.1} parent=5 // pred_check_branch
        %393 = sbr.rel (%p390) target = $region12
      $region11: #{tpu_custom_call.1} parent=5 // pred_region
        %s394 = ssub.s32 %s24, 1
        // Predicated region
        $region13: #{tpu_custom_call.1} parent=11 // pred_check
          %p395 = pneg %p123
        $region14: #{tpu_custom_call.1} parent=11 // pred_check_branch
          %397 = sbr.rel (%p395) target = $region16
        $region15: #{tpu_custom_call.1} parent=11 // pred_region
          _
        $region16: #{tpu_custom_call.1} parent=11 // pred_fallthru
          _
        // Predicated region
        $region17: #{tpu_custom_call.1} parent=11 // pred_check
          %p398 = pneg %p144
        $region18: #{tpu_custom_call.1} parent=11 // pred_check_branch
          %400 = sbr.rel (%p398) target = $region20
        $region19: #{tpu_custom_call.1} parent=11 // pred_region
          _
        $region20: #{tpu_custom_call.1} parent=11 // pred_fallthru
          _
        // Predicated region
        $region21: #{tpu_custom_call.1} parent=11 // pred_check
          %p401 = pneg %p165
        $region22: #{tpu_custom_call.1} parent=11 // pred_check_branch
          %403 = sbr.rel (%p401) target = $region24
        $region23: #{tpu_custom_call.1} parent=11 // pred_region
          %s405 = ssub.s32 8192, 8192
          %406 = vsyncadd [#allocation3], %s405
          %s407 = sshll.u32 [#allocation2], 4
          %s408 = int_to_ptr.vmem [resolvable:$true] %s407
          %413 = dma.hbm_to_vmem [thread:$0]  %s5, 8192, %s408, [#allocation3], 256, 256, 16
        $region24: #{tpu_custom_call.1} parent=11 // pred_fallthru
          _
        // Predicated region
        $region25: #{tpu_custom_call.1} parent=11 // pred_check
          %p414 = pneg %p186
        $region26: #{tpu_custom_call.1} parent=11 // pred_check_branch
          %416 = sbr.rel (%p414) target = $region28
        $region27: #{tpu_custom_call.1} parent=11 // pred_region
          _
        $region28: #{tpu_custom_call.1} parent=11 // pred_fallthru
          _
        // Predicated region
        $region29: #{tpu_custom_call.1} parent=11 // pred_check
          %p417 = pneg %p207
        $region30: #{tpu_custom_call.1} parent=11 // pred_check_branch
          %419 = sbr.rel (%p417) target = $region32
        $region31: #{tpu_custom_call.1} parent=11 // pred_region
          %s421 = ssub.s32 16384, 16384
          %422 = vsyncadd [#allocation5], %s421
          %s423 = sshll.u32 [#allocation4], 4
          %s424 = int_to_ptr.vmem [resolvable:$true] %s423
          %429 = dma.hbm_to_vmem [thread:$0]  %s7, 16384, %s424, [#allocation5], 512, 512, 32
        $region32: #{tpu_custom_call.1} parent=11 // pred_fallthru
          _
        // Predicated region
        $region33: #{tpu_custom_call.1} parent=11 // pred_check
          %p430 = pneg %p228
        $region34: #{tpu_custom_call.1} parent=11 // pred_check_branch
          %432 = sbr.rel (%p430) target = $region36
        $region35: #{tpu_custom_call.1} parent=11 // pred_region
          _
        $region36: #{tpu_custom_call.1} parent=11 // pred_fallthru
          _
        // Predicated region
        $region37: #{tpu_custom_call.1} parent=11 // pred_check
          %p433 = pneg %p249
        $region38: #{tpu_custom_call.1} parent=11 // pred_check_branch
          %435 = sbr.rel (%p433) target = $region40
        $region39: #{tpu_custom_call.1} parent=11 // pred_region
          _
        $region40: #{tpu_custom_call.1} parent=11 // pred_fallthru
          _
        // Predicated region
        $region41: #{tpu_custom_call.1} parent=11 // pred_check
          %p436 = pneg %p270
        $region42: #{tpu_custom_call.1} parent=11 // pred_check_branch
          %438 = sbr.rel (%p436) target = $region44
        $region43: #{tpu_custom_call.1} parent=11 // pred_region
          _
        $region44: #{tpu_custom_call.1} parent=11 // pred_fallthru
          _
        // Predicated region
        $region45: #{tpu_custom_call.1} parent=11 // pred_check
          %p439 = pneg %p291
        $region46: #{tpu_custom_call.1} parent=11 // pred_check_branch
          %441 = sbr.rel (%p439) target = $region48
        $region47: #{tpu_custom_call.1} parent=11 // pred_region
          %s443 = ssub.s32 8192, 8192
          %444 = vsyncadd [#allocation5], %s443
          %s445 = sshll.u32 [#allocation6], 4
          %s446 = int_to_ptr.vmem [resolvable:$true] %s445
          %451 = dma.hbm_to_vmem [thread:$0]  %s11, 8192, %s446, [#allocation5], 256, 256, 16
        $region48: #{tpu_custom_call.1} parent=11 // pred_fallthru
          _
        // Predicated region
        $region49: #{tpu_custom_call.1} parent=11 // pred_check
          %p452 = pneg %p312
        $region50: #{tpu_custom_call.1} parent=11 // pred_check_branch
          %454 = sbr.rel (%p452) target = $region52
        $region51: #{tpu_custom_call.1} parent=11 // pred_region
          _
        $region52: #{tpu_custom_call.1} parent=11 // pred_fallthru
          _
        // Predicated region
        $region53: #{tpu_custom_call.1} parent=11 // pred_check
          %p455 = pneg %p333
        $region54: #{tpu_custom_call.1} parent=11 // pred_check_branch
          %457 = sbr.rel (%p455) target = $region56
        $region55: #{tpu_custom_call.1} parent=11 // pred_region
          %s459 = ssub.s32 8192, 8192
          %460 = vsyncadd [#allocation8], %s459
          %s461 = sshll.u32 [#allocation7], 4
          %s462 = int_to_ptr.vmem [resolvable:$true] %s461
          %467 = dma.hbm_to_vmem [thread:$0]  %s13, 8192, %s462, [#allocation8], 256, 256, 16
        $region56: #{tpu_custom_call.1} parent=11 // pred_fallthru
          _
        // Predicated region
        $region57: #{tpu_custom_call.1} parent=11 // pred_check
          %p468 = pneg %p354
        $region58: #{tpu_custom_call.1} parent=11 // pred_check_branch
          %470 = sbr.rel (%p468) target = $region60
        $region59: #{tpu_custom_call.1} parent=11 // pred_region
          _
        $region60: #{tpu_custom_call.1} parent=11 // pred_fallthru
          _
      $region12: #{tpu_custom_call.1} parent=5 // pred_fallthru
        _
      %p471 = scmp.lt.s32.totalorder %s24, 4
      // Predicated region
      $region61: #{tpu_custom_call.1} parent=5 // pred_check
        %p472 = pneg %p471
      $region62: #{tpu_custom_call.1} parent=5 // pred_check_branch
        %474 = sbr.rel (%p472) target = $region64
      $region63: #{tpu_custom_call.1} parent=5 // pred_region
        // Predicated region
        $region65: #{tpu_custom_call.1} parent=63 // pred_check
          %p475 = pneg %p44
        $region66: #{tpu_custom_call.1} parent=63 // pred_check_branch
          %477 = sbr.rel (%p475) target = $region68
        $region67: #{tpu_custom_call.1} parent=63 // pred_region
          %s478 = smul.u32 16, %s24
          %p479 = scmp.lt.s32.totalorder %s478, 63
          %s480 = scalar_select %p479, %s478, 63
          %s481 = smul.addr %s480, 8
          %s482 = scalar_lea.vmem %s0, %s481
          %s483 = smul.u32 16, %s24
        $region68: #{tpu_custom_call.1} parent=63 // pred_fallthru
          _
        // Predicated region
        $region69: #{tpu_custom_call.1} parent=63 // pred_check
          %p484 = pneg %p70
        $region70: #{tpu_custom_call.1} parent=63 // pred_check_branch
          %486 = sbr.rel (%p484) target = $region72
        $region71: #{tpu_custom_call.1} parent=63 // pred_region
          %s487 = smul.u32 16, %s24
          %p488 = scmp.lt.s32.totalorder %s487, 63
          %s489 = scalar_select %p488, %s487, 63
          %s490 = smul.addr %s489, 2
          %s491 = smul.addr %s490, 8
          %s492 = scalar_lea.vmem %s1, %s491
          %s493 = smul.u32 16, %s24
        $region72: #{tpu_custom_call.1} parent=63 // pred_fallthru
          _
        // Predicated region
        $region73: #{tpu_custom_call.1} parent=63 // pred_check
          %p494 = pneg %p96
        $region74: #{tpu_custom_call.1} parent=63 // pred_check_branch
          %496 = sbr.rel (%p494) target = $region76
        $region75: #{tpu_custom_call.1} parent=63 // pred_region
          %s497 = smul.u32 16, %s24
          %p498 = scmp.lt.s32.totalorder %s497, 63
          %s499 = scalar_select %p498, %s497, 63
          %s500 = smul.addr %s499, 8
          %s501 = scalar_lea.vmem %s2, %s500
          %s502 = smul.u32 16, %s24
        $region76: #{tpu_custom_call.1} parent=63 // pred_fallthru
          _
      $region64: #{tpu_custom_call.1} parent=5 // pred_fallthru
        _
      %p503 = scmp.le.s32.totalorder 1, %s24
      %p504 = scmp.lt.s32.totalorder %s24, 5
      %p505 = pnand %p503, %p504
      %p506 = pneg %p505
      // Predicated region
      $region77: #{tpu_custom_call.1} parent=5 // pred_check
        _
      $region78: #{tpu_custom_call.1} parent=5 // pred_check_branch
        %508 = sbr.rel (%p505) target = $region80
      $region79: #{tpu_custom_call.1} parent=5 // pred_region
        %s509 = ssub.s32 %s24, 1
        // Predicated region
        $region81: #{tpu_custom_call.1} parent=79 // pred_check
          %p510 = pneg %p165
        $region82: #{tpu_custom_call.1} parent=79 // pred_check_branch
          %512 = sbr.rel (%p510) target = $region84
        $region83: #{tpu_custom_call.1} parent=79 // pred_region
          %513 = dma.done [#allocation3], 8192
        $region84: #{tpu_custom_call.1} parent=79 // pred_fallthru
          _
        // Predicated region
        $region85: #{tpu_custom_call.1} parent=79 // pred_check
          %p514 = pneg %p207
        $region86: #{tpu_custom_call.1} parent=79 // pred_check_branch
          %516 = sbr.rel (%p514) target = $region88
        $region87: #{tpu_custom_call.1} parent=79 // pred_region
          %517 = dma.done [#allocation5], 16384
        $region88: #{tpu_custom_call.1} parent=79 // pred_fallthru
          _
        // Predicated region
        $region89: #{tpu_custom_call.1} parent=79 // pred_check
          %p518 = pneg %p291
        $region90: #{tpu_custom_call.1} parent=79 // pred_check_branch
          %520 = sbr.rel (%p518) target = $region92
        $region91: #{tpu_custom_call.1} parent=79 // pred_region
          %521 = dma.done [#allocation5], 8192
        $region92: #{tpu_custom_call.1} parent=79 // pred_fallthru
          _
        // Predicated region
        $region93: #{tpu_custom_call.1} parent=79 // pred_check
          %p522 = pneg %p333
        $region94: #{tpu_custom_call.1} parent=79 // pred_check_branch
          %524 = sbr.rel (%p522) target = $region96
        $region95: #{tpu_custom_call.1} parent=79 // pred_region
          %525 = dma.done [#allocation8], 8192
        $region96: #{tpu_custom_call.1} parent=79 // pred_fallthru
          _
        %s526 = smul.u32 16, %s29
        %p527 = scmp.lt.s32.totalorder %s526, 63
        %s528 = scalar_select %p527, %s526, 63
        %s529 = smul.addr %s528, 8
        %s530 = scalar_lea.vmem %s0, %s529
        %p531 = pneg %p50
        %p532 = pneg %p47
        %s533 = smul.u32 16, %s29
        %p534 = scmp.lt.s32.totalorder %s533, 63
        %s535 = scalar_select %p534, %s533, 63
        %s536 = smul.addr %s535, 2
        %s537 = smul.addr %s536, 8
        %s538 = scalar_lea.vmem %s1, %s537
        %p539 = pneg %p76
        %p540 = pneg %p73
        %s541 = smul.u32 16, %s29
        %p542 = scmp.lt.s32.totalorder %s541, 63
        %s543 = scalar_select %p542, %s541, 63
        %s544 = smul.addr %s543, 8
        %s545 = scalar_lea.vmem %s2, %s544
        %p546 = pneg %p102
        %p547 = pneg %p99
        %p548 = pneg %p123
        %p549 = pneg %p120
        %p550 = pneg %p144
        %p551 = pneg %p141
        %p552 = pneg %p165
        %p553 = pneg %p162
        %p554 = pneg %p186
        %p555 = pneg %p183
        %p556 = pneg %p207
        %p557 = pneg %p204
        %p558 = pneg %p228
        %p559 = pneg %p225
        %p560 = pneg %p249
        %p561 = pneg %p246
        %p562 = pneg %p270
        %p563 = pneg %p267
        %p564 = pneg %p291
        %p565 = pneg %p288
        %p566 = pneg %p312
        %p567 = pneg %p309
        %p568 = pneg %p333
        %p569 = pneg %p330
        %p570 = pneg %p354
        %p571 = pneg %p351
        %p572 = pneg %p380
        %p573 = pneg %p377
        %s574 = smul.u32 16, %s29
        %p575 = scmp.lt.s32.totalorder %s574, 63
        %s576 = scalar_select %p575, %s574, 63
        %s577 = smul.addr %s576, 8
        %s578 = scalar_lea.vmem %s15, %s577
        %s579 = smul.u32 16, %s29
        %p580 = scmp.lt.s32.totalorder %s579, 63
        %s581 = scalar_select %p580, %s579, 63
        %s582 = smul.addr %s581, 8
        %s583 = scalar_lea.vmem %s0, %s582
        %s584 = smul.u32 16, %s29
        %s585 = smul.u32 16, %s29
        %p586 = scmp.lt.s32.totalorder %s585, 63
        %s587 = scalar_select %p586, %s585, 63
        %s588 = smul.addr %s587, 2
        %s589 = smul.addr %s588, 8
        %s590 = scalar_lea.vmem %s1, %s589
        %s591 = smul.u32 16, %s29
        %s592 = smul.u32 16, %s29
        %p593 = scmp.lt.s32.totalorder %s592, 63
        %s594 = scalar_select %p593, %s592, 63
        %s595 = smul.addr %s594, 8
        %s596 = scalar_lea.vmem %s2, %s595
        %s597 = smul.u32 16, %s29
        %s598 = smul.u32 16, %s29
        %p599 = scmp.lt.s32.totalorder %s598, 63
        %s600 = scalar_select %p599, %s598, 63
        %s601 = smul.addr %s600, 8
        %s602 = scalar_lea.vmem %s15, %s601
        %s603 = smul.u32 16, %s29
        %v604 = vld [vmem:[%s596] sm:$0xff]
        %v605 = vld [vmem:[%s596 + $0x8] sm:$0xff]
        %v606 = vld [vmem:[%s596 + $0x10] sm:$0xff]
        %v607 = vld [vmem:[%s596 + $0x18] sm:$0xff]
        %v608 = vld [vmem:[%s596 + $0x20] sm:$0xff]
        %v609 = vld [vmem:[%s596 + $0x28] sm:$0xff]
        %v610 = vld [vmem:[%s596 + $0x30] sm:$0xff]
        %v611 = vld [vmem:[%s596 + $0x38] sm:$0xff]
        %v612 = vld [vmem:[%s596 + $0x40] sm:$0xff]
        %v613 = vld [vmem:[%s596 + $0x48] sm:$0xff]
        %v614 = vld [vmem:[%s596 + $0x50] sm:$0xff]
        %v615 = vld [vmem:[%s596 + $0x58] sm:$0xff]
        %v616 = vld [vmem:[%s596 + $0x60] sm:$0xff]
        %v617 = vld [vmem:[%s596 + $0x68] sm:$0xff]
        %v618 = vld [vmem:[%s596 + $0x70] sm:$0xff]
        %v619 = vld [vmem:[%s596 + $0x78] sm:$0xff]
        %v620 = vld [vmem:[%s3] sm:$0xff]
        %v621 = vld [vmem:[%s3 + $0x8] sm:$0xff]
        %v622 = vld [vmem:[%s3 + $0x10] sm:$0xff]
        %v623 = vld [vmem:[%s3 + $0x18] sm:$0xff]
        %v624 = vld [vmem:[%s3 + $0x20] sm:$0xff]
        %v625 = vld [vmem:[%s3 + $0x28] sm:$0xff]
        %v626 = vld [vmem:[%s4] sm:$0x3]
        %v628 = vlaneseq
        %v629 = vshrl.u32 %v628, 7
        %v630 = vsub.s32 0, %v629
        %v631 = vrot.slane %v626, %v630
        %v632 = vlaneseq
        %v633 = vshrl.u32 %v632, 7
        %v634 = vsub.s32 1, %v633
        %v635 = vrot.slane %v626, %v634
        %vm638 = vcmask 195584
        %v640 = vsel %vm638, %v604, 0
        %v643 = vsel %vm638, %v605, 0
        %v646 = vsel %vm638, %v606, 0
        %v649 = vsel %vm638, %v607, 0
        %v652 = vsel %vm638, %v608, 0
        %v655 = vsel %vm638, %v609, 0
        %v658 = vsel %vm638, %v610, 0
        %v661 = vsel %vm638, %v611, 0
        %v664 = vsel %vm638, %v612, 0
        %v667 = vsel %vm638, %v613, 0
        %v670 = vsel %vm638, %v614, 0
        %v673 = vsel %vm638, %v615, 0
        %v676 = vsel %vm638, %v616, 0
        %v679 = vsel %vm638, %v617, 0
        %v682 = vsel %vm638, %v618, 0
        %v685 = vsel %vm638, %v619, 0
        %687 = vmatprep.subr.mxu0 %v621
        %688 = vmatpush1.msra.mxu0 %v620
        %689 = vmatprep.subr.mxu0 %v623
        %690 = vmatpush1.msra.mxu0 %v622
        %691 = vmatprep.subr.mxu0 %v625
        %692 = vmatpush1.msra.mxu0 %v624
        %693 = vmatprep.subr.mxu0 0.0
        %694 = vmatpush1.msra.mxu0 0.0
        %695 = vmatprep.subr.mxu0 0.0
        %696 = vmatpush1.msra.mxu0 0.0
        %697 = vmatprep.subr.mxu0 0.0
        %698 = vmatpush1.msra.mxu0 0.0
        %699 = vmatprep.subr.mxu0 0.0
        %700 = vmatpush1.msra.mxu0 0.0
        %701 = vmatprep.subr.mxu0 0.0
        %702 = vmatpush1.msra.mxu0 0.0
        %703 = vmatprep.subr.mxu0 0.0
        %704 = vmatpush1.msra.mxu0 0.0
        %705 = vmatprep.subr.mxu0 0.0
        %706 = vmatpush1.msra.mxu0 0.0
        %707 = vmatprep.subr.mxu0 0.0
        %708 = vmatpush1.msra.mxu0 0.0
        %709 = vmatprep.subr.mxu0 0.0
        %710 = vmatpush1.msra.mxu0 0.0
        %711 = vmatprep.subr.mxu0 0.0
        %712 = vmatpush1.msra.mxu0 0.0
        %713 = vmatprep.subr.mxu0 0.0
        %714 = vmatpush1.msra.mxu0 0.0
        %715 = vmatprep.subr.mxu0 0.0
        %716 = vmatpush1.msra.mxu0 0.0
        %717 = vmatprep.subr.mxu0 0.0
        %718 = vmatpush1.msra.mxu0 0.0
        %719 = vmatprep.subr.mxu0 0.0
        %720 = vmatpush1.msra.mxu0 0.0
        %721 = vmatprep.subr.mxu0 0.0
        %722 = vmatpush1.msra.mxu0 0.0
        %723 = vmatprep.subr.mxu0 0.0
        %724 = vmatpush1.msra.mxu0 0.0
        %725 = vmatprep.subr.mxu0 0.0
        %726 = vmatpush1.msra.mxu0 0.0
        %727 = vmatprep.subr.mxu0 0.0
        %728 = vmatpush1.msra.mxu0 0.0
        %729 = vmatprep.subr.mxu0 0.0
        %730 = vmatpush1.msra.mxu0 0.0
        %731 = vmatprep.subr.mxu0 0.0
        %732 = vmatpush1.msra.mxu0 0.0
        %733 = vmatprep.subr.mxu0 0.0
        %734 = vmatpush1.msra.mxu0 0.0
        %735 = vmatprep.subr.mxu0 0.0
        %736 = vmatpush1.msra.mxu0 0.0
        %737 = vmatprep.subr.mxu0 0.0
        %738 = vmatpush1.msra.mxu0 0.0
        %739 = vmatprep.subr.mxu0 0.0
        %740 = vmatpush1.msra.mxu0 0.0
        %741 = vmatprep.subr.mxu0 0.0
        %742 = vmatpush1.msra.mxu0 0.0
        %743 = vmatprep.subr.mxu0 0.0
        %744 = vmatpush1.msra.mxu0 0.0
        %745 = vmatprep.subr.mxu0 0.0
        %746 = vmatpush1.msra.mxu0 0.0
        %747 = vmatprep.subr.mxu0 0.0
        %748 = vmatpush1.msra.mxu0 0.0
        %749 = vmatprep.subr.mxu0 0.0
        %750 = vmatpush1.msra.mxu0 0.0
        %751 = vmatprep.mubr.f32.mxu0 0.0
        %752 = vmatmul.mubr.f32.gmra.mrb[0].mxu0 %v640
        %v753 = vpop.f32.mrb[0].mxu0
        %v754 = vadd.f32 %v631, %v753
        %v755 = vpop.f32.mrb[0].mxu0
        %v756 = vadd.f32 %v635, %v755
        %757 = vmatprep.mubr.f32.mxu0 0.0
        %758 = vmatmul.mubr.f32.gmra.mrb[0].mxu0 %v643
        %v759 = vpop.f32.mrb[0].mxu0
        %v760 = vadd.f32 %v631, %v759
        %v761 = vpop.f32.mrb[0].mxu0
        %v762 = vadd.f32 %v635, %v761
        %763 = vmatprep.mubr.f32.mxu0 0.0
        %764 = vmatmul.mubr.f32.gmra.mrb[0].mxu0 %v646
        %v765 = vpop.f32.mrb[0].mxu0
        %v766 = vadd.f32 %v631, %v765
        %v767 = vpop.f32.mrb[0].mxu0
        %v768 = vadd.f32 %v635, %v767
        %769 = vmatprep.mubr.f32.mxu0 0.0
        %770 = vmatmul.mubr.f32.gmra.mrb[0].mxu0 %v649
        %v771 = vpop.f32.mrb[0].mxu0
        %v772 = vadd.f32 %v631, %v771
        %v773 = vpop.f32.mrb[0].mxu0
        %v774 = vadd.f32 %v635, %v773
        %775 = vmatprep.mubr.f32.mxu0 0.0
        %776 = vmatmul.mubr.f32.gmra.mrb[0].mxu0 %v652
        %v777 = vpop.f32.mrb[0].mxu0
        %v778 = vadd.f32 %v631, %v777
        %v779 = vpop.f32.mrb[0].mxu0
        %v780 = vadd.f32 %v635, %v779
        %781 = vmatprep.mubr.f32.mxu0 0.0
        %782 = vmatmul.mubr.f32.gmra.mrb[0].mxu0 %v655
        %v783 = vpop.f32.mrb[0].mxu0
        %v784 = vadd.f32 %v631, %v783
        %v785 = vpop.f32.mrb[0].mxu0
        %v786 = vadd.f32 %v635, %v785
        %787 = vmatprep.mubr.f32.mxu0 0.0
        %788 = vmatmul.mubr.f32.gmra.mrb[0].mxu0 %v658
        %v789 = vpop.f32.mrb[0].mxu0
        %v790 = vadd.f32 %v631, %v789
        %v791 = vpop.f32.mrb[0].mxu0
        %v792 = vadd.f32 %v635, %v791
        %793 = vmatprep.mubr.f32.mxu0 0.0
        %794 = vmatmul.mubr.f32.gmra.mrb[0].mxu0 %v661
        %v795 = vpop.f32.mrb[0].mxu0
        %v796 = vadd.f32 %v631, %v795
        %v797 = vpop.f32.mrb[0].mxu0
        %v798 = vadd.f32 %v635, %v797
        %799 = vmatprep.mubr.f32.mxu0 0.0
        %800 = vmatmul.mubr.f32.gmra.mrb[0].mxu0 %v664
        %v801 = vpop.f32.mrb[0].mxu0
        %v802 = vadd.f32 %v631, %v801
        %v803 = vpop.f32.mrb[0].mxu0
        %v804 = vadd.f32 %v635, %v803
        %805 = vmatprep.mubr.f32.mxu0 0.0
        %806 = vmatmul.mubr.f32.gmra.mrb[0].mxu0 %v667
        %v807 = vpop.f32.mrb[0].mxu0
        %v808 = vadd.f32 %v631, %v807
        %v809 = vpop.f32.mrb[0].mxu0
        %v810 = vadd.f32 %v635, %v809
        %811 = vmatprep.mubr.f32.mxu0 0.0
        %812 = vmatmul.mubr.f32.gmra.mrb[0].mxu0 %v670
        %v813 = vpop.f32.mrb[0].mxu0
        %v814 = vadd.f32 %v631, %v813
        %v815 = vpop.f32.mrb[0].mxu0
        %v816 = vadd.f32 %v635, %v815
        %817 = vmatprep.mubr.f32.mxu0 0.0
        %818 = vmatmul.mubr.f32.gmra.mrb[0].mxu0 %v673
        %v819 = vpop.f32.mrb[0].mxu0
        %v820 = vadd.f32 %v631, %v819
        %v821 = vpop.f32.mrb[0].mxu0
        %v822 = vadd.f32 %v635, %v821
        %823 = vmatprep.mubr.f32.mxu0 0.0
        %824 = vmatmul.mubr.f32.gmra.mrb[0].mxu0 %v676
        %v825 = vpop.f32.mrb[0].mxu0
        %v826 = vadd.f32 %v631, %v825
        %v827 = vpop.f32.mrb[0].mxu0
        %v828 = vadd.f32 %v635, %v827
        %829 = vmatprep.mubr.f32.mxu0 0.0
        %830 = vmatmul.mubr.f32.gmra.mrb[0].mxu0 %v679
        %v831 = vpop.f32.mrb[0].mxu0
        %v832 = vadd.f32 %v631, %v831
        %v833 = vpop.f32.mrb[0].mxu0
        %v834 = vadd.f32 %v635, %v833
        %835 = vmatprep.mubr.f32.mxu0 0.0
        %836 = vmatmul.mubr.f32.gmra.mrb[0].mxu0 %v682
        %v837 = vpop.f32.mrb[0].mxu0
        %v838 = vadd.f32 %v631, %v837
        %v839 = vpop.f32.mrb[0].mxu0
        %v840 = vadd.f32 %v635, %v839
        %841 = vmatprep.mubr.f32.mxu0 0.0
        %842 = vmatmul.mubr.f32.gmra.mrb[0].mxu0 %v685
        %v843 = vpop.f32.mrb[0].mxu0
        %v844 = vadd.f32 %v631, %v843
        %v845 = vpop.f32.mrb[0].mxu0
        %v846 = vadd.f32 %v635, %v845
        %847 = vdwg.mxu0
        %v848 = vld [vmem:[#allocation2] sm:$0xff]
        %v849 = vld [vmem:[#allocation2 + $0x8] sm:$0xff]
        %v850 = vld [vmem:[#allocation2 + $0x10] sm:$0xff]
        %v851 = vld [vmem:[#allocation2 + $0x18] sm:$0xff]
        %v852 = vld [vmem:[#allocation2 + $0x20] sm:$0xff]
        %v853 = vld [vmem:[#allocation2 + $0x28] sm:$0xff]
        %v854 = vld [vmem:[#allocation2 + $0x30] sm:$0xff]
        %v855 = vld [vmem:[#allocation2 + $0x38] sm:$0xff]
        %v856 = vld [vmem:[#allocation2 + $0x40] sm:$0xff]
        %v857 = vld [vmem:[#allocation2 + $0x48] sm:$0xff]
        %v858 = vld [vmem:[#allocation2 + $0x50] sm:$0xff]
        %v859 = vld [vmem:[#allocation2 + $0x58] sm:$0xff]
        %v860 = vld [vmem:[#allocation2 + $0x60] sm:$0xff]
        %v861 = vld [vmem:[#allocation2 + $0x68] sm:$0xff]
        %v862 = vld [vmem:[#allocation2 + $0x70] sm:$0xff]
        %v863 = vld [vmem:[#allocation2 + $0x78] sm:$0xff]
        %v864 = vld [vmem:[#allocation2 + $0x80] sm:$0xff]
        %v865 = vld [vmem:[#allocation2 + $0x88] sm:$0xff]
        %v866 = vld [vmem:[#allocation2 + $0x90] sm:$0xff]
        %v867 = vld [vmem:[#allocation2 + $0x98] sm:$0xff]
        %v868 = vld [vmem:[#allocation2 + $0xa0] sm:$0xff]
        %v869 = vld [vmem:[#allocation2 + $0xa8] sm:$0xff]
        %v870 = vld [vmem:[#allocation2 + $0xb0] sm:$0xff]
        %v871 = vld [vmem:[#allocation2 + $0xb8] sm:$0xff]
        %v872 = vld [vmem:[#allocation2 + $0xc0] sm:$0xff]
        %v873 = vld [vmem:[#allocation2 + $0xc8] sm:$0xff]
        %v874 = vld [vmem:[#allocation2 + $0xd0] sm:$0xff]
        %v875 = vld [vmem:[#allocation2 + $0xd8] sm:$0xff]
        %v876 = vld [vmem:[#allocation2 + $0xe0] sm:$0xff]
        %v877 = vld [vmem:[#allocation2 + $0xe8] sm:$0xff]
        %v878 = vld [vmem:[#allocation2 + $0xf0] sm:$0xff]
        %v879 = vld [vmem:[#allocation2 + $0xf8] sm:$0xff]
        %v880 = vld [vmem:[#allocation2 + $0x100] sm:$0xff]
        %v881 = vld [vmem:[#allocation2 + $0x108] sm:$0xff]
        %v882 = vld [vmem:[#allocation2 + $0x110] sm:$0xff]
        %v883 = vld [vmem:[#allocation2 + $0x118] sm:$0xff]
        %v884 = vld [vmem:[#allocation2 + $0x120] sm:$0xff]
        %v885 = vld [vmem:[#allocation2 + $0x128] sm:$0xff]
        %v886 = vld [vmem:[#allocation2 + $0x130] sm:$0xff]
        %v887 = vld [vmem:[#allocation2 + $0x138] sm:$0xff]
        %v888 = vld [vmem:[#allocation2 + $0x140] sm:$0xff]
        %v889 = vld [vmem:[#allocation2 + $0x148] sm:$0xff]
        %v890 = vld [vmem:[#allocation2 + $0x150] sm:$0xff]
        %v891 = vld [vmem:[#allocation2 + $0x158] sm:$0xff]
        %v892 = vld [vmem:[#allocation2 + $0x160] sm:$0xff]
        %v893 = vld [vmem:[#allocation2 + $0x168] sm:$0xff]
        %v894 = vld [vmem:[#allocation2 + $0x170] sm:$0xff]
        %v895 = vld [vmem:[#allocation2 + $0x178] sm:$0xff]
        %v896 = vld [vmem:[#allocation2 + $0x180] sm:$0xff]
        %v897 = vld [vmem:[#allocation2 + $0x188] sm:$0xff]
        %v898 = vld [vmem:[#allocation2 + $0x190] sm:$0xff]
        %v899 = vld [vmem:[#allocation2 + $0x198] sm:$0xff]
        %v900 = vld [vmem:[#allocation2 + $0x1a0] sm:$0xff]
        %v901 = vld [vmem:[#allocation2 + $0x1a8] sm:$0xff]
        %v902 = vld [vmem:[#allocation2 + $0x1b0] sm:$0xff]
        %v903 = vld [vmem:[#allocation2 + $0x1b8] sm:$0xff]
        %v904 = vld [vmem:[#allocation2 + $0x1c0] sm:$0xff]
        %v905 = vld [vmem:[#allocation2 + $0x1c8] sm:$0xff]
        %v906 = vld [vmem:[#allocation2 + $0x1d0] sm:$0xff]
        %v907 = vld [vmem:[#allocation2 + $0x1d8] sm:$0xff]
        %v908 = vld [vmem:[#allocation2 + $0x1e0] sm:$0xff]
        %v909 = vld [vmem:[#allocation2 + $0x1e8] sm:$0xff]
        %v910 = vld [vmem:[#allocation2 + $0x1f0] sm:$0xff]
        %v911 = vld [vmem:[#allocation2 + $0x1f8] sm:$0xff]
        %v912 = vld [vmem:[%s6] sm:$0x3]
        %v914 = vlaneseq
        %v915 = vshrl.u32 %v914, 7
        %v916 = vsub.s32 0, %v915
        %v917 = vrot.slane %v912, %v916
        %v918 = vlaneseq
        %v919 = vshrl.u32 %v918, 7
        %v920 = vsub.s32 1, %v919
        %v921 = vrot.slane %v912, %v920
        %924 = vmatprep.subr.mxu0 %v849
        %925 = vmatpush1.msra.mxu0 %v848
        %926 = vmatprep.subr.mxu0 %v851
        %927 = vmatpush1.msra.mxu0 %v850
        %928 = vmatprep.subr.mxu0 %v853
        %929 = vmatpush1.msra.mxu0 %v852
        %930 = vmatprep.subr.mxu0 %v855
        %931 = vmatpush1.msra.mxu0 %v854
        %932 = vmatprep.subr.mxu0 %v857
        %933 = vmatpush1.msra.mxu0 %v856
        %934 = vmatprep.subr.mxu0 %v859
        %935 = vmatpush1.msra.mxu0 %v858
        %936 = vmatprep.subr.mxu0 %v861
        %937 = vmatpush1.msra.mxu0 %v860
        %938 = vmatprep.subr.mxu0 %v863
        %939 = vmatpush1.msra.mxu0 %v862
        %940 = vmatprep.subr.mxu0 %v865
        %941 = vmatpush1.msra.mxu0 %v864
        %942 = vmatprep.subr.mxu0 %v867
        %943 = vmatpush1.msra.mxu0 %v866
        %944 = vmatprep.subr.mxu0 %v869
        %945 = vmatpush1.msra.mxu0 %v868
        %946 = vmatprep.subr.mxu0 %v871
        %947 = vmatpush1.msra.mxu0 %v870
        %948 = vmatprep.subr.mxu0 %v873
        %949 = vmatpush1.msra.mxu0 %v872
        %950 = vmatprep.subr.mxu0 %v875
        %951 = vmatpush1.msra.mxu0 %v874
        %952 = vmatprep.subr.mxu0 %v877
        %953 = vmatpush1.msra.mxu0 %v876
        %954 = vmatprep.subr.mxu0 %v879
        %955 = vmatpush1.msra.mxu0 %v878
        %956 = vmatprep.subr.mxu0 %v881
        %957 = vmatpush1.msra.mxu0 %v880
        %958 = vmatprep.subr.mxu0 %v883
        %959 = vmatpush1.msra.mxu0 %v882
        %960 = vmatprep.subr.mxu0 %v885
        %961 = vmatpush1.msra.mxu0 %v884
        %962 = vmatprep.subr.mxu0 %v887
        %963 = vmatpush1.msra.mxu0 %v886
        %964 = vmatprep.subr.mxu0 %v889
        %965 = vmatpush1.msra.mxu0 %v888
        %966 = vmatprep.subr.mxu0 %v891
        %967 = vmatpush1.msra.mxu0 %v890
        %968 = vmatprep.subr.mxu0 %v893
        %969 = vmatpush1.msra.mxu0 %v892
        %970 = vmatprep.subr.mxu0 %v895
        %971 = vmatpush1.msra.mxu0 %v894
        %972 = vmatprep.subr.mxu0 %v897
        %973 = vmatpush1.msra.mxu0 %v896
        %974 = vmatprep.subr.mxu0 %v899
        %975 = vmatpush1.msra.mxu0 %v898
        %976 = vmatprep.subr.mxu0 %v901
        %977 = vmatpush1.msra.mxu0 %v900
        %978 = vmatprep.subr.mxu0 %v903
        %979 = vmatpush1.msra.mxu0 %v902
        %980 = vmatprep.subr.mxu0 %v905
        %981 = vmatpush1.msra.mxu0 %v904
        %982 = vmatprep.subr.mxu0 %v907
        %983 = vmatpush1.msra.mxu0 %v906
        %984 = vmatprep.subr.mxu0 %v909
        %985 = vmatpush1.msra.mxu0 %v908
        %986 = vmatprep.subr.mxu0 %v911
        %987 = vmatpush1.msra.mxu0 %v910
        %988 = vmatprep.mubr.f32.mxu0 %v756
        %989 = vmatmul.mubr.f32.gmra.mrb[0].mxu0 %v754
        %v990 = vpop.f32.mrb[0].mxu0
        %v991 = vadd.f32 %v917, %v990
        %v992 = vpop.f32.mrb[0].mxu0
        %v993 = vadd.f32 %v921, %v992
        %994 = vmatprep.mubr.f32.mxu0 %v762
        %995 = vmatmul.mubr.f32.gmra.mrb[0].mxu0 %v760
        %v996 = vpop.f32.mrb[0].mxu0
        %v997 = vadd.f32 %v917, %v996
        %v998 = vpop.f32.mrb[0].mxu0
        %v999 = vadd.f32 %v921, %v998
        %1000 = vmatprep.mubr.f32.mxu0 %v768
        %1001 = vmatmul.mubr.f32.gmra.mrb[0].mxu0 %v766
        %v1002 = vpop.f32.mrb[0].mxu0
        %v1003 = vadd.f32 %v917, %v1002
        %v1004 = vpop.f32.mrb[0].mxu0
        %v1005 = vadd.f32 %v921, %v1004
        %1006 = vmatprep.mubr.f32.mxu0 %v774
        %1007 = vmatmul.mubr.f32.gmra.mrb[0].mxu0 %v772
        %v1008 = vpop.f32.mrb[0].mxu0
        %v1009 = vadd.f32 %v917, %v1008
        %v1010 = vpop.f32.mrb[0].mxu0
        %v1011 = vadd.f32 %v921, %v1010
        %1012 = vmatprep.mubr.f32.mxu0 %v780
        %1013 = vmatmul.mubr.f32.gmra.mrb[0].mxu0 %v778
        %v1014 = vpop.f32.mrb[0].mxu0
        %v1015 = vadd.f32 %v917, %v1014
        %v1016 = vpop.f32.mrb[0].mxu0
        %v1017 = vadd.f32 %v921, %v1016
        %1018 = vmatprep.mubr.f32.mxu0 %v786
        %1019 = vmatmul.mubr.f32.gmra.mrb[0].mxu0 %v784
        %v1020 = vpop.f32.mrb[0].mxu0
        %v1021 = vadd.f32 %v917, %v1020
        %v1022 = vpop.f32.mrb[0].mxu0
        %v1023 = vadd.f32 %v921, %v1022
        %1024 = vmatprep.mubr.f32.mxu0 %v792
        %1025 = vmatmul.mubr.f32.gmra.mrb[0].mxu0 %v790
        %v1026 = vpop.f32.mrb[0].mxu0
        %v1027 = vadd.f32 %v917, %v1026
        %v1028 = vpop.f32.mrb[0].mxu0
        %v1029 = vadd.f32 %v921, %v1028
        %1030 = vmatprep.mubr.f32.mxu0 %v798
        %1031 = vmatmul.mubr.f32.gmra.mrb[0].mxu0 %v796
        %v1032 = vpop.f32.mrb[0].mxu0
        %v1033 = vadd.f32 %v917, %v1032
        %v1034 = vpop.f32.mrb[0].mxu0
        %v1035 = vadd.f32 %v921, %v1034
        %1036 = vmatprep.mubr.f32.mxu0 %v804
        %1037 = vmatmul.mubr.f32.gmra.mrb[0].mxu0 %v802
        %v1038 = vpop.f32.mrb[0].mxu0
        %v1039 = vadd.f32 %v917, %v1038
        %v1040 = vpop.f32.mrb[0].mxu0
        %v1041 = vadd.f32 %v921, %v1040
        %1042 = vmatprep.mubr.f32.mxu0 %v810
        %1043 = vmatmul.mubr.f32.gmra.mrb[0].mxu0 %v808
        %v1044 = vpop.f32.mrb[0].mxu0
        %v1045 = vadd.f32 %v917, %v1044
        %v1046 = vpop.f32.mrb[0].mxu0
        %v1047 = vadd.f32 %v921, %v1046
        %1048 = vmatprep.mubr.f32.mxu0 %v816
        %1049 = vmatmul.mubr.f32.gmra.mrb[0].mxu0 %v814
        %v1050 = vpop.f32.mrb[0].mxu0
        %v1051 = vadd.f32 %v917, %v1050
        %v1052 = vpop.f32.mrb[0].mxu0
        %v1053 = vadd.f32 %v921, %v1052
        %1054 = vmatprep.mubr.f32.mxu0 %v822
        %1055 = vmatmul.mubr.f32.gmra.mrb[0].mxu0 %v820
        %v1056 = vpop.f32.mrb[0].mxu0
        %v1057 = vadd.f32 %v917, %v1056
        %v1058 = vpop.f32.mrb[0].mxu0
        %v1059 = vadd.f32 %v921, %v1058
        %1060 = vmatprep.mubr.f32.mxu0 %v828
        %1061 = vmatmul.mubr.f32.gmra.mrb[0].mxu0 %v826
        %v1062 = vpop.f32.mrb[0].mxu0
        %v1063 = vadd.f32 %v917, %v1062
        %v1064 = vpop.f32.mrb[0].mxu0
        %v1065 = vadd.f32 %v921, %v1064
        %1066 = vmatprep.mubr.f32.mxu0 %v834
        %1067 = vmatmul.mubr.f32.gmra.mrb[0].mxu0 %v832
        %v1068 = vpop.f32.mrb[0].mxu0
        %v1069 = vadd.f32 %v917, %v1068
        %v1070 = vpop.f32.mrb[0].mxu0
        %v1071 = vadd.f32 %v921, %v1070
        %1072 = vmatprep.mubr.f32.mxu0 %v840
        %1073 = vmatmul.mubr.f32.gmra.mrb[0].mxu0 %v838
        %v1074 = vpop.f32.mrb[0].mxu0
        %v1075 = vadd.f32 %v917, %v1074
        %v1076 = vpop.f32.mrb[0].mxu0
        %v1077 = vadd.f32 %v921, %v1076
        %1078 = vmatprep.mubr.f32.mxu0 %v846
        %1079 = vmatmul.mubr.f32.gmra.mrb[0].mxu0 %v844
        %v1080 = vpop.f32.mrb[0].mxu0
        %v1081 = vadd.f32 %v917, %v1080
        %v1082 = vpop.f32.mrb[0].mxu0
        %v1083 = vadd.f32 %v921, %v1082
        %1084 = vdwg.mxu0
        %v1085 = vmax.f32 %v991, 0.0
        %v1086 = vmax.f32 %v993, 0.0
        %v1087 = vmax.f32 %v997, 0.0
        %v1088 = vmax.f32 %v999, 0.0
        %v1089 = vmax.f32 %v1003, 0.0
        %v1090 = vmax.f32 %v1005, 0.0
        %v1091 = vmax.f32 %v1009, 0.0
        %v1092 = vmax.f32 %v1011, 0.0
        %v1093 = vmax.f32 %v1015, 0.0
        %v1094 = vmax.f32 %v1017, 0.0
        %v1095 = vmax.f32 %v1021, 0.0
        %v1096 = vmax.f32 %v1023, 0.0
        %v1097 = vmax.f32 %v1027, 0.0
        %v1098 = vmax.f32 %v1029, 0.0
        %v1099 = vmax.f32 %v1033, 0.0
        %v1100 = vmax.f32 %v1035, 0.0
        %v1101 = vmax.f32 %v1039, 0.0
        %v1102 = vmax.f32 %v1041, 0.0
        %v1103 = vmax.f32 %v1045, 0.0
        %v1104 = vmax.f32 %v1047, 0.0
        %v1105 = vmax.f32 %v1051, 0.0
        %v1106 = vmax.f32 %v1053, 0.0
        %v1107 = vmax.f32 %v1057, 0.0
        %v1108 = vmax.f32 %v1059, 0.0
        %v1109 = vmax.f32 %v1063, 0.0
        %v1110 = vmax.f32 %v1065, 0.0
        %v1111 = vmax.f32 %v1069, 0.0
        %v1112 = vmax.f32 %v1071, 0.0
        %v1113 = vmax.f32 %v1075, 0.0
        %v1114 = vmax.f32 %v1077, 0.0
        %v1115 = vmax.f32 %v1081, 0.0
        %v1116 = vmax.f32 %v1083, 0.0
        %v1117 = vld [vmem:[%s583] sm:$0xff]
        %v1118 = vld [vmem:[%s583 + $0x8] sm:$0xff]
        %v1119 = vld [vmem:[%s583 + $0x10] sm:$0xff]
        %v1120 = vld [vmem:[%s583 + $0x18] sm:$0xff]
        %v1121 = vld [vmem:[%s583 + $0x20] sm:$0xff]
        %v1122 = vld [vmem:[%s583 + $0x28] sm:$0xff]
        %v1123 = vld [vmem:[%s583 + $0x30] sm:$0xff]
        %v1124 = vld [vmem:[%s583 + $0x38] sm:$0xff]
        %v1125 = vld [vmem:[%s583 + $0x40] sm:$0xff]
        %v1126 = vld [vmem:[%s583 + $0x48] sm:$0xff]
        %v1127 = vld [vmem:[%s583 + $0x50] sm:$0xff]
        %v1128 = vld [vmem:[%s583 + $0x58] sm:$0xff]
        %v1129 = vld [vmem:[%s583 + $0x60] sm:$0xff]
        %v1130 = vld [vmem:[%s583 + $0x68] sm:$0xff]
        %v1131 = vld [vmem:[%s583 + $0x70] sm:$0xff]
        %v1132 = vld [vmem:[%s583 + $0x78] sm:$0xff]
        %v1133 = vld [vmem:[%s9] sm:$0xff]
        %v1134 = vld [vmem:[%s9 + $0x8] sm:$0xff]
        %v1135 = vld [vmem:[%s9 + $0x10] sm:$0xff]
        %v1136 = vld [vmem:[%s9 + $0x18] sm:$0xff]
        %v1137 = vld [vmem:[%s9 + $0x20] sm:$0xff]
        %v1138 = vld [vmem:[%s9 + $0x28] sm:$0xff]
        %v1139 = vld [vmem:[%s9 + $0x30] sm:$0xff]
        %v1140 = vld [vmem:[%s9 + $0x38] sm:$0xff]
        %v1141 = vld [vmem:[%s10] sm:$0x3]
        %v1143 = vlaneseq
        %v1144 = vshrl.u32 %v1143, 7
        %v1145 = vsub.s32 0, %v1144
        %v1146 = vrot.slane %v1141, %v1145
        %v1147 = vlaneseq
        %v1148 = vshrl.u32 %v1147, 7
        %v1149 = vsub.s32 1, %v1148
        %v1150 = vrot.slane %v1141, %v1149
        %vm1153 = vcmask 261120
        %v1155 = vsel %vm1153, %v1117, 0
        %v1158 = vsel %vm1153, %v1118, 0
        %v1161 = vsel %vm1153, %v1119, 0
        %v1164 = vsel %vm1153, %v1120, 0
        %v1167 = vsel %vm1153, %v1121, 0
        %v1170 = vsel %vm1153, %v1122, 0
        %v1173 = vsel %vm1153, %v1123, 0
        %v1176 = vsel %vm1153, %v1124, 0
        %v1179 = vsel %vm1153, %v1125, 0
        %v1182 = vsel %vm1153, %v1126, 0
        %v1185 = vsel %vm1153, %v1127, 0
        %v1188 = vsel %vm1153, %v1128, 0
        %v1191 = vsel %vm1153, %v1129, 0
        %v1194 = vsel %vm1153, %v1130, 0
        %v1197 = vsel %vm1153, %v1131, 0
        %v1200 = vsel %vm1153, %v1132, 0
        %1202 = vmatprep.subr.mxu0 %v1134
        %1203 = vmatpush1.msra.mxu0 %v1133
        %1204 = vmatprep.subr.mxu0 %v1136
        %1205 = vmatpush1.msra.mxu0 %v1135
        %1206 = vmatprep.subr.mxu0 %v1138
        %1207 = vmatpush1.msra.mxu0 %v1137
        %1208 = vmatprep.subr.mxu0 %v1140
        %1209 = vmatpush1.msra.mxu0 %v1139
        %1210 = vmatprep.subr.mxu0 0.0
        %1211 = vmatpush1.msra.mxu0 0.0
        %1212 = vmatprep.subr.mxu0 0.0
        %1213 = vmatpush1.msra.mxu0 0.0
        %1214 = vmatprep.subr.mxu0 0.0
        %1215 = vmatpush1.msra.mxu0 0.0
        %1216 = vmatprep.subr.mxu0 0.0
        %1217 = vmatpush1.msra.mxu0 0.0
        %1218 = vmatprep.subr.mxu0 0.0
        %1219 = vmatpush1.msra.mxu0 0.0
        %1220 = vmatprep.subr.mxu0 0.0
        %1221 = vmatpush1.msra.mxu0 0.0
        %1222 = vmatprep.subr.mxu0 0.0
        %1223 = vmatpush1.msra.mxu0 0.0
        %1224 = vmatprep.subr.mxu0 0.0
        %1225 = vmatpush1.msra.mxu0 0.0
        %1226 = vmatprep.subr.mxu0 0.0
        %1227 = vmatpush1.msra.mxu0 0.0
        %1228 = vmatprep.subr.mxu0 0.0
        %1229 = vmatpush1.msra.mxu0 0.0
        %1230 = vmatprep.subr.mxu0 0.0
        %1231 = vmatpush1.msra.mxu0 0.0
        %1232 = vmatprep.subr.mxu0 0.0
        %1233 = vmatpush1.msra.mxu0 0.0
        %1234 = vmatprep.subr.mxu0 0.0
        %1235 = vmatpush1.msra.mxu0 0.0
        %1236 = vmatprep.subr.mxu0 0.0
        %1237 = vmatpush1.msra.mxu0 0.0
        %1238 = vmatprep.subr.mxu0 0.0
        %1239 = vmatpush1.msra.mxu0 0.0
        %1240 = vmatprep.subr.mxu0 0.0
        %1241 = vmatpush1.msra.mxu0 0.0
        %1242 = vmatprep.subr.mxu0 0.0
        %1243 = vmatpush1.msra.mxu0 0.0
        %1244 = vmatprep.subr.mxu0 0.0
        %1245 = vmatpush1.msra.mxu0 0.0
        %1246 = vmatprep.subr.mxu0 0.0
        %1247 = vmatpush1.msra.mxu0 0.0
        %1248 = vmatprep.subr.mxu0 0.0
        %1249 = vmatpush1.msra.mxu0 0.0
        %1250 = vmatprep.subr.mxu0 0.0
        %1251 = vmatpush1.msra.mxu0 0.0
        %1252 = vmatprep.subr.mxu0 0.0
        %1253 = vmatpush1.msra.mxu0 0.0
        %1254 = vmatprep.subr.mxu0 0.0
        %1255 = vmatpush1.msra.mxu0 0.0
        %1256 = vmatprep.subr.mxu0 0.0
        %1257 = vmatpush1.msra.mxu0 0.0
        %1258 = vmatprep.subr.mxu0 0.0
        %1259 = vmatpush1.msra.mxu0 0.0
        %1260 = vmatprep.subr.mxu0 0.0
        %1261 = vmatpush1.msra.mxu0 0.0
        %1262 = vmatprep.subr.mxu0 0.0
        %1263 = vmatpush1.msra.mxu0 0.0
        %1264 = vmatprep.subr.mxu0 0.0
        %1265 = vmatpush1.msra.mxu0 0.0
        %1266 = vmatprep.mubr.f32.mxu0 0.0
        %1267 = vmatmul.mubr.f32.gmra.mrb[0].mxu0 %v1155
        %v1268 = vpop.f32.mrb[0].mxu0
        %v1269 = vadd.f32 %v1146, %v1268
        %v1270 = vpop.f32.mrb[0].mxu0
        %v1271 = vadd.f32 %v1150, %v1270
        %1272 = vmatprep.mubr.f32.mxu0 0.0
        %1273 = vmatmul.mubr.f32.gmra.mrb[0].mxu0 %v1158
        %v1274 = vpop.f32.mrb[0].mxu0
        %v1275 = vadd.f32 %v1146, %v1274
        %v1276 = vpop.f32.mrb[0].mxu0
        %v1277 = vadd.f32 %v1150, %v1276
        %1278 = vmatprep.mubr.f32.mxu0 0.0
        %1279 = vmatmul.mubr.f32.gmra.mrb[0].mxu0 %v1161
        %v1280 = vpop.f32.mrb[0].mxu0
        %v1281 = vadd.f32 %v1146, %v1280
        %v1282 = vpop.f32.mrb[0].mxu0
        %v1283 = vadd.f32 %v1150, %v1282
        %1284 = vmatprep.mubr.f32.mxu0 0.0
        %1285 = vmatmul.mubr.f32.gmra.mrb[0].mxu0 %v1164
        %v1286 = vpop.f32.mrb[0].mxu0
        %v1287 = vadd.f32 %v1146, %v1286
        %v1288 = vpop.f32.mrb[0].mxu0
        %v1289 = vadd.f32 %v1150, %v1288
        %1290 = vmatprep.mubr.f32.mxu0 0.0
        %1291 = vmatmul.mubr.f32.gmra.mrb[0].mxu0 %v1167
        %v1292 = vpop.f32.mrb[0].mxu0
        %v1293 = vadd.f32 %v1146, %v1292
        %v1294 = vpop.f32.mrb[0].mxu0
        %v1295 = vadd.f32 %v1150, %v1294
        %1296 = vmatprep.mubr.f32.mxu0 0.0
        %1297 = vmatmul.mubr.f32.gmra.mrb[0].mxu0 %v1170
        %v1298 = vpop.f32.mrb[0].mxu0
        %v1299 = vadd.f32 %v1146, %v1298
        %v1300 = vpop.f32.mrb[0].mxu0
        %v1301 = vadd.f32 %v1150, %v1300
        %1302 = vmatprep.mubr.f32.mxu0 0.0
        %1303 = vmatmul.mubr.f32.gmra.mrb[0].mxu0 %v1173
        %v1304 = vpop.f32.mrb[0].mxu0
        %v1305 = vadd.f32 %v1146, %v1304
        %v1306 = vpop.f32.mrb[0].mxu0
        %v1307 = vadd.f32 %v1150, %v1306
        %1308 = vmatprep.mubr.f32.mxu0 0.0
        %1309 = vmatmul.mubr.f32.gmra.mrb[0].mxu0 %v1176
        %v1310 = vpop.f32.mrb[0].mxu0
        %v1311 = vadd.f32 %v1146, %v1310
        %v1312 = vpop.f32.mrb[0].mxu0
        %v1313 = vadd.f32 %v1150, %v1312
        %1314 = vmatprep.mubr.f32.mxu0 0.0
        %1315 = vmatmul.mubr.f32.gmra.mrb[0].mxu0 %v1179
        %v1316 = vpop.f32.mrb[0].mxu0
        %v1317 = vadd.f32 %v1146, %v1316
        %v1318 = vpop.f32.mrb[0].mxu0
        %v1319 = vadd.f32 %v1150, %v1318
        %1320 = vmatprep.mubr.f32.mxu0 0.0
        %1321 = vmatmul.mubr.f32.gmra.mrb[0].mxu0 %v1182
        %v1322 = vpop.f32.mrb[0].mxu0
        %v1323 = vadd.f32 %v1146, %v1322
        %v1324 = vpop.f32.mrb[0].mxu0
        %v1325 = vadd.f32 %v1150, %v1324
        %1326 = vmatprep.mubr.f32.mxu0 0.0
        %1327 = vmatmul.mubr.f32.gmra.mrb[0].mxu0 %v1185
        %v1328 = vpop.f32.mrb[0].mxu0
        %v1329 = vadd.f32 %v1146, %v1328
        %v1330 = vpop.f32.mrb[0].mxu0
        %v1331 = vadd.f32 %v1150, %v1330
        %1332 = vmatprep.mubr.f32.mxu0 0.0
        %1333 = vmatmul.mubr.f32.gmra.mrb[0].mxu0 %v1188
        %v1334 = vpop.f32.mrb[0].mxu0
        %v1335 = vadd.f32 %v1146, %v1334
        %v1336 = vpop.f32.mrb[0].mxu0
        %v1337 = vadd.f32 %v1150, %v1336
        %1338 = vmatprep.mubr.f32.mxu0 0.0
        %1339 = vmatmul.mubr.f32.gmra.mrb[0].mxu0 %v1191
        %v1340 = vpop.f32.mrb[0].mxu0
        %v1341 = vadd.f32 %v1146, %v1340
        %v1342 = vpop.f32.mrb[0].mxu0
        %v1343 = vadd.f32 %v1150, %v1342
        %1344 = vmatprep.mubr.f32.mxu0 0.0
        %1345 = vmatmul.mubr.f32.gmra.mrb[0].mxu0 %v1194
        %v1346 = vpop.f32.mrb[0].mxu0
        %v1347 = vadd.f32 %v1146, %v1346
        %v1348 = vpop.f32.mrb[0].mxu0
        %v1349 = vadd.f32 %v1150, %v1348
        %1350 = vmatprep.mubr.f32.mxu0 0.0
        %1351 = vmatmul.mubr.f32.gmra.mrb[0].mxu0 %v1197
        %v1352 = vpop.f32.mrb[0].mxu0
        %v1353 = vadd.f32 %v1146, %v1352
        %v1354 = vpop.f32.mrb[0].mxu0
        %v1355 = vadd.f32 %v1150, %v1354
        %1356 = vmatprep.mubr.f32.mxu0 0.0
        %1357 = vmatmul.mubr.f32.gmra.mrb[0].mxu0 %v1200
        %v1358 = vpop.f32.mrb[0].mxu0
        %v1359 = vadd.f32 %v1146, %v1358
        %v1360 = vpop.f32.mrb[0].mxu0
        %v1361 = vadd.f32 %v1150, %v1360
        %1362 = vdwg.mxu0
        %v1363 = vld [vmem:[%s590] sm:$0xff]
        %v1364 = vld [vmem:[%s590 + $0x8] sm:$0xff]
        %v1365 = vld [vmem:[%s590 + $0x10] sm:$0xff]
        %v1366 = vld [vmem:[%s590 + $0x18] sm:$0xff]
        %v1367 = vld [vmem:[%s590 + $0x20] sm:$0xff]
        %v1368 = vld [vmem:[%s590 + $0x28] sm:$0xff]
        %v1369 = vld [vmem:[%s590 + $0x30] sm:$0xff]
        %v1370 = vld [vmem:[%s590 + $0x38] sm:$0xff]
        %v1371 = vld [vmem:[%s590 + $0x40] sm:$0xff]
        %v1372 = vld [vmem:[%s590 + $0x48] sm:$0xff]
        %v1373 = vld [vmem:[%s590 + $0x50] sm:$0xff]
        %v1374 = vld [vmem:[%s590 + $0x58] sm:$0xff]
        %v1375 = vld [vmem:[%s590 + $0x60] sm:$0xff]
        %v1376 = vld [vmem:[%s590 + $0x68] sm:$0xff]
        %v1377 = vld [vmem:[%s590 + $0x70] sm:$0xff]
        %v1378 = vld [vmem:[%s590 + $0x78] sm:$0xff]
        %v1379 = vld [vmem:[%s590 + $0x80] sm:$0xff]
        %v1380 = vld [vmem:[%s590 + $0x88] sm:$0xff]
        %v1381 = vld [vmem:[%s590 + $0x90] sm:$0xff]
        %v1382 = vld [vmem:[%s590 + $0x98] sm:$0xff]
        %v1383 = vld [vmem:[%s590 + $0xa0] sm:$0xff]
        %v1384 = vld [vmem:[%s590 + $0xa8] sm:$0xff]
        %v1385 = vld [vmem:[%s590 + $0xb0] sm:$0xff]
        %v1386 = vld [vmem:[%s590 + $0xb8] sm:$0xff]
        %v1387 = vld [vmem:[%s590 + $0xc0] sm:$0xff]
        %v1388 = vld [vmem:[%s590 + $0xc8] sm:$0xff]
        %v1389 = vld [vmem:[%s590 + $0xd0] sm:$0xff]
        %v1390 = vld [vmem:[%s590 + $0xd8] sm:$0xff]
        %v1391 = vld [vmem:[%s590 + $0xe0] sm:$0xff]
        %v1392 = vld [vmem:[%s590 + $0xe8] sm:$0xff]
        %v1393 = vld [vmem:[%s590 + $0xf0] sm:$0xff]
        %v1394 = vld [vmem:[%s590 + $0xf8] sm:$0xff]
        %v1395 = vld [vmem:[#allocation4] sm:$0xff]
        %v1396 = vld [vmem:[#allocation4 + $0x8] sm:$0xff]
        %v1397 = vld [vmem:[#allocation4 + $0x10] sm:$0xff]
        %v1398 = vld [vmem:[#allocation4 + $0x18] sm:$0xff]
        %v1399 = vld [vmem:[#allocation4 + $0x20] sm:$0xff]
        %v1400 = vld [vmem:[#allocation4 + $0x28] sm:$0xff]
        %v1401 = vld [vmem:[#allocation4 + $0x30] sm:$0xff]
        %v1402 = vld [vmem:[#allocation4 + $0x38] sm:$0xff]
        %v1403 = vld [vmem:[#allocation4 + $0x40] sm:$0xff]
        %v1404 = vld [vmem:[#allocation4 + $0x48] sm:$0xff]
        %v1405 = vld [vmem:[#allocation4 + $0x50] sm:$0xff]
        %v1406 = vld [vmem:[#allocation4 + $0x58] sm:$0xff]
        %v1407 = vld [vmem:[#allocation4 + $0x60] sm:$0xff]
        %v1408 = vld [vmem:[#allocation4 + $0x68] sm:$0xff]
        %v1409 = vld [vmem:[#allocation4 + $0x70] sm:$0xff]
        %v1410 = vld [vmem:[#allocation4 + $0x78] sm:$0xff]
        %v1411 = vld [vmem:[#allocation4 + $0x80] sm:$0xff]
        %v1412 = vld [vmem:[#allocation4 + $0x88] sm:$0xff]
        %v1413 = vld [vmem:[#allocation4 + $0x90] sm:$0xff]
        %v1414 = vld [vmem:[#allocation4 + $0x98] sm:$0xff]
        %v1415 = vld [vmem:[#allocation4 + $0xa0] sm:$0xff]
        %v1416 = vld [vmem:[#allocation4 + $0xa8] sm:$0xff]
        %v1417 = vld [vmem:[#allocation4 + $0xb0] sm:$0xff]
        %v1418 = vld [vmem:[#allocation4 + $0xb8] sm:$0xff]
        %v1419 = vld [vmem:[#allocation4 + $0xc0] sm:$0xff]
        %v1420 = vld [vmem:[#allocation4 + $0xc8] sm:$0xff]
        %v1421 = vld [vmem:[#allocation4 + $0xd0] sm:$0xff]
        %v1422 = vld [vmem:[#allocation4 + $0xd8] sm:$0xff]
        %v1423 = vld [vmem:[#allocation4 + $0xe0] sm:$0xff]
        %v1424 = vld [vmem:[#allocation4 + $0xe8] sm:$0xff]
        %v1425 = vld [vmem:[#allocation4 + $0xf0] sm:$0xff]
        %v1426 = vld [vmem:[#allocation4 + $0xf8] sm:$0xff]
        %v1427 = vld [vmem:[#allocation4 + $0x100] sm:$0xff]
        %v1428 = vld [vmem:[#allocation4 + $0x108] sm:$0xff]
        %v1429 = vld [vmem:[#allocation4 + $0x110] sm:$0xff]
        %v1430 = vld [vmem:[#allocation4 + $0x118] sm:$0xff]
        %v1431 = vld [vmem:[#allocation4 + $0x120] sm:$0xff]
        %v1432 = vld [vmem:[#allocation4 + $0x128] sm:$0xff]
        %v1433 = vld [vmem:[#allocation4 + $0x130] sm:$0xff]
        %v1434 = vld [vmem:[#allocation4 + $0x138] sm:$0xff]
        %v1435 = vld [vmem:[#allocation4 + $0x140] sm:$0xff]
        %v1436 = vld [vmem:[#allocation4 + $0x148] sm:$0xff]
        %v1437 = vld [vmem:[#allocation4 + $0x150] sm:$0xff]
        %v1438 = vld [vmem:[#allocation4 + $0x158] sm:$0xff]
        %v1439 = vld [vmem:[#allocation4 + $0x160] sm:$0xff]
        %v1440 = vld [vmem:[#allocation4 + $0x168] sm:$0xff]
        %v1441 = vld [vmem:[#allocation4 + $0x170] sm:$0xff]
        %v1442 = vld [vmem:[#allocation4 + $0x178] sm:$0xff]
        %v1443 = vld [vmem:[#allocation4 + $0x180] sm:$0xff]
        %v1444 = vld [vmem:[#allocation4 + $0x188] sm:$0xff]
        %v1445 = vld [vmem:[#allocation4 + $0x190] sm:$0xff]
        %v1446 = vld [vmem:[#allocation4 + $0x198] sm:$0xff]
        %v1447 = vld [vmem:[#allocation4 + $0x1a0] sm:$0xff]
        %v1448 = vld [vmem:[#allocation4 + $0x1a8] sm:$0xff]
        %v1449 = vld [vmem:[#allocation4 + $0x1b0] sm:$0xff]
        %v1450 = vld [vmem:[#allocation4 + $0x1b8] sm:$0xff]
        %v1451 = vld [vmem:[#allocation4 + $0x1c0] sm:$0xff]
        %v1452 = vld [vmem:[#allocation4 + $0x1c8] sm:$0xff]
        %v1453 = vld [vmem:[#allocation4 + $0x1d0] sm:$0xff]
        %v1454 = vld [vmem:[#allocation4 + $0x1d8] sm:$0xff]
        %v1455 = vld [vmem:[#allocation4 + $0x1e0] sm:$0xff]
        %v1456 = vld [vmem:[#allocation4 + $0x1e8] sm:$0xff]
        %v1457 = vld [vmem:[#allocation4 + $0x1f0] sm:$0xff]
        %v1458 = vld [vmem:[#allocation4 + $0x1f8] sm:$0xff]
        %v1459 = vld [vmem:[#allocation4 + $0x200] sm:$0xff]
        %v1460 = vld [vmem:[#allocation4 + $0x208] sm:$0xff]
        %v1461 = vld [vmem:[#allocation4 + $0x210] sm:$0xff]
        %v1462 = vld [vmem:[#allocation4 + $0x218] sm:$0xff]
        %v1463 = vld [vmem:[#allocation4 + $0x220] sm:$0xff]
        %v1464 = vld [vmem:[#allocation4 + $0x228] sm:$0xff]
        %v1465 = vld [vmem:[#allocation4 + $0x230] sm:$0xff]
        %v1466 = vld [vmem:[#allocation4 + $0x238] sm:$0xff]
        %v1467 = vld [vmem:[#allocation4 + $0x240] sm:$0xff]
        %v1468 = vld [vmem:[#allocation4 + $0x248] sm:$0xff]
        %v1469 = vld [vmem:[#allocation4 + $0x250] sm:$0xff]
        %v1470 = vld [vmem:[#allocation4 + $0x258] sm:$0xff]
        %v1471 = vld [vmem:[#allocation4 + $0x260] sm:$0xff]
        %v1472 = vld [vmem:[#allocation4 + $0x268] sm:$0xff]
        %v1473 = vld [vmem:[#allocation4 + $0x270] sm:$0xff]
        %v1474 = vld [vmem:[#allocation4 + $0x278] sm:$0xff]
        %v1475 = vld [vmem:[#allocation4 + $0x280] sm:$0xff]
        %v1476 = vld [vmem:[#allocation4 + $0x288] sm:$0xff]
        %v1477 = vld [vmem:[#allocation4 + $0x290] sm:$0xff]
        %v1478 = vld [vmem:[#allocation4 + $0x298] sm:$0xff]
        %v1479 = vld [vmem:[#allocation4 + $0x2a0] sm:$0xff]
        %v1480 = vld [vmem:[#allocation4 + $0x2a8] sm:$0xff]
        %v1481 = vld [vmem:[#allocation4 + $0x2b0] sm:$0xff]
        %v1482 = vld [vmem:[#allocation4 + $0x2b8] sm:$0xff]
        %v1483 = vld [vmem:[#allocation4 + $0x2c0] sm:$0xff]
        %v1484 = vld [vmem:[#allocation4 + $0x2c8] sm:$0xff]
        %v1485 = vld [vmem:[#allocation4 + $0x2d0] sm:$0xff]
        %v1486 = vld [vmem:[#allocation4 + $0x2d8] sm:$0xff]
        %v1487 = vld [vmem:[#allocation4 + $0x2e0] sm:$0xff]
        %v1488 = vld [vmem:[#allocation4 + $0x2e8] sm:$0xff]
        %v1489 = vld [vmem:[#allocation4 + $0x2f0] sm:$0xff]
        %v1490 = vld [vmem:[#allocation4 + $0x2f8] sm:$0xff]
        %v1491 = vld [vmem:[#allocation4 + $0x300] sm:$0xff]
        %v1492 = vld [vmem:[#allocation4 + $0x308] sm:$0xff]
        %v1493 = vld [vmem:[#allocation4 + $0x310] sm:$0xff]
        %v1494 = vld [vmem:[#allocation4 + $0x318] sm:$0xff]
        %v1495 = vld [vmem:[#allocation4 + $0x320] sm:$0xff]
        %v1496 = vld [vmem:[#allocation4 + $0x328] sm:$0xff]
        %v1497 = vld [vmem:[#allocation4 + $0x330] sm:$0xff]
        %v1498 = vld [vmem:[#allocation4 + $0x338] sm:$0xff]
        %v1499 = vld [vmem:[#allocation4 + $0x340] sm:$0xff]
        %v1500 = vld [vmem:[#allocation4 + $0x348] sm:$0xff]
        %v1501 = vld [vmem:[#allocation4 + $0x350] sm:$0xff]
        %v1502 = vld [vmem:[#allocation4 + $0x358] sm:$0xff]
        %v1503 = vld [vmem:[#allocation4 + $0x360] sm:$0xff]
        %v1504 = vld [vmem:[#allocation4 + $0x368] sm:$0xff]
        %v1505 = vld [vmem:[#allocation4 + $0x370] sm:$0xff]
        %v1506 = vld [vmem:[#allocation4 + $0x378] sm:$0xff]
        %v1507 = vld [vmem:[#allocation4 + $0x380] sm:$0xff]
        %v1508 = vld [vmem:[#allocation4 + $0x388] sm:$0xff]
        %v1509 = vld [vmem:[#allocation4 + $0x390] sm:$0xff]
        %v1510 = vld [vmem:[#allocation4 + $0x398] sm:$0xff]
        %v1511 = vld [vmem:[#allocation4 + $0x3a0] sm:$0xff]
        %v1512 = vld [vmem:[#allocation4 + $0x3a8] sm:$0xff]
        %v1513 = vld [vmem:[#allocation4 + $0x3b0] sm:$0xff]
        %v1514 = vld [vmem:[#allocation4 + $0x3b8] sm:$0xff]
        %v1515 = vld [vmem:[#allocation4 + $0x3c0] sm:$0xff]
        %v1516 = vld [vmem:[#allocation4 + $0x3c8] sm:$0xff]
        %v1517 = vld [vmem:[#allocation4 + $0x3d0] sm:$0xff]
        %v1518 = vld [vmem:[#allocation4 + $0x3d8] sm:$0xff]
        %v1519 = vld [vmem:[#allocation4 + $0x3e0] sm:$0xff]
        %v1520 = vld [vmem:[#allocation4 + $0x3e8] sm:$0xff]
        %v1521 = vld [vmem:[#allocation4 + $0x3f0] sm:$0xff]
        %v1522 = vld [vmem:[#allocation4 + $0x3f8] sm:$0xff]
        %v1523 = vld [vmem:[%s8] sm:$0xf]
        %v1525 = vlaneseq
        %v1526 = vshrl.u32 %v1525, 7
        %v1527 = vsub.s32 0, %v1526
        %v1528 = vrot.slane %v1523, %v1527
        %v1529 = vlaneseq
        %v1530 = vshrl.u32 %v1529, 7
        %v1531 = vsub.s32 1, %v1530
        %v1532 = vrot.slane %v1523, %v1531
        %v1533 = vlaneseq
        %v1534 = vshrl.u32 %v1533, 7
        %v1535 = vsub.s32 2, %v1534
        %v1536 = vrot.slane %v1523, %v1535
        %v1537 = vlaneseq
        %v1538 = vshrl.u32 %v1537, 7
        %v1539 = vsub.s32 3, %v1538
        %v1540 = vrot.slane %v1523, %v1539
        %1545 = vmatprep.subr.mxu0 %v1396
        %1546 = vmatpush1.msra.mxu0 %v1395
        %1547 = vmatprep.subr.mxu0 %v1400
        %1548 = vmatpush1.msra.mxu0 %v1399
        %1549 = vmatprep.subr.mxu0 %v1404
        %1550 = vmatpush1.msra.mxu0 %v1403
        %1551 = vmatprep.subr.mxu0 %v1408
        %1552 = vmatpush1.msra.mxu0 %v1407
        %1553 = vmatprep.subr.mxu0 %v1412
        %1554 = vmatpush1.msra.mxu0 %v1411
        %1555 = vmatprep.subr.mxu0 %v1416
        %1556 = vmatpush1.msra.mxu0 %v1415
        %1557 = vmatprep.subr.mxu0 %v1420
        %1558 = vmatpush1.msra.mxu0 %v1419
        %1559 = vmatprep.subr.mxu0 %v1424
        %1560 = vmatpush1.msra.mxu0 %v1423
        %1561 = vmatprep.subr.mxu0 %v1428
        %1562 = vmatpush1.msra.mxu0 %v1427
        %1563 = vmatprep.subr.mxu0 %v1432
        %1564 = vmatpush1.msra.mxu0 %v1431
        %1565 = vmatprep.subr.mxu0 %v1436
        %1566 = vmatpush1.msra.mxu0 %v1435
        %1567 = vmatprep.subr.mxu0 %v1440
        %1568 = vmatpush1.msra.mxu0 %v1439
        %1569 = vmatprep.subr.mxu0 %v1444
        %1570 = vmatpush1.msra.mxu0 %v1443
        %1571 = vmatprep.subr.mxu0 %v1448
        %1572 = vmatpush1.msra.mxu0 %v1447
        %1573 = vmatprep.subr.mxu0 %v1452
        %1574 = vmatpush1.msra.mxu0 %v1451
        %1575 = vmatprep.subr.mxu0 %v1456
        %1576 = vmatpush1.msra.mxu0 %v1455
        %1577 = vmatprep.subr.mxu0 %v1460
        %1578 = vmatpush1.msra.mxu0 %v1459
        %1579 = vmatprep.subr.mxu0 %v1464
        %1580 = vmatpush1.msra.mxu0 %v1463
        %1581 = vmatprep.subr.mxu0 %v1468
        %1582 = vmatpush1.msra.mxu0 %v1467
        %1583 = vmatprep.subr.mxu0 %v1472
        %1584 = vmatpush1.msra.mxu0 %v1471
        %1585 = vmatprep.subr.mxu0 %v1476
        %1586 = vmatpush1.msra.mxu0 %v1475
        %1587 = vmatprep.subr.mxu0 %v1480
        %1588 = vmatpush1.msra.mxu0 %v1479
        %1589 = vmatprep.subr.mxu0 %v1484
        %1590 = vmatpush1.msra.mxu0 %v1483
        %1591 = vmatprep.subr.mxu0 %v1488
        %1592 = vmatpush1.msra.mxu0 %v1487
        %1593 = vmatprep.subr.mxu0 %v1492
        %1594 = vmatpush1.msra.mxu0 %v1491
        %1595 = vmatprep.subr.mxu0 %v1496
        %1596 = vmatpush1.msra.mxu0 %v1495
        %1597 = vmatprep.subr.mxu0 %v1500
        %1598 = vmatpush1.msra.mxu0 %v1499
        %1599 = vmatprep.subr.mxu0 %v1504
        %1600 = vmatpush1.msra.mxu0 %v1503
        %1601 = vmatprep.subr.mxu0 %v1508
        %1602 = vmatpush1.msra.mxu0 %v1507
        %1603 = vmatprep.subr.mxu0 %v1512
        %1604 = vmatpush1.msra.mxu0 %v1511
        %1605 = vmatprep.subr.mxu0 %v1516
        %1606 = vmatpush1.msra.mxu0 %v1515
        %1607 = vmatprep.subr.mxu0 %v1520
        %1608 = vmatpush1.msra.mxu0 %v1519
        %1609 = vmatprep.mubr.f32.mxu0 %v1364
        %1610 = vmatmul.mubr.f32.gmra.mrb[0].mxu0 %v1363
        %v1611 = vpop.f32.mrb[0].mxu0
        %v1612 = vadd.f32 %v1528, %v1611
        %v1613 = vpop.f32.mrb[0].mxu0
        %v1614 = vadd.f32 %v1532, %v1613
        %1615 = vmatprep.mubr.f32.mxu0 %v1366
        %1616 = vmatmul.mubr.f32.gmra.mrb[0].mxu0 %v1365
        %v1617 = vpop.f32.mrb[0].mxu0
        %v1618 = vadd.f32 %v1528, %v1617
        %v1619 = vpop.f32.mrb[0].mxu0
        %v1620 = vadd.f32 %v1532, %v1619
        %1621 = vmatprep.mubr.f32.mxu0 %v1368
        %1622 = vmatmul.mubr.f32.gmra.mrb[0].mxu0 %v1367
        %v1623 = vpop.f32.mrb[0].mxu0
        %v1624 = vadd.f32 %v1528, %v1623
        %v1625 = vpop.f32.mrb[0].mxu0
        %v1626 = vadd.f32 %v1532, %v1625
        %1627 = vmatprep.mubr.f32.mxu0 %v1370
        %1628 = vmatmul.mubr.f32.gmra.mrb[0].mxu0 %v1369
        %v1629 = vpop.f32.mrb[0].mxu0
        %v1630 = vadd.f32 %v1528, %v1629
        %v1631 = vpop.f32.mrb[0].mxu0
        %v1632 = vadd.f32 %v1532, %v1631
        %1633 = vmatprep.mubr.f32.mxu0 %v1372
        %1634 = vmatmul.mubr.f32.gmra.mrb[0].mxu0 %v1371
        %v1635 = vpop.f32.mrb[0].mxu0
        %v1636 = vadd.f32 %v1528, %v1635
        %v1637 = vpop.f32.mrb[0].mxu0
        %v1638 = vadd.f32 %v1532, %v1637
        %1639 = vmatprep.mubr.f32.mxu0 %v1374
        %1640 = vmatmul.mubr.f32.gmra.mrb[0].mxu0 %v1373
        %v1641 = vpop.f32.mrb[0].mxu0
        %v1642 = vadd.f32 %v1528, %v1641
        %v1643 = vpop.f32.mrb[0].mxu0
        %v1644 = vadd.f32 %v1532, %v1643
        %1645 = vmatprep.mubr.f32.mxu0 %v1376
        %1646 = vmatmul.mubr.f32.gmra.mrb[0].mxu0 %v1375
        %v1647 = vpop.f32.mrb[0].mxu0
        %v1648 = vadd.f32 %v1528, %v1647
        %v1649 = vpop.f32.mrb[0].mxu0
        %v1650 = vadd.f32 %v1532, %v1649
        %1651 = vmatprep.mubr.f32.mxu0 %v1378
        %1652 = vmatmul.mubr.f32.gmra.mrb[0].mxu0 %v1377
        %v1653 = vpop.f32.mrb[0].mxu0
        %v1654 = vadd.f32 %v1528, %v1653
        %v1655 = vpop.f32.mrb[0].mxu0
        %v1656 = vadd.f32 %v1532, %v1655
        %1657 = vmatprep.mubr.f32.mxu0 %v1380
        %1658 = vmatmul.mubr.f32.gmra.mrb[0].mxu0 %v1379
        %v1659 = vpop.f32.mrb[0].mxu0
        %v1660 = vadd.f32 %v1528, %v1659
        %v1661 = vpop.f32.mrb[0].mxu0
        %v1662 = vadd.f32 %v1532, %v1661
        %1663 = vmatprep.mubr.f32.mxu0 %v1382
        %1664 = vmatmul.mubr.f32.gmra.mrb[0].mxu0 %v1381
        %v1665 = vpop.f32.mrb[0].mxu0
        %v1666 = vadd.f32 %v1528, %v1665
        %v1667 = vpop.f32.mrb[0].mxu0
        %v1668 = vadd.f32 %v1532, %v1667
        %1669 = vmatprep.mubr.f32.mxu0 %v1384
        %1670 = vmatmul.mubr.f32.gmra.mrb[0].mxu0 %v1383
        %v1671 = vpop.f32.mrb[0].mxu0
        %v1672 = vadd.f32 %v1528, %v1671
        %v1673 = vpop.f32.mrb[0].mxu0
        %v1674 = vadd.f32 %v1532, %v1673
        %1675 = vmatprep.mubr.f32.mxu0 %v1386
        %1676 = vmatmul.mubr.f32.gmra.mrb[0].mxu0 %v1385
        %v1677 = vpop.f32.mrb[0].mxu0
        %v1678 = vadd.f32 %v1528, %v1677
        %v1679 = vpop.f32.mrb[0].mxu0
        %v1680 = vadd.f32 %v1532, %v1679
        %1681 = vmatprep.mubr.f32.mxu0 %v1388
        %1682 = vmatmul.mubr.f32.gmra.mrb[0].mxu0 %v1387
        %v1683 = vpop.f32.mrb[0].mxu0
        %v1684 = vadd.f32 %v1528, %v1683
        %v1685 = vpop.f32.mrb[0].mxu0
        %v1686 = vadd.f32 %v1532, %v1685
        %1687 = vmatprep.mubr.f32.mxu0 %v1390
        %1688 = vmatmul.mubr.f32.gmra.mrb[0].mxu0 %v1389
        %v1689 = vpop.f32.mrb[0].mxu0
        %v1690 = vadd.f32 %v1528, %v1689
        %v1691 = vpop.f32.mrb[0].mxu0
        %v1692 = vadd.f32 %v1532, %v1691
        %1693 = vmatprep.mubr.f32.mxu0 %v1392
        %1694 = vmatmul.mubr.f32.gmra.mrb[0].mxu0 %v1391
        %v1695 = vpop.f32.mrb[0].mxu0
        %v1696 = vadd.f32 %v1528, %v1695
        %v1697 = vpop.f32.mrb[0].mxu0
        %v1698 = vadd.f32 %v1532, %v1697
        %1699 = vmatprep.mubr.f32.mxu0 %v1394
        %1700 = vmatmul.mubr.f32.gmra.mrb[0].mxu0 %v1393
        %v1701 = vpop.f32.mrb[0].mxu0
        %v1702 = vadd.f32 %v1528, %v1701
        %v1703 = vpop.f32.mrb[0].mxu0
        %v1704 = vadd.f32 %v1532, %v1703
        %1705 = vdwg.mxu0
        %1706 = vmatprep.subr.mxu0 %v1398
        %1707 = vmatpush1.msra.mxu0 %v1397
        %1708 = vmatprep.subr.mxu0 %v1402
        %1709 = vmatpush1.msra.mxu0 %v1401
        %1710 = vmatprep.subr.mxu0 %v1406
        %1711 = vmatpush1.msra.mxu0 %v1405
        %1712 = vmatprep.subr.mxu0 %v1410
        %1713 = vmatpush1.msra.mxu0 %v1409
        %1714 = vmatprep.subr.mxu0 %v1414
        %1715 = vmatpush1.msra.mxu0 %v1413
        %1716 = vmatprep.subr.mxu0 %v1418
        %1717 = vmatpush1.msra.mxu0 %v1417
        %1718 = vmatprep.subr.mxu0 %v1422
        %1719 = vmatpush1.msra.mxu0 %v1421
        %1720 = vmatprep.subr.mxu0 %v1426
        %1721 = vmatpush1.msra.mxu0 %v1425
        %1722 = vmatprep.subr.mxu0 %v1430
        %1723 = vmatpush1.msra.mxu0 %v1429
        %1724 = vmatprep.subr.mxu0 %v1434
        %1725 = vmatpush1.msra.mxu0 %v1433
        %1726 = vmatprep.subr.mxu0 %v1438
        %1727 = vmatpush1.msra.mxu0 %v1437
        %1728 = vmatprep.subr.mxu0 %v1442
        %1729 = vmatpush1.msra.mxu0 %v1441
        %1730 = vmatprep.subr.mxu0 %v1446
        %1731 = vmatpush1.msra.mxu0 %v1445
        %1732 = vmatprep.subr.mxu0 %v1450
        %1733 = vmatpush1.msra.mxu0 %v1449
        %1734 = vmatprep.subr.mxu0 %v1454
        %1735 = vmatpush1.msra.mxu0 %v1453
        %1736 = vmatprep.subr.mxu0 %v1458
        %1737 = vmatpush1.msra.mxu0 %v1457
        %1738 = vmatprep.subr.mxu0 %v1462
        %1739 = vmatpush1.msra.mxu0 %v1461
        %1740 = vmatprep.subr.mxu0 %v1466
        %1741 = vmatpush1.msra.mxu0 %v1465
        %1742 = vmatprep.subr.mxu0 %v1470
        %1743 = vmatpush1.msra.mxu0 %v1469
        %1744 = vmatprep.subr.mxu0 %v1474
        %1745 = vmatpush1.msra.mxu0 %v1473
        %1746 = vmatprep.subr.mxu0 %v1478
        %1747 = vmatpush1.msra.mxu0 %v1477
        %1748 = vmatprep.subr.mxu0 %v1482
        %1749 = vmatpush1.msra.mxu0 %v1481
        %1750 = vmatprep.subr.mxu0 %v1486
        %1751 = vmatpush1.msra.mxu0 %v1485
        %1752 = vmatprep.subr.mxu0 %v1490
        %1753 = vmatpush1.msra.mxu0 %v1489
        %1754 = vmatprep.subr.mxu0 %v1494
        %1755 = vmatpush1.msra.mxu0 %v1493
        %1756 = vmatprep.subr.mxu0 %v1498
        %1757 = vmatpush1.msra.mxu0 %v1497
        %1758 = vmatprep.subr.mxu0 %v1502
        %1759 = vmatpush1.msra.mxu0 %v1501
        %1760 = vmatprep.subr.mxu0 %v1506
        %1761 = vmatpush1.msra.mxu0 %v1505
        %1762 = vmatprep.subr.mxu0 %v1510
        %1763 = vmatpush1.msra.mxu0 %v1509
        %1764 = vmatprep.subr.mxu0 %v1514
        %1765 = vmatpush1.msra.mxu0 %v1513
        %1766 = vmatprep.subr.mxu0 %v1518
        %1767 = vmatpush1.msra.mxu0 %v1517
        %1768 = vmatprep.subr.mxu0 %v1522
        %1769 = vmatpush1.msra.mxu0 %v1521
        %1770 = vmatprep.mubr.f32.mxu0 %v1364
        %1771 = vmatmul.mubr.f32.gmra.mrb[0].mxu0 %v1363
        %v1772 = vpop.f32.mrb[0].mxu0
        %v1773 = vadd.f32 %v1536, %v1772
        %v1774 = vpop.f32.mrb[0].mxu0
        %v1775 = vadd.f32 %v1540, %v1774
        %1776 = vmatprep.mubr.f32.mxu0 %v1366
        %1777 = vmatmul.mubr.f32.gmra.mrb[0].mxu0 %v1365
        %v1778 = vpop.f32.mrb[0].mxu0
        %v1779 = vadd.f32 %v1536, %v1778
        %v1780 = vpop.f32.mrb[0].mxu0
        %v1781 = vadd.f32 %v1540, %v1780
        %1782 = vmatprep.mubr.f32.mxu0 %v1368
        %1783 = vmatmul.mubr.f32.gmra.mrb[0].mxu0 %v1367
        %v1784 = vpop.f32.mrb[0].mxu0
        %v1785 = vadd.f32 %v1536, %v1784
        %v1786 = vpop.f32.mrb[0].mxu0
        %v1787 = vadd.f32 %v1540, %v1786
        %1788 = vmatprep.mubr.f32.mxu0 %v1370
        %1789 = vmatmul.mubr.f32.gmra.mrb[0].mxu0 %v1369
        %v1790 = vpop.f32.mrb[0].mxu0
        %v1791 = vadd.f32 %v1536, %v1790
        %v1792 = vpop.f32.mrb[0].mxu0
        %v1793 = vadd.f32 %v1540, %v1792
        %1794 = vmatprep.mubr.f32.mxu0 %v1372
        %1795 = vmatmul.mubr.f32.gmra.mrb[0].mxu0 %v1371
        %v1796 = vpop.f32.mrb[0].mxu0
        %v1797 = vadd.f32 %v1536, %v1796
        %v1798 = vpop.f32.mrb[0].mxu0
        %v1799 = vadd.f32 %v1540, %v1798
        %1800 = vmatprep.mubr.f32.mxu0 %v1374
        %1801 = vmatmul.mubr.f32.gmra.mrb[0].mxu0 %v1373
        %v1802 = vpop.f32.mrb[0].mxu0
        %v1803 = vadd.f32 %v1536, %v1802
        %v1804 = vpop.f32.mrb[0].mxu0
        %v1805 = vadd.f32 %v1540, %v1804
        %1806 = vmatprep.mubr.f32.mxu0 %v1376
        %1807 = vmatmul.mubr.f32.gmra.mrb[0].mxu0 %v1375
        %v1808 = vpop.f32.mrb[0].mxu0
        %v1809 = vadd.f32 %v1536, %v1808
        %v1810 = vpop.f32.mrb[0].mxu0
        %v1811 = vadd.f32 %v1540, %v1810
        %1812 = vmatprep.mubr.f32.mxu0 %v1378
        %1813 = vmatmul.mubr.f32.gmra.mrb[0].mxu0 %v1377
        %v1814 = vpop.f32.mrb[0].mxu0
        %v1815 = vadd.f32 %v1536, %v1814
        %v1816 = vpop.f32.mrb[0].mxu0
        %v1817 = vadd.f32 %v1540, %v1816
        %1818 = vmatprep.mubr.f32.mxu0 %v1380
        %1819 = vmatmul.mubr.f32.gmra.mrb[0].mxu0 %v1379
        %v1820 = vpop.f32.mrb[0].mxu0
        %v1821 = vadd.f32 %v1536, %v1820
        %v1822 = vpop.f32.mrb[0].mxu0
        %v1823 = vadd.f32 %v1540, %v1822
        %1824 = vmatprep.mubr.f32.mxu0 %v1382
        %1825 = vmatmul.mubr.f32.gmra.mrb[0].mxu0 %v1381
        %v1826 = vpop.f32.mrb[0].mxu0
        %v1827 = vadd.f32 %v1536, %v1826
        %v1828 = vpop.f32.mrb[0].mxu0
        %v1829 = vadd.f32 %v1540, %v1828
        %1830 = vmatprep.mubr.f32.mxu0 %v1384
        %1831 = vmatmul.mubr.f32.gmra.mrb[0].mxu0 %v1383
        %v1832 = vpop.f32.mrb[0].mxu0
        %v1833 = vadd.f32 %v1536, %v1832
        %v1834 = vpop.f32.mrb[0].mxu0
        %v1835 = vadd.f32 %v1540, %v1834
        %1836 = vmatprep.mubr.f32.mxu0 %v1386
        %1837 = vmatmul.mubr.f32.gmra.mrb[0].mxu0 %v1385
        %v1838 = vpop.f32.mrb[0].mxu0
        %v1839 = vadd.f32 %v1536, %v1838
        %v1840 = vpop.f32.mrb[0].mxu0
        %v1841 = vadd.f32 %v1540, %v1840
        %1842 = vmatprep.mubr.f32.mxu0 %v1388
        %1843 = vmatmul.mubr.f32.gmra.mrb[0].mxu0 %v1387
        %v1844 = vpop.f32.mrb[0].mxu0
        %v1845 = vadd.f32 %v1536, %v1844
        %v1846 = vpop.f32.mrb[0].mxu0
        %v1847 = vadd.f32 %v1540, %v1846
        %1848 = vmatprep.mubr.f32.mxu0 %v1390
        %1849 = vmatmul.mubr.f32.gmra.mrb[0].mxu0 %v1389
        %v1850 = vpop.f32.mrb[0].mxu0
        %v1851 = vadd.f32 %v1536, %v1850
        %v1852 = vpop.f32.mrb[0].mxu0
        %v1853 = vadd.f32 %v1540, %v1852
        %1854 = vmatprep.mubr.f32.mxu0 %v1392
        %1855 = vmatmul.mubr.f32.gmra.mrb[0].mxu0 %v1391
        %v1856 = vpop.f32.mrb[0].mxu0
        %v1857 = vadd.f32 %v1536, %v1856
        %v1858 = vpop.f32.mrb[0].mxu0
        %v1859 = vadd.f32 %v1540, %v1858
        %1860 = vmatprep.mubr.f32.mxu0 %v1394
        %1861 = vmatmul.mubr.f32.gmra.mrb[0].mxu0 %v1393
        %v1862 = vpop.f32.mrb[0].mxu0
        %v1863 = vadd.f32 %v1536, %v1862
        %v1864 = vpop.f32.mrb[0].mxu0
        %v1865 = vadd.f32 %v1540, %v1864
        %1866 = vdwg.mxu0
        %v1867 = vadd.f32 %v1773, %v1085
        %v1868 = vadd.f32 %v1775, %v1086
        %v1869 = vadd.f32 %v1779, %v1087
        %v1870 = vadd.f32 %v1781, %v1088
        %v1871 = vadd.f32 %v1785, %v1089
        %v1872 = vadd.f32 %v1787, %v1090
        %v1873 = vadd.f32 %v1791, %v1091
        %v1874 = vadd.f32 %v1793, %v1092
        %v1875 = vadd.f32 %v1797, %v1093
        %v1876 = vadd.f32 %v1799, %v1094
        %v1877 = vadd.f32 %v1803, %v1095
        %v1878 = vadd.f32 %v1805, %v1096
        %v1879 = vadd.f32 %v1809, %v1097
        %v1880 = vadd.f32 %v1811, %v1098
        %v1881 = vadd.f32 %v1815, %v1099
        %v1882 = vadd.f32 %v1817, %v1100
        %v1883 = vadd.f32 %v1821, %v1101
        %v1884 = vadd.f32 %v1823, %v1102
        %v1885 = vadd.f32 %v1827, %v1103
        %v1886 = vadd.f32 %v1829, %v1104
        %v1887 = vadd.f32 %v1833, %v1105
        %v1888 = vadd.f32 %v1835, %v1106
        %v1889 = vadd.f32 %v1839, %v1107
        %v1890 = vadd.f32 %v1841, %v1108
        %v1891 = vadd.f32 %v1845, %v1109
        %v1892 = vadd.f32 %v1847, %v1110
        %v1893 = vadd.f32 %v1851, %v1111
        %v1894 = vadd.f32 %v1853, %v1112
        %v1895 = vadd.f32 %v1857, %v1113
        %v1896 = vadd.f32 %v1859, %v1114
        %v1897 = vadd.f32 %v1863, %v1115
        %v1898 = vadd.f32 %v1865, %v1116
        %v1899 = vsub.f32 %v1269, %v1612
        %v1900 = vsub.f32 %v1271, %v1614
        %v1901 = vsub.f32 %v1275, %v1618
        %v1902 = vsub.f32 %v1277, %v1620
        %v1903 = vsub.f32 %v1281, %v1624
        %v1904 = vsub.f32 %v1283, %v1626
        %v1905 = vsub.f32 %v1287, %v1630
        %v1906 = vsub.f32 %v1289, %v1632
        %v1907 = vsub.f32 %v1293, %v1636
        %v1908 = vsub.f32 %v1295, %v1638
        %v1909 = vsub.f32 %v1299, %v1642
        %v1910 = vsub.f32 %v1301, %v1644
        %v1911 = vsub.f32 %v1305, %v1648
        %v1912 = vsub.f32 %v1307, %v1650
        %v1913 = vsub.f32 %v1311, %v1654
        %v1914 = vsub.f32 %v1313, %v1656
        %v1915 = vsub.f32 %v1317, %v1660
        %v1916 = vsub.f32 %v1319, %v1662
        %v1917 = vsub.f32 %v1323, %v1666
        %v1918 = vsub.f32 %v1325, %v1668
        %v1919 = vsub.f32 %v1329, %v1672
        %v1920 = vsub.f32 %v1331, %v1674
        %v1921 = vsub.f32 %v1335, %v1678
        %v1922 = vsub.f32 %v1337, %v1680
        %v1923 = vsub.f32 %v1341, %v1684
        %v1924 = vsub.f32 %v1343, %v1686
        %v1925 = vsub.f32 %v1347, %v1690
        %v1926 = vsub.f32 %v1349, %v1692
        %v1927 = vsub.f32 %v1353, %v1696
        %v1928 = vsub.f32 %v1355, %v1698
        %v1929 = vsub.f32 %v1359, %v1702
        %v1930 = vsub.f32 %v1361, %v1704
        %v1931 = vadd.f32 %v1899, %v1085
        %v1932 = vadd.f32 %v1900, %v1086
        %v1933 = vadd.f32 %v1901, %v1087
        %v1934 = vadd.f32 %v1902, %v1088
        %v1935 = vadd.f32 %v1903, %v1089
        %v1936 = vadd.f32 %v1904, %v1090
        %v1937 = vadd.f32 %v1905, %v1091
        %v1938 = vadd.f32 %v1906, %v1092
        %v1939 = vadd.f32 %v1907, %v1093
        %v1940 = vadd.f32 %v1908, %v1094
        %v1941 = vadd.f32 %v1909, %v1095
        %v1942 = vadd.f32 %v1910, %v1096
        %v1943 = vadd.f32 %v1911, %v1097
        %v1944 = vadd.f32 %v1912, %v1098
        %v1945 = vadd.f32 %v1913, %v1099
        %v1946 = vadd.f32 %v1914, %v1100
        %v1947 = vadd.f32 %v1915, %v1101
        %v1948 = vadd.f32 %v1916, %v1102
        %v1949 = vadd.f32 %v1917, %v1103
        %v1950 = vadd.f32 %v1918, %v1104
        %v1951 = vadd.f32 %v1919, %v1105
        %v1952 = vadd.f32 %v1920, %v1106
        %v1953 = vadd.f32 %v1921, %v1107
        %v1954 = vadd.f32 %v1922, %v1108
        %v1955 = vadd.f32 %v1923, %v1109
        %v1956 = vadd.f32 %v1924, %v1110
        %v1957 = vadd.f32 %v1925, %v1111
        %v1958 = vadd.f32 %v1926, %v1112
        %v1959 = vadd.f32 %v1927, %v1113
        %v1960 = vadd.f32 %v1928, %v1114
        %v1961 = vadd.f32 %v1929, %v1115
        %v1962 = vadd.f32 %v1930, %v1116
        %v1963 = vld [vmem:[#allocation6] sm:$0xff]
        %v1964 = vld [vmem:[#allocation6 + $0x8] sm:$0xff]
        %v1965 = vld [vmem:[#allocation6 + $0x10] sm:$0xff]
        %v1966 = vld [vmem:[#allocation6 + $0x18] sm:$0xff]
        %v1967 = vld [vmem:[#allocation6 + $0x20] sm:$0xff]
        %v1968 = vld [vmem:[#allocation6 + $0x28] sm:$0xff]
        %v1969 = vld [vmem:[#allocation6 + $0x30] sm:$0xff]
        %v1970 = vld [vmem:[#allocation6 + $0x38] sm:$0xff]
        %v1971 = vld [vmem:[#allocation6 + $0x40] sm:$0xff]
        %v1972 = vld [vmem:[#allocation6 + $0x48] sm:$0xff]
        %v1973 = vld [vmem:[#allocation6 + $0x50] sm:$0xff]
        %v1974 = vld [vmem:[#allocation6 + $0x58] sm:$0xff]
        %v1975 = vld [vmem:[#allocation6 + $0x60] sm:$0xff]
        %v1976 = vld [vmem:[#allocation6 + $0x68] sm:$0xff]
        %v1977 = vld [vmem:[#allocation6 + $0x70] sm:$0xff]
        %v1978 = vld [vmem:[#allocation6 + $0x78] sm:$0xff]
        %v1979 = vld [vmem:[#allocation6 + $0x80] sm:$0xff]
        %v1980 = vld [vmem:[#allocation6 + $0x88] sm:$0xff]
        %v1981 = vld [vmem:[#allocation6 + $0x90] sm:$0xff]
        %v1982 = vld [vmem:[#allocation6 + $0x98] sm:$0xff]
        %v1983 = vld [vmem:[#allocation6 + $0xa0] sm:$0xff]
        %v1984 = vld [vmem:[#allocation6 + $0xa8] sm:$0xff]
        %v1985 = vld [vmem:[#allocation6 + $0xb0] sm:$0xff]
        %v1986 = vld [vmem:[#allocation6 + $0xb8] sm:$0xff]
        %v1987 = vld [vmem:[#allocation6 + $0xc0] sm:$0xff]
        %v1988 = vld [vmem:[#allocation6 + $0xc8] sm:$0xff]
        %v1989 = vld [vmem:[#allocation6 + $0xd0] sm:$0xff]
        %v1990 = vld [vmem:[#allocation6 + $0xd8] sm:$0xff]
        %v1991 = vld [vmem:[#allocation6 + $0xe0] sm:$0xff]
        %v1992 = vld [vmem:[#allocation6 + $0xe8] sm:$0xff]
        %v1993 = vld [vmem:[#allocation6 + $0xf0] sm:$0xff]
        %v1994 = vld [vmem:[#allocation6 + $0xf8] sm:$0xff]
        %v1995 = vld [vmem:[#allocation6 + $0x100] sm:$0xff]
        %v1996 = vld [vmem:[#allocation6 + $0x108] sm:$0xff]
        %v1997 = vld [vmem:[#allocation6 + $0x110] sm:$0xff]
        %v1998 = vld [vmem:[#allocation6 + $0x118] sm:$0xff]
        %v1999 = vld [vmem:[#allocation6 + $0x120] sm:$0xff]
        %v2000 = vld [vmem:[#allocation6 + $0x128] sm:$0xff]
        %v2001 = vld [vmem:[#allocation6 + $0x130] sm:$0xff]
        %v2002 = vld [vmem:[#allocation6 + $0x138] sm:$0xff]
        %v2003 = vld [vmem:[#allocation6 + $0x140] sm:$0xff]
        %v2004 = vld [vmem:[#allocation6 + $0x148] sm:$0xff]
        %v2005 = vld [vmem:[#allocation6 + $0x150] sm:$0xff]
        %v2006 = vld [vmem:[#allocation6 + $0x158] sm:$0xff]
        %v2007 = vld [vmem:[#allocation6 + $0x160] sm:$0xff]
        %v2008 = vld [vmem:[#allocation6 + $0x168] sm:$0xff]
        %v2009 = vld [vmem:[#allocation6 + $0x170] sm:$0xff]
        %v2010 = vld [vmem:[#allocation6 + $0x178] sm:$0xff]
        %v2011 = vld [vmem:[#allocation6 + $0x180] sm:$0xff]
        %v2012 = vld [vmem:[#allocation6 + $0x188] sm:$0xff]
        %v2013 = vld [vmem:[#allocation6 + $0x190] sm:$0xff]
        %v2014 = vld [vmem:[#allocation6 + $0x198] sm:$0xff]
        %v2015 = vld [vmem:[#allocation6 + $0x1a0] sm:$0xff]
        %v2016 = vld [vmem:[#allocation6 + $0x1a8] sm:$0xff]
        %v2017 = vld [vmem:[#allocation6 + $0x1b0] sm:$0xff]
        %v2018 = vld [vmem:[#allocation6 + $0x1b8] sm:$0xff]
        %v2019 = vld [vmem:[#allocation6 + $0x1c0] sm:$0xff]
        %v2020 = vld [vmem:[#allocation6 + $0x1c8] sm:$0xff]
        %v2021 = vld [vmem:[#allocation6 + $0x1d0] sm:$0xff]
        %v2022 = vld [vmem:[#allocation6 + $0x1d8] sm:$0xff]
        %v2023 = vld [vmem:[#allocation6 + $0x1e0] sm:$0xff]
        %v2024 = vld [vmem:[#allocation6 + $0x1e8] sm:$0xff]
        %v2025 = vld [vmem:[#allocation6 + $0x1f0] sm:$0xff]
        %v2026 = vld [vmem:[#allocation6 + $0x1f8] sm:$0xff]
        %v2027 = vld [vmem:[%s12] sm:$0x3]
        %v2029 = vlaneseq
        %v2030 = vshrl.u32 %v2029, 7
        %v2031 = vsub.s32 0, %v2030
        %v2032 = vrot.slane %v2027, %v2031
        %v2033 = vlaneseq
        %v2034 = vshrl.u32 %v2033, 7
        %v2035 = vsub.s32 1, %v2034
        %v2036 = vrot.slane %v2027, %v2035
        %2039 = vmatprep.subr.mxu0 %v1964
        %2040 = vmatpush1.msra.mxu0 %v1963
        %2041 = vmatprep.subr.mxu0 %v1966
        %2042 = vmatpush1.msra.mxu0 %v1965
        %2043 = vmatprep.subr.mxu0 %v1968
        %2044 = vmatpush1.msra.mxu0 %v1967
        %2045 = vmatprep.subr.mxu0 %v1970
        %2046 = vmatpush1.msra.mxu0 %v1969
        %2047 = vmatprep.subr.mxu0 %v1972
        %2048 = vmatpush1.msra.mxu0 %v1971
        %2049 = vmatprep.subr.mxu0 %v1974
        %2050 = vmatpush1.msra.mxu0 %v1973
        %2051 = vmatprep.subr.mxu0 %v1976
        %2052 = vmatpush1.msra.mxu0 %v1975
        %2053 = vmatprep.subr.mxu0 %v1978
        %2054 = vmatpush1.msra.mxu0 %v1977
        %2055 = vmatprep.subr.mxu0 %v1980
        %2056 = vmatpush1.msra.mxu0 %v1979
        %2057 = vmatprep.subr.mxu0 %v1982
        %2058 = vmatpush1.msra.mxu0 %v1981
        %2059 = vmatprep.subr.mxu0 %v1984
        %2060 = vmatpush1.msra.mxu0 %v1983
        %2061 = vmatprep.subr.mxu0 %v1986
        %2062 = vmatpush1.msra.mxu0 %v1985
        %2063 = vmatprep.subr.mxu0 %v1988
        %2064 = vmatpush1.msra.mxu0 %v1987
        %2065 = vmatprep.subr.mxu0 %v1990
        %2066 = vmatpush1.msra.mxu0 %v1989
        %2067 = vmatprep.subr.mxu0 %v1992
        %2068 = vmatpush1.msra.mxu0 %v1991
        %2069 = vmatprep.subr.mxu0 %v1994
        %2070 = vmatpush1.msra.mxu0 %v1993
        %2071 = vmatprep.subr.mxu0 %v1996
        %2072 = vmatpush1.msra.mxu0 %v1995
        %2073 = vmatprep.subr.mxu0 %v1998
        %2074 = vmatpush1.msra.mxu0 %v1997
        %2075 = vmatprep.subr.mxu0 %v2000
        %2076 = vmatpush1.msra.mxu0 %v1999
        %2077 = vmatprep.subr.mxu0 %v2002
        %2078 = vmatpush1.msra.mxu0 %v2001
        %2079 = vmatprep.subr.mxu0 %v2004
        %2080 = vmatpush1.msra.mxu0 %v2003
        %2081 = vmatprep.subr.mxu0 %v2006
        %2082 = vmatpush1.msra.mxu0 %v2005
        %2083 = vmatprep.subr.mxu0 %v2008
        %2084 = vmatpush1.msra.mxu0 %v2007
        %2085 = vmatprep.subr.mxu0 %v2010
        %2086 = vmatpush1.msra.mxu0 %v2009
        %2087 = vmatprep.subr.mxu0 %v2012
        %2088 = vmatpush1.msra.mxu0 %v2011
        %2089 = vmatprep.subr.mxu0 %v2014
        %2090 = vmatpush1.msra.mxu0 %v2013
        %2091 = vmatprep.subr.mxu0 %v2016
        %2092 = vmatpush1.msra.mxu0 %v2015
        %2093 = vmatprep.subr.mxu0 %v2018
        %2094 = vmatpush1.msra.mxu0 %v2017
        %2095 = vmatprep.subr.mxu0 %v2020
        %2096 = vmatpush1.msra.mxu0 %v2019
        %2097 = vmatprep.subr.mxu0 %v2022
        %2098 = vmatpush1.msra.mxu0 %v2021
        %2099 = vmatprep.subr.mxu0 %v2024
        %2100 = vmatpush1.msra.mxu0 %v2023
        %2101 = vmatprep.subr.mxu0 %v2026
        %2102 = vmatpush1.msra.mxu0 %v2025
        %2103 = vmatprep.mubr.f32.mxu0 %v1932
        %2104 = vmatmul.mubr.f32.gmra.mrb[0].mxu0 %v1931
        %v2105 = vpop.f32.mrb[0].mxu0
        %v2106 = vadd.f32 %v2032, %v2105
        %v2107 = vpop.f32.mrb[0].mxu0
        %v2108 = vadd.f32 %v2036, %v2107
        %2109 = vmatprep.mubr.f32.mxu0 %v1934
        %2110 = vmatmul.mubr.f32.gmra.mrb[0].mxu0 %v1933
        %v2111 = vpop.f32.mrb[0].mxu0
        %v2112 = vadd.f32 %v2032, %v2111
        %v2113 = vpop.f32.mrb[0].mxu0
        %v2114 = vadd.f32 %v2036, %v2113
        %2115 = vmatprep.mubr.f32.mxu0 %v1936
        %2116 = vmatmul.mubr.f32.gmra.mrb[0].mxu0 %v1935
        %v2117 = vpop.f32.mrb[0].mxu0
        %v2118 = vadd.f32 %v2032, %v2117
        %v2119 = vpop.f32.mrb[0].mxu0
        %v2120 = vadd.f32 %v2036, %v2119
        %2121 = vmatprep.mubr.f32.mxu0 %v1938
        %2122 = vmatmul.mubr.f32.gmra.mrb[0].mxu0 %v1937
        %v2123 = vpop.f32.mrb[0].mxu0
        %v2124 = vadd.f32 %v2032, %v2123
        %v2125 = vpop.f32.mrb[0].mxu0
        %v2126 = vadd.f32 %v2036, %v2125
        %2127 = vmatprep.mubr.f32.mxu0 %v1940
        %2128 = vmatmul.mubr.f32.gmra.mrb[0].mxu0 %v1939
        %v2129 = vpop.f32.mrb[0].mxu0
        %v2130 = vadd.f32 %v2032, %v2129
        %v2131 = vpop.f32.mrb[0].mxu0
        %v2132 = vadd.f32 %v2036, %v2131
        %2133 = vmatprep.mubr.f32.mxu0 %v1942
        %2134 = vmatmul.mubr.f32.gmra.mrb[0].mxu0 %v1941
        %v2135 = vpop.f32.mrb[0].mxu0
        %v2136 = vadd.f32 %v2032, %v2135
        %v2137 = vpop.f32.mrb[0].mxu0
        %v2138 = vadd.f32 %v2036, %v2137
        %2139 = vmatprep.mubr.f32.mxu0 %v1944
        %2140 = vmatmul.mubr.f32.gmra.mrb[0].mxu0 %v1943
        %v2141 = vpop.f32.mrb[0].mxu0
        %v2142 = vadd.f32 %v2032, %v2141
        %v2143 = vpop.f32.mrb[0].mxu0
        %v2144 = vadd.f32 %v2036, %v2143
        %2145 = vmatprep.mubr.f32.mxu0 %v1946
        %2146 = vmatmul.mubr.f32.gmra.mrb[0].mxu0 %v1945
        %v2147 = vpop.f32.mrb[0].mxu0
        %v2148 = vadd.f32 %v2032, %v2147
        %v2149 = vpop.f32.mrb[0].mxu0
        %v2150 = vadd.f32 %v2036, %v2149
        %2151 = vmatprep.mubr.f32.mxu0 %v1948
        %2152 = vmatmul.mubr.f32.gmra.mrb[0].mxu0 %v1947
        %v2153 = vpop.f32.mrb[0].mxu0
        %v2154 = vadd.f32 %v2032, %v2153
        %v2155 = vpop.f32.mrb[0].mxu0
        %v2156 = vadd.f32 %v2036, %v2155
        %2157 = vmatprep.mubr.f32.mxu0 %v1950
        %2158 = vmatmul.mubr.f32.gmra.mrb[0].mxu0 %v1949
        %v2159 = vpop.f32.mrb[0].mxu0
        %v2160 = vadd.f32 %v2032, %v2159
        %v2161 = vpop.f32.mrb[0].mxu0
        %v2162 = vadd.f32 %v2036, %v2161
        %2163 = vmatprep.mubr.f32.mxu0 %v1952
        %2164 = vmatmul.mubr.f32.gmra.mrb[0].mxu0 %v1951
        %v2165 = vpop.f32.mrb[0].mxu0
        %v2166 = vadd.f32 %v2032, %v2165
        %v2167 = vpop.f32.mrb[0].mxu0
        %v2168 = vadd.f32 %v2036, %v2167
        %2169 = vmatprep.mubr.f32.mxu0 %v1954
        %2170 = vmatmul.mubr.f32.gmra.mrb[0].mxu0 %v1953
        %v2171 = vpop.f32.mrb[0].mxu0
        %v2172 = vadd.f32 %v2032, %v2171
        %v2173 = vpop.f32.mrb[0].mxu0
        %v2174 = vadd.f32 %v2036, %v2173
        %2175 = vmatprep.mubr.f32.mxu0 %v1956
        %2176 = vmatmul.mubr.f32.gmra.mrb[0].mxu0 %v1955
        %v2177 = vpop.f32.mrb[0].mxu0
        %v2178 = vadd.f32 %v2032, %v2177
        %v2179 = vpop.f32.mrb[0].mxu0
        %v2180 = vadd.f32 %v2036, %v2179
        %2181 = vmatprep.mubr.f32.mxu0 %v1958
        %2182 = vmatmul.mubr.f32.gmra.mrb[0].mxu0 %v1957
        %v2183 = vpop.f32.mrb[0].mxu0
        %v2184 = vadd.f32 %v2032, %v2183
        %v2185 = vpop.f32.mrb[0].mxu0
        %v2186 = vadd.f32 %v2036, %v2185
        %2187 = vmatprep.mubr.f32.mxu0 %v1960
        %2188 = vmatmul.mubr.f32.gmra.mrb[0].mxu0 %v1959
        %v2189 = vpop.f32.mrb[0].mxu0
        %v2190 = vadd.f32 %v2032, %v2189
        %v2191 = vpop.f32.mrb[0].mxu0
        %v2192 = vadd.f32 %v2036, %v2191
        %2193 = vmatprep.mubr.f32.mxu0 %v1962
        %2194 = vmatmul.mubr.f32.gmra.mrb[0].mxu0 %v1961
        %v2195 = vpop.f32.mrb[0].mxu0
        %v2196 = vadd.f32 %v2032, %v2195
        %v2197 = vpop.f32.mrb[0].mxu0
        %v2198 = vadd.f32 %v2036, %v2197
        %2199 = vdwg.mxu0
        %v2200 = vld [vmem:[#allocation7] sm:$0xff]
        %v2201 = vld [vmem:[#allocation7 + $0x8] sm:$0xff]
        %v2202 = vld [vmem:[#allocation7 + $0x10] sm:$0xff]
        %v2203 = vld [vmem:[#allocation7 + $0x18] sm:$0xff]
        %v2204 = vld [vmem:[#allocation7 + $0x20] sm:$0xff]
        %v2205 = vld [vmem:[#allocation7 + $0x28] sm:$0xff]
        %v2206 = vld [vmem:[#allocation7 + $0x30] sm:$0xff]
        %v2207 = vld [vmem:[#allocation7 + $0x38] sm:$0xff]
        %v2208 = vld [vmem:[#allocation7 + $0x40] sm:$0xff]
        %v2209 = vld [vmem:[#allocation7 + $0x48] sm:$0xff]
        %v2210 = vld [vmem:[#allocation7 + $0x50] sm:$0xff]
        %v2211 = vld [vmem:[#allocation7 + $0x58] sm:$0xff]
        %v2212 = vld [vmem:[#allocation7 + $0x60] sm:$0xff]
        %v2213 = vld [vmem:[#allocation7 + $0x68] sm:$0xff]
        %v2214 = vld [vmem:[#allocation7 + $0x70] sm:$0xff]
        %v2215 = vld [vmem:[#allocation7 + $0x78] sm:$0xff]
        %v2216 = vld [vmem:[#allocation7 + $0x80] sm:$0xff]
        %v2217 = vld [vmem:[#allocation7 + $0x88] sm:$0xff]
        %v2218 = vld [vmem:[#allocation7 + $0x90] sm:$0xff]
        %v2219 = vld [vmem:[#allocation7 + $0x98] sm:$0xff]
        %v2220 = vld [vmem:[#allocation7 + $0xa0] sm:$0xff]
        %v2221 = vld [vmem:[#allocation7 + $0xa8] sm:$0xff]
        %v2222 = vld [vmem:[#allocation7 + $0xb0] sm:$0xff]
        %v2223 = vld [vmem:[#allocation7 + $0xb8] sm:$0xff]
        %v2224 = vld [vmem:[#allocation7 + $0xc0] sm:$0xff]
        %v2225 = vld [vmem:[#allocation7 + $0xc8] sm:$0xff]
        %v2226 = vld [vmem:[#allocation7 + $0xd0] sm:$0xff]
        %v2227 = vld [vmem:[#allocation7 + $0xd8] sm:$0xff]
        %v2228 = vld [vmem:[#allocation7 + $0xe0] sm:$0xff]
        %v2229 = vld [vmem:[#allocation7 + $0xe8] sm:$0xff]
        %v2230 = vld [vmem:[#allocation7 + $0xf0] sm:$0xff]
        %v2231 = vld [vmem:[#allocation7 + $0xf8] sm:$0xff]
        %v2232 = vld [vmem:[#allocation7 + $0x100] sm:$0xff]
        %v2233 = vld [vmem:[#allocation7 + $0x108] sm:$0xff]
        %v2234 = vld [vmem:[#allocation7 + $0x110] sm:$0xff]
        %v2235 = vld [vmem:[#allocation7 + $0x118] sm:$0xff]
        %v2236 = vld [vmem:[#allocation7 + $0x120] sm:$0xff]
        %v2237 = vld [vmem:[#allocation7 + $0x128] sm:$0xff]
        %v2238 = vld [vmem:[#allocation7 + $0x130] sm:$0xff]
        %v2239 = vld [vmem:[#allocation7 + $0x138] sm:$0xff]
        %v2240 = vld [vmem:[#allocation7 + $0x140] sm:$0xff]
        %v2241 = vld [vmem:[#allocation7 + $0x148] sm:$0xff]
        %v2242 = vld [vmem:[#allocation7 + $0x150] sm:$0xff]
        %v2243 = vld [vmem:[#allocation7 + $0x158] sm:$0xff]
        %v2244 = vld [vmem:[#allocation7 + $0x160] sm:$0xff]
        %v2245 = vld [vmem:[#allocation7 + $0x168] sm:$0xff]
        %v2246 = vld [vmem:[#allocation7 + $0x170] sm:$0xff]
        %v2247 = vld [vmem:[#allocation7 + $0x178] sm:$0xff]
        %v2248 = vld [vmem:[#allocation7 + $0x180] sm:$0xff]
        %v2249 = vld [vmem:[#allocation7 + $0x188] sm:$0xff]
        %v2250 = vld [vmem:[#allocation7 + $0x190] sm:$0xff]
        %v2251 = vld [vmem:[#allocation7 + $0x198] sm:$0xff]
        %v2252 = vld [vmem:[#allocation7 + $0x1a0] sm:$0xff]
        %v2253 = vld [vmem:[#allocation7 + $0x1a8] sm:$0xff]
        %v2254 = vld [vmem:[#allocation7 + $0x1b0] sm:$0xff]
        %v2255 = vld [vmem:[#allocation7 + $0x1b8] sm:$0xff]
        %v2256 = vld [vmem:[#allocation7 + $0x1c0] sm:$0xff]
        %v2257 = vld [vmem:[#allocation7 + $0x1c8] sm:$0xff]
        %v2258 = vld [vmem:[#allocation7 + $0x1d0] sm:$0xff]
        %v2259 = vld [vmem:[#allocation7 + $0x1d8] sm:$0xff]
        %v2260 = vld [vmem:[#allocation7 + $0x1e0] sm:$0xff]
        %v2261 = vld [vmem:[#allocation7 + $0x1e8] sm:$0xff]
        %v2262 = vld [vmem:[#allocation7 + $0x1f0] sm:$0xff]
        %v2263 = vld [vmem:[#allocation7 + $0x1f8] sm:$0xff]
        %v2264 = vld [vmem:[%s14] sm:$0x3]
        %v2266 = vlaneseq
        %v2267 = vshrl.u32 %v2266, 7
        %v2268 = vsub.s32 0, %v2267
        %v2269 = vrot.slane %v2264, %v2268
        %v2270 = vlaneseq
        %v2271 = vshrl.u32 %v2270, 7
        %v2272 = vsub.s32 1, %v2271
        %v2273 = vrot.slane %v2264, %v2272
        %2276 = vmatprep.subr.mxu0 %v2201
        %2277 = vmatpush1.msra.mxu0 %v2200
        %2278 = vmatprep.subr.mxu0 %v2203
        %2279 = vmatpush1.msra.mxu0 %v2202
        %2280 = vmatprep.subr.mxu0 %v2205
        %2281 = vmatpush1.msra.mxu0 %v2204
        %2282 = vmatprep.subr.mxu0 %v2207
        %2283 = vmatpush1.msra.mxu0 %v2206
        %2284 = vmatprep.subr.mxu0 %v2209
        %2285 = vmatpush1.msra.mxu0 %v2208
        %2286 = vmatprep.subr.mxu0 %v2211
        %2287 = vmatpush1.msra.mxu0 %v2210
        %2288 = vmatprep.subr.mxu0 %v2213
        %2289 = vmatpush1.msra.mxu0 %v2212
        %2290 = vmatprep.subr.mxu0 %v2215
        %2291 = vmatpush1.msra.mxu0 %v2214
        %2292 = vmatprep.subr.mxu0 %v2217
        %2293 = vmatpush1.msra.mxu0 %v2216
        %2294 = vmatprep.subr.mxu0 %v2219
        %2295 = vmatpush1.msra.mxu0 %v2218
        %2296 = vmatprep.subr.mxu0 %v2221
        %2297 = vmatpush1.msra.mxu0 %v2220
        %2298 = vmatprep.subr.mxu0 %v2223
        %2299 = vmatpush1.msra.mxu0 %v2222
        %2300 = vmatprep.subr.mxu0 %v2225
        %2301 = vmatpush1.msra.mxu0 %v2224
        %2302 = vmatprep.subr.mxu0 %v2227
        %2303 = vmatpush1.msra.mxu0 %v2226
        %2304 = vmatprep.subr.mxu0 %v2229
        %2305 = vmatpush1.msra.mxu0 %v2228
        %2306 = vmatprep.subr.mxu0 %v2231
        %2307 = vmatpush1.msra.mxu0 %v2230
        %2308 = vmatprep.subr.mxu0 %v2233
        %2309 = vmatpush1.msra.mxu0 %v2232
        %2310 = vmatprep.subr.mxu0 %v2235
        %2311 = vmatpush1.msra.mxu0 %v2234
        %2312 = vmatprep.subr.mxu0 %v2237
        %2313 = vmatpush1.msra.mxu0 %v2236
        %2314 = vmatprep.subr.mxu0 %v2239
        %2315 = vmatpush1.msra.mxu0 %v2238
        %2316 = vmatprep.subr.mxu0 %v2241
        %2317 = vmatpush1.msra.mxu0 %v2240
        %2318 = vmatprep.subr.mxu0 %v2243
        %2319 = vmatpush1.msra.mxu0 %v2242
        %2320 = vmatprep.subr.mxu0 %v2245
        %2321 = vmatpush1.msra.mxu0 %v2244
        %2322 = vmatprep.subr.mxu0 %v2247
        %2323 = vmatpush1.msra.mxu0 %v2246
        %2324 = vmatprep.subr.mxu0 %v2249
        %2325 = vmatpush1.msra.mxu0 %v2248
        %2326 = vmatprep.subr.mxu0 %v2251
        %2327 = vmatpush1.msra.mxu0 %v2250
        %2328 = vmatprep.subr.mxu0 %v2253
        %2329 = vmatpush1.msra.mxu0 %v2252
        %2330 = vmatprep.subr.mxu0 %v2255
        %2331 = vmatpush1.msra.mxu0 %v2254
        %2332 = vmatprep.subr.mxu0 %v2257
        %2333 = vmatpush1.msra.mxu0 %v2256
        %2334 = vmatprep.subr.mxu0 %v2259
        %2335 = vmatpush1.msra.mxu0 %v2258
        %2336 = vmatprep.subr.mxu0 %v2261
        %2337 = vmatpush1.msra.mxu0 %v2260
        %2338 = vmatprep.subr.mxu0 %v2263
        %2339 = vmatpush1.msra.mxu0 %v2262
        %2340 = vmatprep.mubr.f32.mxu0 %v2108
        %2341 = vmatmul.mubr.f32.gmra.mrb[0].mxu0 %v2106
        %v2342 = vpop.f32.mrb[0].mxu0
        %v2343 = vadd.f32 %v2269, %v2342
        %v2344 = vpop.f32.mrb[0].mxu0
        %v2345 = vadd.f32 %v2273, %v2344
        %2346 = vmatprep.mubr.f32.mxu0 %v2114
        %2347 = vmatmul.mubr.f32.gmra.mrb[0].mxu0 %v2112
        %v2348 = vpop.f32.mrb[0].mxu0
        %v2349 = vadd.f32 %v2269, %v2348
        %v2350 = vpop.f32.mrb[0].mxu0
        %v2351 = vadd.f32 %v2273, %v2350
        %2352 = vmatprep.mubr.f32.mxu0 %v2120
        %2353 = vmatmul.mubr.f32.gmra.mrb[0].mxu0 %v2118
        %v2354 = vpop.f32.mrb[0].mxu0
        %v2355 = vadd.f32 %v2269, %v2354
        %v2356 = vpop.f32.mrb[0].mxu0
        %v2357 = vadd.f32 %v2273, %v2356
        %2358 = vmatprep.mubr.f32.mxu0 %v2126
        %2359 = vmatmul.mubr.f32.gmra.mrb[0].mxu0 %v2124
        %v2360 = vpop.f32.mrb[0].mxu0
        %v2361 = vadd.f32 %v2269, %v2360
        %v2362 = vpop.f32.mrb[0].mxu0
        %v2363 = vadd.f32 %v2273, %v2362
        %2364 = vmatprep.mubr.f32.mxu0 %v2132
        %2365 = vmatmul.mubr.f32.gmra.mrb[0].mxu0 %v2130
        %v2366 = vpop.f32.mrb[0].mxu0
        %v2367 = vadd.f32 %v2269, %v2366
        %v2368 = vpop.f32.mrb[0].mxu0
        %v2369 = vadd.f32 %v2273, %v2368
        %2370 = vmatprep.mubr.f32.mxu0 %v2138
        %2371 = vmatmul.mubr.f32.gmra.mrb[0].mxu0 %v2136
        %v2372 = vpop.f32.mrb[0].mxu0
        %v2373 = vadd.f32 %v2269, %v2372
        %v2374 = vpop.f32.mrb[0].mxu0
        %v2375 = vadd.f32 %v2273, %v2374
        %2376 = vmatprep.mubr.f32.mxu0 %v2144
        %2377 = vmatmul.mubr.f32.gmra.mrb[0].mxu0 %v2142
        %v2378 = vpop.f32.mrb[0].mxu0
        %v2379 = vadd.f32 %v2269, %v2378
        %v2380 = vpop.f32.mrb[0].mxu0
        %v2381 = vadd.f32 %v2273, %v2380
        %2382 = vmatprep.mubr.f32.mxu0 %v2150
        %2383 = vmatmul.mubr.f32.gmra.mrb[0].mxu0 %v2148
        %v2384 = vpop.f32.mrb[0].mxu0
        %v2385 = vadd.f32 %v2269, %v2384
        %v2386 = vpop.f32.mrb[0].mxu0
        %v2387 = vadd.f32 %v2273, %v2386
        %2388 = vmatprep.mubr.f32.mxu0 %v2156
        %2389 = vmatmul.mubr.f32.gmra.mrb[0].mxu0 %v2154
        %v2390 = vpop.f32.mrb[0].mxu0
        %v2391 = vadd.f32 %v2269, %v2390
        %v2392 = vpop.f32.mrb[0].mxu0
        %v2393 = vadd.f32 %v2273, %v2392
        %2394 = vmatprep.mubr.f32.mxu0 %v2162
        %2395 = vmatmul.mubr.f32.gmra.mrb[0].mxu0 %v2160
        %v2396 = vpop.f32.mrb[0].mxu0
        %v2397 = vadd.f32 %v2269, %v2396
        %v2398 = vpop.f32.mrb[0].mxu0
        %v2399 = vadd.f32 %v2273, %v2398
        %2400 = vmatprep.mubr.f32.mxu0 %v2168
        %2401 = vmatmul.mubr.f32.gmra.mrb[0].mxu0 %v2166
        %v2402 = vpop.f32.mrb[0].mxu0
        %v2403 = vadd.f32 %v2269, %v2402
        %v2404 = vpop.f32.mrb[0].mxu0
        %v2405 = vadd.f32 %v2273, %v2404
        %2406 = vmatprep.mubr.f32.mxu0 %v2174
        %2407 = vmatmul.mubr.f32.gmra.mrb[0].mxu0 %v2172
        %v2408 = vpop.f32.mrb[0].mxu0
        %v2409 = vadd.f32 %v2269, %v2408
        %v2410 = vpop.f32.mrb[0].mxu0
        %v2411 = vadd.f32 %v2273, %v2410
        %2412 = vmatprep.mubr.f32.mxu0 %v2180
        %2413 = vmatmul.mubr.f32.gmra.mrb[0].mxu0 %v2178
        %v2414 = vpop.f32.mrb[0].mxu0
        %v2415 = vadd.f32 %v2269, %v2414
        %v2416 = vpop.f32.mrb[0].mxu0
        %v2417 = vadd.f32 %v2273, %v2416
        %2418 = vmatprep.mubr.f32.mxu0 %v2186
        %2419 = vmatmul.mubr.f32.gmra.mrb[0].mxu0 %v2184
        %v2420 = vpop.f32.mrb[0].mxu0
        %v2421 = vadd.f32 %v2269, %v2420
        %v2422 = vpop.f32.mrb[0].mxu0
        %v2423 = vadd.f32 %v2273, %v2422
        %2424 = vmatprep.mubr.f32.mxu0 %v2192
        %2425 = vmatmul.mubr.f32.gmra.mrb[0].mxu0 %v2190
        %v2426 = vpop.f32.mrb[0].mxu0
        %v2427 = vadd.f32 %v2269, %v2426
        %v2428 = vpop.f32.mrb[0].mxu0
        %v2429 = vadd.f32 %v2273, %v2428
        %2430 = vmatprep.mubr.f32.mxu0 %v2198
        %2431 = vmatmul.mubr.f32.gmra.mrb[0].mxu0 %v2196
        %v2432 = vpop.f32.mrb[0].mxu0
        %v2433 = vadd.f32 %v2269, %v2432
        %v2434 = vpop.f32.mrb[0].mxu0
        %v2435 = vadd.f32 %v2273, %v2434
        %2436 = vdwg.mxu0
        %v2437 = vmax.f32 %v2343, 0.0
        %v2438 = vmax.f32 %v2345, 0.0
        %v2439 = vmax.f32 %v2349, 0.0
        %v2440 = vmax.f32 %v2351, 0.0
        %v2441 = vmax.f32 %v2355, 0.0
        %v2442 = vmax.f32 %v2357, 0.0
        %v2443 = vmax.f32 %v2361, 0.0
        %v2444 = vmax.f32 %v2363, 0.0
        %v2445 = vmax.f32 %v2367, 0.0
        %v2446 = vmax.f32 %v2369, 0.0
        %v2447 = vmax.f32 %v2373, 0.0
        %v2448 = vmax.f32 %v2375, 0.0
        %v2449 = vmax.f32 %v2379, 0.0
        %v2450 = vmax.f32 %v2381, 0.0
        %v2451 = vmax.f32 %v2385, 0.0
        %v2452 = vmax.f32 %v2387, 0.0
        %v2453 = vmax.f32 %v2391, 0.0
        %v2454 = vmax.f32 %v2393, 0.0
        %v2455 = vmax.f32 %v2397, 0.0
        %v2456 = vmax.f32 %v2399, 0.0
        %v2457 = vmax.f32 %v2403, 0.0
        %v2458 = vmax.f32 %v2405, 0.0
        %v2459 = vmax.f32 %v2409, 0.0
        %v2460 = vmax.f32 %v2411, 0.0
        %v2461 = vmax.f32 %v2415, 0.0
        %v2462 = vmax.f32 %v2417, 0.0
        %v2463 = vmax.f32 %v2421, 0.0
        %v2464 = vmax.f32 %v2423, 0.0
        %v2465 = vmax.f32 %v2427, 0.0
        %v2466 = vmax.f32 %v2429, 0.0
        %v2467 = vmax.f32 %v2433, 0.0
        %v2468 = vmax.f32 %v2435, 0.0
        %2469 = vrot.lane.b32.xlu0 %v2437, 32
        %v2470 = vpop.permute.xlu0 %2469
        %2471 = vrot.lane.b32.xlu0 %v2439, 32
        %v2472 = vpop.permute.xlu0 %2471
        %2473 = vrot.lane.b32.xlu0 %v2441, 32
        %v2474 = vpop.permute.xlu0 %2473
        %2475 = vrot.lane.b32.xlu0 %v2443, 32
        %v2476 = vpop.permute.xlu0 %2475
        %2477 = vrot.lane.b32.xlu0 %v2445, 32
        %v2478 = vpop.permute.xlu0 %2477
        %2479 = vrot.lane.b32.xlu0 %v2447, 32
        %v2480 = vpop.permute.xlu0 %2479
        %2481 = vrot.lane.b32.xlu0 %v2449, 32
        %v2482 = vpop.permute.xlu0 %2481
        %2483 = vrot.lane.b32.xlu0 %v2451, 32
        %v2484 = vpop.permute.xlu0 %2483
        %2485 = vrot.lane.b32.xlu0 %v2453, 32
        %v2486 = vpop.permute.xlu0 %2485
        %2487 = vrot.lane.b32.xlu0 %v2455, 32
        %v2488 = vpop.permute.xlu0 %2487
        %2489 = vrot.lane.b32.xlu0 %v2457, 32
        %v2490 = vpop.permute.xlu0 %2489
        %2491 = vrot.lane.b32.xlu0 %v2459, 32
        %v2492 = vpop.permute.xlu0 %2491
        %2493 = vrot.lane.b32.xlu0 %v2461, 32
        %v2494 = vpop.permute.xlu0 %2493
        %2495 = vrot.lane.b32.xlu0 %v2463, 32
        %v2496 = vpop.permute.xlu0 %2495
        %2497 = vrot.lane.b32.xlu0 %v2465, 32
        %v2498 = vpop.permute.xlu0 %2497
        %2499 = vrot.lane.b32.xlu0 %v2467, 32
        %v2500 = vpop.permute.xlu0 %2499
        %2501 = vrot.lane.b32.xlu0 %v2438, 32
        %v2502 = vpop.permute.xlu0 %2501
        %2503 = vrot.lane.b32.xlu0 %v2440, 32
        %v2504 = vpop.permute.xlu0 %2503
        %2505 = vrot.lane.b32.xlu0 %v2442, 32
        %v2506 = vpop.permute.xlu0 %2505
        %2507 = vrot.lane.b32.xlu0 %v2444, 32
        %v2508 = vpop.permute.xlu0 %2507
        %2509 = vrot.lane.b32.xlu0 %v2446, 32
        %v2510 = vpop.permute.xlu0 %2509
        %2511 = vrot.lane.b32.xlu0 %v2448, 32
        %v2512 = vpop.permute.xlu0 %2511
        %2513 = vrot.lane.b32.xlu0 %v2450, 32
        %v2514 = vpop.permute.xlu0 %2513
        %2515 = vrot.lane.b32.xlu0 %v2452, 32
        %v2516 = vpop.permute.xlu0 %2515
        %2517 = vrot.lane.b32.xlu0 %v2454, 32
        %v2518 = vpop.permute.xlu0 %2517
        %2519 = vrot.lane.b32.xlu0 %v2456, 32
        %v2520 = vpop.permute.xlu0 %2519
        %2521 = vrot.lane.b32.xlu0 %v2458, 32
        %v2522 = vpop.permute.xlu0 %2521
        %2523 = vrot.lane.b32.xlu0 %v2460, 32
        %v2524 = vpop.permute.xlu0 %2523
        %2525 = vrot.lane.b32.xlu0 %v2462, 32
        %v2526 = vpop.permute.xlu0 %2525
        %2527 = vrot.lane.b32.xlu0 %v2464, 32
        %v2528 = vpop.permute.xlu0 %2527
        %2529 = vrot.lane.b32.xlu0 %v2466, 32
        %v2530 = vpop.permute.xlu0 %2529
        %2531 = vrot.lane.b32.xlu0 %v2468, 32
        %v2532 = vpop.permute.xlu0 %2531
        %v2533 = vlaneseq
        %v2534 = vand.u32 %v2533, 127
        %vm2535 = vcmp.lt.s32.totalorder %v2534, 32
        %v2536 = vsel %vm2535, %v2470, %v2502
        %v2537 = vsel %vm2535, %v2472, %v2504
        %v2538 = vsel %vm2535, %v2474, %v2506
        %v2539 = vsel %vm2535, %v2476, %v2508
        %v2540 = vsel %vm2535, %v2478, %v2510
        %v2541 = vsel %vm2535, %v2480, %v2512
        %v2542 = vsel %vm2535, %v2482, %v2514
        %v2543 = vsel %vm2535, %v2484, %v2516
        %v2544 = vsel %vm2535, %v2486, %v2518
        %v2545 = vsel %vm2535, %v2488, %v2520
        %v2546 = vsel %vm2535, %v2490, %v2522
        %v2547 = vsel %vm2535, %v2492, %v2524
        %v2548 = vsel %vm2535, %v2494, %v2526
        %v2549 = vsel %vm2535, %v2496, %v2528
        %v2550 = vsel %vm2535, %v2498, %v2530
        %v2551 = vsel %vm2535, %v2500, %v2532
        %v2552 = vsel %vm2535, %v2502, %v2470
        %v2553 = vsel %vm2535, %v2504, %v2472
        %v2554 = vsel %vm2535, %v2506, %v2474
        %v2555 = vsel %vm2535, %v2508, %v2476
        %v2556 = vsel %vm2535, %v2510, %v2478
        %v2557 = vsel %vm2535, %v2512, %v2480
        %v2558 = vsel %vm2535, %v2514, %v2482
        %v2559 = vsel %vm2535, %v2516, %v2484
        %v2560 = vsel %vm2535, %v2518, %v2486
        %v2561 = vsel %vm2535, %v2520, %v2488
        %v2562 = vsel %vm2535, %v2522, %v2490
        %v2563 = vsel %vm2535, %v2524, %v2492
        %v2564 = vsel %vm2535, %v2526, %v2494
        %v2565 = vsel %vm2535, %v2528, %v2496
        %v2566 = vsel %vm2535, %v2530, %v2498
        %v2567 = vsel %vm2535, %v2532, %v2500
        %v2568 = vmax.f32 %v2437, %v2552
        %v2569 = vmax.f32 %v2438, %v2536
        %v2570 = vmax.f32 %v2439, %v2553
        %v2571 = vmax.f32 %v2440, %v2537
        %v2572 = vmax.f32 %v2441, %v2554
        %v2573 = vmax.f32 %v2442, %v2538
        %v2574 = vmax.f32 %v2443, %v2555
        %v2575 = vmax.f32 %v2444, %v2539
        %v2576 = vmax.f32 %v2445, %v2556
        %v2577 = vmax.f32 %v2446, %v2540
        %v2578 = vmax.f32 %v2447, %v2557
        %v2579 = vmax.f32 %v2448, %v2541
        %v2580 = vmax.f32 %v2449, %v2558
        %v2581 = vmax.f32 %v2450, %v2542
        %v2582 = vmax.f32 %v2451, %v2559
        %v2583 = vmax.f32 %v2452, %v2543
        %v2584 = vmax.f32 %v2453, %v2560
        %v2585 = vmax.f32 %v2454, %v2544
        %v2586 = vmax.f32 %v2455, %v2561
        %v2587 = vmax.f32 %v2456, %v2545
        %v2588 = vmax.f32 %v2457, %v2562
        %v2589 = vmax.f32 %v2458, %v2546
        %v2590 = vmax.f32 %v2459, %v2563
        %v2591 = vmax.f32 %v2460, %v2547
        %v2592 = vmax.f32 %v2461, %v2564
        %v2593 = vmax.f32 %v2462, %v2548
        %v2594 = vmax.f32 %v2463, %v2565
        %v2595 = vmax.f32 %v2464, %v2549
        %v2596 = vmax.f32 %v2465, %v2566
        %v2597 = vmax.f32 %v2466, %v2550
        %v2598 = vmax.f32 %v2467, %v2567
        %v2599 = vmax.f32 %v2468, %v2551
        %2600 = vrot.lane.b32.xlu0 %v2568, 64
        %v2601 = vpop.permute.xlu0 %2600
        %2602 = vrot.lane.b32.xlu0 %v2570, 64
        %v2603 = vpop.permute.xlu0 %2602
        %2604 = vrot.lane.b32.xlu0 %v2572, 64
        %v2605 = vpop.permute.xlu0 %2604
        %2606 = vrot.lane.b32.xlu0 %v2574, 64
        %v2607 = vpop.permute.xlu0 %2606
        %2608 = vrot.lane.b32.xlu0 %v2576, 64
        %v2609 = vpop.permute.xlu0 %2608
        %2610 = vrot.lane.b32.xlu0 %v2578, 64
        %v2611 = vpop.permute.xlu0 %2610
        %2612 = vrot.lane.b32.xlu0 %v2580, 64
        %v2613 = vpop.permute.xlu0 %2612
        %2614 = vrot.lane.b32.xlu0 %v2582, 64
        %v2615 = vpop.permute.xlu0 %2614
        %2616 = vrot.lane.b32.xlu0 %v2584, 64
        %v2617 = vpop.permute.xlu0 %2616
        %2618 = vrot.lane.b32.xlu0 %v2586, 64
        %v2619 = vpop.permute.xlu0 %2618
        %2620 = vrot.lane.b32.xlu0 %v2588, 64
        %v2621 = vpop.permute.xlu0 %2620
        %2622 = vrot.lane.b32.xlu0 %v2590, 64
        %v2623 = vpop.permute.xlu0 %2622
        %2624 = vrot.lane.b32.xlu0 %v2592, 64
        %v2625 = vpop.permute.xlu0 %2624
        %2626 = vrot.lane.b32.xlu0 %v2594, 64
        %v2627 = vpop.permute.xlu0 %2626
        %2628 = vrot.lane.b32.xlu0 %v2596, 64
        %v2629 = vpop.permute.xlu0 %2628
        %2630 = vrot.lane.b32.xlu0 %v2598, 64
        %v2631 = vpop.permute.xlu0 %2630
        %2632 = vrot.lane.b32.xlu0 %v2569, 64
        %v2633 = vpop.permute.xlu0 %2632
        %2634 = vrot.lane.b32.xlu0 %v2571, 64
        %v2635 = vpop.permute.xlu0 %2634
        %2636 = vrot.lane.b32.xlu0 %v2573, 64
        %v2637 = vpop.permute.xlu0 %2636
        %2638 = vrot.lane.b32.xlu0 %v2575, 64
        %v2639 = vpop.permute.xlu0 %2638
        %2640 = vrot.lane.b32.xlu0 %v2577, 64
        %v2641 = vpop.permute.xlu0 %2640
        %2642 = vrot.lane.b32.xlu0 %v2579, 64
        %v2643 = vpop.permute.xlu0 %2642
        %2644 = vrot.lane.b32.xlu0 %v2581, 64
        %v2645 = vpop.permute.xlu0 %2644
        %2646 = vrot.lane.b32.xlu0 %v2583, 64
        %v2647 = vpop.permute.xlu0 %2646
        %2648 = vrot.lane.b32.xlu0 %v2585, 64
        %v2649 = vpop.permute.xlu0 %2648
        %2650 = vrot.lane.b32.xlu0 %v2587, 64
        %v2651 = vpop.permute.xlu0 %2650
        %2652 = vrot.lane.b32.xlu0 %v2589, 64
        %v2653 = vpop.permute.xlu0 %2652
        %2654 = vrot.lane.b32.xlu0 %v2591, 64
        %v2655 = vpop.permute.xlu0 %2654
        %2656 = vrot.lane.b32.xlu0 %v2593, 64
        %v2657 = vpop.permute.xlu0 %2656
        %2658 = vrot.lane.b32.xlu0 %v2595, 64
        %v2659 = vpop.permute.xlu0 %2658
        %2660 = vrot.lane.b32.xlu0 %v2597, 64
        %v2661 = vpop.permute.xlu0 %2660
        %2662 = vrot.lane.b32.xlu0 %v2599, 64
        %v2663 = vpop.permute.xlu0 %2662
        %vm2664 = vcmp.lt.s32.totalorder %v2534, 64
        %v2665 = vsel %vm2664, %v2601, %v2633
        %v2666 = vsel %vm2664, %v2603, %v2635
        %v2667 = vsel %vm2664, %v2605, %v2637
        %v2668 = vsel %vm2664, %v2607, %v2639
        %v2669 = vsel %vm2664, %v2609, %v2641
        %v2670 = vsel %vm2664, %v2611, %v2643
        %v2671 = vsel %vm2664, %v2613, %v2645
        %v2672 = vsel %vm2664, %v2615, %v2647
        %v2673 = vsel %vm2664, %v2617, %v2649
        %v2674 = vsel %vm2664, %v2619, %v2651
        %v2675 = vsel %vm2664, %v2621, %v2653
        %v2676 = vsel %vm2664, %v2623, %v2655
        %v2677 = vsel %vm2664, %v2625, %v2657
        %v2678 = vsel %vm2664, %v2627, %v2659
        %v2679 = vsel %vm2664, %v2629, %v2661
        %v2680 = vsel %vm2664, %v2631, %v2663
        %v2681 = vsel %vm2664, %v2633, %v2601
        %v2682 = vsel %vm2664, %v2635, %v2603
        %v2683 = vsel %vm2664, %v2637, %v2605
        %v2684 = vsel %vm2664, %v2639, %v2607
        %v2685 = vsel %vm2664, %v2641, %v2609
        %v2686 = vsel %vm2664, %v2643, %v2611
        %v2687 = vsel %vm2664, %v2645, %v2613
        %v2688 = vsel %vm2664, %v2647, %v2615
        %v2689 = vsel %vm2664, %v2649, %v2617
        %v2690 = vsel %vm2664, %v2651, %v2619
        %v2691 = vsel %vm2664, %v2653, %v2621
        %v2692 = vsel %vm2664, %v2655, %v2623
        %v2693 = vsel %vm2664, %v2657, %v2625
        %v2694 = vsel %vm2664, %v2659, %v2627
        %v2695 = vsel %vm2664, %v2661, %v2629
        %v2696 = vsel %vm2664, %v2663, %v2631
        %v2697 = vmax.f32 %v2568, %v2681
        %v2698 = vmax.f32 %v2569, %v2665
        %v2699 = vmax.f32 %v2570, %v2682
        %v2700 = vmax.f32 %v2571, %v2666
        %v2701 = vmax.f32 %v2572, %v2683
        %v2702 = vmax.f32 %v2573, %v2667
        %v2703 = vmax.f32 %v2574, %v2684
        %v2704 = vmax.f32 %v2575, %v2668
        %v2705 = vmax.f32 %v2576, %v2685
        %v2706 = vmax.f32 %v2577, %v2669
        %v2707 = vmax.f32 %v2578, %v2686
        %v2708 = vmax.f32 %v2579, %v2670
        %v2709 = vmax.f32 %v2580, %v2687
        %v2710 = vmax.f32 %v2581, %v2671
        %v2711 = vmax.f32 %v2582, %v2688
        %v2712 = vmax.f32 %v2583, %v2672
        %v2713 = vmax.f32 %v2584, %v2689
        %v2714 = vmax.f32 %v2585, %v2673
        %v2715 = vmax.f32 %v2586, %v2690
        %v2716 = vmax.f32 %v2587, %v2674
        %v2717 = vmax.f32 %v2588, %v2691
        %v2718 = vmax.f32 %v2589, %v2675
        %v2719 = vmax.f32 %v2590, %v2692
        %v2720 = vmax.f32 %v2591, %v2676
        %v2721 = vmax.f32 %v2592, %v2693
        %v2722 = vmax.f32 %v2593, %v2677
        %v2723 = vmax.f32 %v2594, %v2694
        %v2724 = vmax.f32 %v2595, %v2678
        %v2725 = vmax.f32 %v2596, %v2695
        %v2726 = vmax.f32 %v2597, %v2679
        %v2727 = vmax.f32 %v2598, %v2696
        %v2728 = vmax.f32 %v2599, %v2680
        %v2729 = vmax.f32 %v2697, %v2698
        %v2730 = vmax.f32 %v2699, %v2700
        %v2731 = vmax.f32 %v2701, %v2702
        %v2732 = vmax.f32 %v2703, %v2704
        %v2733 = vmax.f32 %v2705, %v2706
        %v2734 = vmax.f32 %v2707, %v2708
        %v2735 = vmax.f32 %v2709, %v2710
        %v2736 = vmax.f32 %v2711, %v2712
        %v2737 = vmax.f32 %v2713, %v2714
        %v2738 = vmax.f32 %v2715, %v2716
        %v2739 = vmax.f32 %v2717, %v2718
        %v2740 = vmax.f32 %v2719, %v2720
        %v2741 = vmax.f32 %v2721, %v2722
        %v2742 = vmax.f32 %v2723, %v2724
        %v2743 = vmax.f32 %v2725, %v2726
        %v2744 = vmax.f32 %v2727, %v2728
        %v2745 = vsub.f32 %v2437, %v2729
        %v2746 = vsub.f32 %v2438, %v2729
        %v2747 = vsub.f32 %v2439, %v2730
        %v2748 = vsub.f32 %v2440, %v2730
        %v2749 = vsub.f32 %v2441, %v2731
        %v2750 = vsub.f32 %v2442, %v2731
        %v2751 = vsub.f32 %v2443, %v2732
        %v2752 = vsub.f32 %v2444, %v2732
        %v2753 = vsub.f32 %v2445, %v2733
        %v2754 = vsub.f32 %v2446, %v2733
        %v2755 = vsub.f32 %v2447, %v2734
        %v2756 = vsub.f32 %v2448, %v2734
        %v2757 = vsub.f32 %v2449, %v2735
        %v2758 = vsub.f32 %v2450, %v2735
        %v2759 = vsub.f32 %v2451, %v2736
        %v2760 = vsub.f32 %v2452, %v2736
        %v2761 = vsub.f32 %v2453, %v2737
        %v2762 = vsub.f32 %v2454, %v2737
        %v2763 = vsub.f32 %v2455, %v2738
        %v2764 = vsub.f32 %v2456, %v2738
        %v2765 = vsub.f32 %v2457, %v2739
        %v2766 = vsub.f32 %v2458, %v2739
        %v2767 = vsub.f32 %v2459, %v2740
        %v2768 = vsub.f32 %v2460, %v2740
        %v2769 = vsub.f32 %v2461, %v2741
        %v2770 = vsub.f32 %v2462, %v2741
        %v2771 = vsub.f32 %v2463, %v2742
        %v2772 = vsub.f32 %v2464, %v2742
        %v2773 = vsub.f32 %v2465, %v2743
        %v2774 = vsub.f32 %v2466, %v2743
        %v2775 = vsub.f32 %v2467, %v2744
        %v2776 = vsub.f32 %v2468, %v2744
        %v2777 = vmul.f32 %v2745, 1.442695
        %v2778 = vpow.pop %v2777
        %v2779 = vmul.f32 %v2746, 1.442695
        %v2780 = vpow.pop %v2779
        %v2781 = vmul.f32 %v2747, 1.442695
        %v2782 = vpow.pop %v2781
        %v2783 = vmul.f32 %v2748, 1.442695
        %v2784 = vpow.pop %v2783
        %v2785 = vmul.f32 %v2749, 1.442695
        %v2786 = vpow.pop %v2785
        %v2787 = vmul.f32 %v2750, 1.442695
        %v2788 = vpow.pop %v2787
        %v2789 = vmul.f32 %v2751, 1.442695
        %v2790 = vpow.pop %v2789
        %v2791 = vmul.f32 %v2752, 1.442695
        %v2792 = vpow.pop %v2791
        %v2793 = vmul.f32 %v2753, 1.442695
        %v2794 = vpow.pop %v2793
        %v2795 = vmul.f32 %v2754, 1.442695
        %v2796 = vpow.pop %v2795
        %v2797 = vmul.f32 %v2755, 1.442695
        %v2798 = vpow.pop %v2797
        %v2799 = vmul.f32 %v2756, 1.442695
        %v2800 = vpow.pop %v2799
        %v2801 = vmul.f32 %v2757, 1.442695
        %v2802 = vpow.pop %v2801
        %v2803 = vmul.f32 %v2758, 1.442695
        %v2804 = vpow.pop %v2803
        %v2805 = vmul.f32 %v2759, 1.442695
        %v2806 = vpow.pop %v2805
        %v2807 = vmul.f32 %v2760, 1.442695
        %v2808 = vpow.pop %v2807
        %v2809 = vmul.f32 %v2761, 1.442695
        %v2810 = vpow.pop %v2809
        %v2811 = vmul.f32 %v2762, 1.442695
        %v2812 = vpow.pop %v2811
        %v2813 = vmul.f32 %v2763, 1.442695
        %v2814 = vpow.pop %v2813
        %v2815 = vmul.f32 %v2764, 1.442695
        %v2816 = vpow.pop %v2815
        %v2817 = vmul.f32 %v2765, 1.442695
        %v2818 = vpow.pop %v2817
        %v2819 = vmul.f32 %v2766, 1.442695
        %v2820 = vpow.pop %v2819
        %v2821 = vmul.f32 %v2767, 1.442695
        %v2822 = vpow.pop %v2821
        %v2823 = vmul.f32 %v2768, 1.442695
        %v2824 = vpow.pop %v2823
        %v2825 = vmul.f32 %v2769, 1.442695
        %v2826 = vpow.pop %v2825
        %v2827 = vmul.f32 %v2770, 1.442695
        %v2828 = vpow.pop %v2827
        %v2829 = vmul.f32 %v2771, 1.442695
        %v2830 = vpow.pop %v2829
        %v2831 = vmul.f32 %v2772, 1.442695
        %v2832 = vpow.pop %v2831
        %v2833 = vmul.f32 %v2773, 1.442695
        %v2834 = vpow.pop %v2833
        %v2835 = vmul.f32 %v2774, 1.442695
        %v2836 = vpow.pop %v2835
        %v2837 = vmul.f32 %v2775, 1.442695
        %v2838 = vpow.pop %v2837
        %v2839 = vmul.f32 %v2776, 1.442695
        %v2840 = vpow.pop %v2839
        %2841 = vrot.lane.b32.xlu0 %v2778, 32
        %v2842 = vpop.permute.xlu0 %2841
        %2843 = vrot.lane.b32.xlu0 %v2782, 32
        %v2844 = vpop.permute.xlu0 %2843
        %2845 = vrot.lane.b32.xlu0 %v2786, 32
        %v2846 = vpop.permute.xlu0 %2845
        %2847 = vrot.lane.b32.xlu0 %v2790, 32
        %v2848 = vpop.permute.xlu0 %2847
        %2849 = vrot.lane.b32.xlu0 %v2794, 32
        %v2850 = vpop.permute.xlu0 %2849
        %2851 = vrot.lane.b32.xlu0 %v2798, 32
        %v2852 = vpop.permute.xlu0 %2851
        %2853 = vrot.lane.b32.xlu0 %v2802, 32
        %v2854 = vpop.permute.xlu0 %2853
        %2855 = vrot.lane.b32.xlu0 %v2806, 32
        %v2856 = vpop.permute.xlu0 %2855
        %2857 = vrot.lane.b32.xlu0 %v2810, 32
        %v2858 = vpop.permute.xlu0 %2857
        %2859 = vrot.lane.b32.xlu0 %v2814, 32
        %v2860 = vpop.permute.xlu0 %2859
        %2861 = vrot.lane.b32.xlu0 %v2818, 32
        %v2862 = vpop.permute.xlu0 %2861
        %2863 = vrot.lane.b32.xlu0 %v2822, 32
        %v2864 = vpop.permute.xlu0 %2863
        %2865 = vrot.lane.b32.xlu0 %v2826, 32
        %v2866 = vpop.permute.xlu0 %2865
        %2867 = vrot.lane.b32.xlu0 %v2830, 32
        %v2868 = vpop.permute.xlu0 %2867
        %2869 = vrot.lane.b32.xlu0 %v2834, 32
        %v2870 = vpop.permute.xlu0 %2869
        %2871 = vrot.lane.b32.xlu0 %v2838, 32
        %v2872 = vpop.permute.xlu0 %2871
        %2873 = vrot.lane.b32.xlu0 %v2780, 32
        %v2874 = vpop.permute.xlu0 %2873
        %2875 = vrot.lane.b32.xlu0 %v2784, 32
        %v2876 = vpop.permute.xlu0 %2875
        %2877 = vrot.lane.b32.xlu0 %v2788, 32
        %v2878 = vpop.permute.xlu0 %2877
        %2879 = vrot.lane.b32.xlu0 %v2792, 32
        %v2880 = vpop.permute.xlu0 %2879
        %2881 = vrot.lane.b32.xlu0 %v2796, 32
        %v2882 = vpop.permute.xlu0 %2881
        %2883 = vrot.lane.b32.xlu0 %v2800, 32
        %v2884 = vpop.permute.xlu0 %2883
        %2885 = vrot.lane.b32.xlu0 %v2804, 32
        %v2886 = vpop.permute.xlu0 %2885
        %2887 = vrot.lane.b32.xlu0 %v2808, 32
        %v2888 = vpop.permute.xlu0 %2887
        %2889 = vrot.lane.b32.xlu0 %v2812, 32
        %v2890 = vpop.permute.xlu0 %2889
        %2891 = vrot.lane.b32.xlu0 %v2816, 32
        %v2892 = vpop.permute.xlu0 %2891
        %2893 = vrot.lane.b32.xlu0 %v2820, 32
        %v2894 = vpop.permute.xlu0 %2893
        %2895 = vrot.lane.b32.xlu0 %v2824, 32
        %v2896 = vpop.permute.xlu0 %2895
        %2897 = vrot.lane.b32.xlu0 %v2828, 32
        %v2898 = vpop.permute.xlu0 %2897
        %2899 = vrot.lane.b32.xlu0 %v2832, 32
        %v2900 = vpop.permute.xlu0 %2899
        %2901 = vrot.lane.b32.xlu0 %v2836, 32
        %v2902 = vpop.permute.xlu0 %2901
        %2903 = vrot.lane.b32.xlu0 %v2840, 32
        %v2904 = vpop.permute.xlu0 %2903
        %v2905 = vsel %vm2535, %v2842, %v2874
        %v2906 = vsel %vm2535, %v2844, %v2876
        %v2907 = vsel %vm2535, %v2846, %v2878
        %v2908 = vsel %vm2535, %v2848, %v2880
        %v2909 = vsel %vm2535, %v2850, %v2882
        %v2910 = vsel %vm2535, %v2852, %v2884
        %v2911 = vsel %vm2535, %v2854, %v2886
        %v2912 = vsel %vm2535, %v2856, %v2888
        %v2913 = vsel %vm2535, %v2858, %v2890
        %v2914 = vsel %vm2535, %v2860, %v2892
        %v2915 = vsel %vm2535, %v2862, %v2894
        %v2916 = vsel %vm2535, %v2864, %v2896
        %v2917 = vsel %vm2535, %v2866, %v2898
        %v2918 = vsel %vm2535, %v2868, %v2900
        %v2919 = vsel %vm2535, %v2870, %v2902
        %v2920 = vsel %vm2535, %v2872, %v2904
        %v2921 = vsel %vm2535, %v2874, %v2842
        %v2922 = vsel %vm2535, %v2876, %v2844
        %v2923 = vsel %vm2535, %v2878, %v2846
        %v2924 = vsel %vm2535, %v2880, %v2848
        %v2925 = vsel %vm2535, %v2882, %v2850
        %v2926 = vsel %vm2535, %v2884, %v2852
        %v2927 = vsel %vm2535, %v2886, %v2854
        %v2928 = vsel %vm2535, %v2888, %v2856
        %v2929 = vsel %vm2535, %v2890, %v2858
        %v2930 = vsel %vm2535, %v2892, %v2860
        %v2931 = vsel %vm2535, %v2894, %v2862
        %v2932 = vsel %vm2535, %v2896, %v2864
        %v2933 = vsel %vm2535, %v2898, %v2866
        %v2934 = vsel %vm2535, %v2900, %v2868
        %v2935 = vsel %vm2535, %v2902, %v2870
        %v2936 = vsel %vm2535, %v2904, %v2872
        %v2937 = vadd.f32 %v2778, %v2921
        %v2938 = vadd.f32 %v2780, %v2905
        %v2939 = vadd.f32 %v2782, %v2922
        %v2940 = vadd.f32 %v2784, %v2906
        %v2941 = vadd.f32 %v2786, %v2923
        %v2942 = vadd.f32 %v2788, %v2907
        %v2943 = vadd.f32 %v2790, %v2924
        %v2944 = vadd.f32 %v2792, %v2908
        %v2945 = vadd.f32 %v2794, %v2925
        %v2946 = vadd.f32 %v2796, %v2909
        %v2947 = vadd.f32 %v2798, %v2926
        %v2948 = vadd.f32 %v2800, %v2910
        %v2949 = vadd.f32 %v2802, %v2927
        %v2950 = vadd.f32 %v2804, %v2911
        %v2951 = vadd.f32 %v2806, %v2928
        %v2952 = vadd.f32 %v2808, %v2912
        %v2953 = vadd.f32 %v2810, %v2929
        %v2954 = vadd.f32 %v2812, %v2913
        %v2955 = vadd.f32 %v2814, %v2930
        %v2956 = vadd.f32 %v2816, %v2914
        %v2957 = vadd.f32 %v2818, %v2931
        %v2958 = vadd.f32 %v2820, %v2915
        %v2959 = vadd.f32 %v2822, %v2932
        %v2960 = vadd.f32 %v2824, %v2916
        %v2961 = vadd.f32 %v2826, %v2933
        %v2962 = vadd.f32 %v2828, %v2917
        %v2963 = vadd.f32 %v2830, %v2934
        %v2964 = vadd.f32 %v2832, %v2918
        %v2965 = vadd.f32 %v2834, %v2935
        %v2966 = vadd.f32 %v2836, %v2919
        %v2967 = vadd.f32 %v2838, %v2936
        %v2968 = vadd.f32 %v2840, %v2920
        %2969 = vrot.lane.b32.xlu0 %v2937, 64
        %v2970 = vpop.permute.xlu0 %2969
        %2971 = vrot.lane.b32.xlu0 %v2939, 64
        %v2972 = vpop.permute.xlu0 %2971
        %2973 = vrot.lane.b32.xlu0 %v2941, 64
        %v2974 = vpop.permute.xlu0 %2973
        %2975 = vrot.lane.b32.xlu0 %v2943, 64
        %v2976 = vpop.permute.xlu0 %2975
        %2977 = vrot.lane.b32.xlu0 %v2945, 64
        %v2978 = vpop.permute.xlu0 %2977
        %2979 = vrot.lane.b32.xlu0 %v2947, 64
        %v2980 = vpop.permute.xlu0 %2979
        %2981 = vrot.lane.b32.xlu0 %v2949, 64
        %v2982 = vpop.permute.xlu0 %2981
        %2983 = vrot.lane.b32.xlu0 %v2951, 64
        %v2984 = vpop.permute.xlu0 %2983
        %2985 = vrot.lane.b32.xlu0 %v2953, 64
        %v2986 = vpop.permute.xlu0 %2985
        %2987 = vrot.lane.b32.xlu0 %v2955, 64
        %v2988 = vpop.permute.xlu0 %2987
        %2989 = vrot.lane.b32.xlu0 %v2957, 64
        %v2990 = vpop.permute.xlu0 %2989
        %2991 = vrot.lane.b32.xlu0 %v2959, 64
        %v2992 = vpop.permute.xlu0 %2991
        %2993 = vrot.lane.b32.xlu0 %v2961, 64
        %v2994 = vpop.permute.xlu0 %2993
        %2995 = vrot.lane.b32.xlu0 %v2963, 64
        %v2996 = vpop.permute.xlu0 %2995
        %2997 = vrot.lane.b32.xlu0 %v2965, 64
        %v2998 = vpop.permute.xlu0 %2997
        %2999 = vrot.lane.b32.xlu0 %v2967, 64
        %v3000 = vpop.permute.xlu0 %2999
        %3001 = vrot.lane.b32.xlu0 %v2938, 64
        %v3002 = vpop.permute.xlu0 %3001
        %3003 = vrot.lane.b32.xlu0 %v2940, 64
        %v3004 = vpop.permute.xlu0 %3003
        %3005 = vrot.lane.b32.xlu0 %v2942, 64
        %v3006 = vpop.permute.xlu0 %3005
        %3007 = vrot.lane.b32.xlu0 %v2944, 64
        %v3008 = vpop.permute.xlu0 %3007
        %3009 = vrot.lane.b32.xlu0 %v2946, 64
        %v3010 = vpop.permute.xlu0 %3009
        %3011 = vrot.lane.b32.xlu0 %v2948, 64
        %v3012 = vpop.permute.xlu0 %3011
        %3013 = vrot.lane.b32.xlu0 %v2950, 64
        %v3014 = vpop.permute.xlu0 %3013
        %3015 = vrot.lane.b32.xlu0 %v2952, 64
        %v3016 = vpop.permute.xlu0 %3015
        %3017 = vrot.lane.b32.xlu0 %v2954, 64
        %v3018 = vpop.permute.xlu0 %3017
        %3019 = vrot.lane.b32.xlu0 %v2956, 64
        %v3020 = vpop.permute.xlu0 %3019
        %3021 = vrot.lane.b32.xlu0 %v2958, 64
        %v3022 = vpop.permute.xlu0 %3021
        %3023 = vrot.lane.b32.xlu0 %v2960, 64
        %v3024 = vpop.permute.xlu0 %3023
        %3025 = vrot.lane.b32.xlu0 %v2962, 64
        %v3026 = vpop.permute.xlu0 %3025
        %3027 = vrot.lane.b32.xlu0 %v2964, 64
        %v3028 = vpop.permute.xlu0 %3027
        %3029 = vrot.lane.b32.xlu0 %v2966, 64
        %v3030 = vpop.permute.xlu0 %3029
        %3031 = vrot.lane.b32.xlu0 %v2968, 64
        %v3032 = vpop.permute.xlu0 %3031
        %v3033 = vsel %vm2664, %v2970, %v3002
        %v3034 = vsel %vm2664, %v2972, %v3004
        %v3035 = vsel %vm2664, %v2974, %v3006
        %v3036 = vsel %vm2664, %v2976, %v3008
        %v3037 = vsel %vm2664, %v2978, %v3010
        %v3038 = vsel %vm2664, %v2980, %v3012
        %v3039 = vsel %vm2664, %v2982, %v3014
        %v3040 = vsel %vm2664, %v2984, %v3016
        %v3041 = vsel %vm2664, %v2986, %v3018
        %v3042 = vsel %vm2664, %v2988, %v3020
        %v3043 = vsel %vm2664, %v2990, %v3022
        %v3044 = vsel %vm2664, %v2992, %v3024
        %v3045 = vsel %vm2664, %v2994, %v3026
        %v3046 = vsel %vm2664, %v2996, %v3028
        %v3047 = vsel %vm2664, %v2998, %v3030
        %v3048 = vsel %vm2664, %v3000, %v3032
        %v3049 = vsel %vm2664, %v3002, %v2970
        %v3050 = vsel %vm2664, %v3004, %v2972
        %v3051 = vsel %vm2664, %v3006, %v2974
        %v3052 = vsel %vm2664, %v3008, %v2976
        %v3053 = vsel %vm2664, %v3010, %v2978
        %v3054 = vsel %vm2664, %v3012, %v2980
        %v3055 = vsel %vm2664, %v3014, %v2982
        %v3056 = vsel %vm2664, %v3016, %v2984
        %v3057 = vsel %vm2664, %v3018, %v2986
        %v3058 = vsel %vm2664, %v3020, %v2988
        %v3059 = vsel %vm2664, %v3022, %v2990
        %v3060 = vsel %vm2664, %v3024, %v2992
        %v3061 = vsel %vm2664, %v3026, %v2994
        %v3062 = vsel %vm2664, %v3028, %v2996
        %v3063 = vsel %vm2664, %v3030, %v2998
        %v3064 = vsel %vm2664, %v3032, %v3000
        %v3065 = vadd.f32 %v2937, %v3049
        %v3066 = vadd.f32 %v2938, %v3033
        %v3067 = vadd.f32 %v2939, %v3050
        %v3068 = vadd.f32 %v2940, %v3034
        %v3069 = vadd.f32 %v2941, %v3051
        %v3070 = vadd.f32 %v2942, %v3035
        %v3071 = vadd.f32 %v2943, %v3052
        %v3072 = vadd.f32 %v2944, %v3036
        %v3073 = vadd.f32 %v2945, %v3053
        %v3074 = vadd.f32 %v2946, %v3037
        %v3075 = vadd.f32 %v2947, %v3054
        %v3076 = vadd.f32 %v2948, %v3038
        %v3077 = vadd.f32 %v2949, %v3055
        %v3078 = vadd.f32 %v2950, %v3039
        %v3079 = vadd.f32 %v2951, %v3056
        %v3080 = vadd.f32 %v2952, %v3040
        %v3081 = vadd.f32 %v2953, %v3057
        %v3082 = vadd.f32 %v2954, %v3041
        %v3083 = vadd.f32 %v2955, %v3058
        %v3084 = vadd.f32 %v2956, %v3042
        %v3085 = vadd.f32 %v2957, %v3059
        %v3086 = vadd.f32 %v2958, %v3043
        %v3087 = vadd.f32 %v2959, %v3060
        %v3088 = vadd.f32 %v2960, %v3044
        %v3089 = vadd.f32 %v2961, %v3061
        %v3090 = vadd.f32 %v2962, %v3045
        %v3091 = vadd.f32 %v2963, %v3062
        %v3092 = vadd.f32 %v2964, %v3046
        %v3093 = vadd.f32 %v2965, %v3063
        %v3094 = vadd.f32 %v2966, %v3047
        %v3095 = vadd.f32 %v2967, %v3064
        %v3096 = vadd.f32 %v2968, %v3048
        %v3097 = vadd.f32 %v3065, %v3066
        %v3098 = vadd.f32 %v3067, %v3068
        %v3099 = vadd.f32 %v3069, %v3070
        %v3100 = vadd.f32 %v3071, %v3072
        %v3101 = vadd.f32 %v3073, %v3074
        %v3102 = vadd.f32 %v3075, %v3076
        %v3103 = vadd.f32 %v3077, %v3078
        %v3104 = vadd.f32 %v3079, %v3080
        %v3105 = vadd.f32 %v3081, %v3082
        %v3106 = vadd.f32 %v3083, %v3084
        %v3107 = vadd.f32 %v3085, %v3086
        %v3108 = vadd.f32 %v3087, %v3088
        %v3109 = vadd.f32 %v3089, %v3090
        %v3110 = vadd.f32 %v3091, %v3092
        %v3111 = vadd.f32 %v3093, %v3094
        %v3112 = vadd.f32 %v3095, %v3096
        %v3113 = vmul.f32 %v2778, %v1867
        %v3114 = vmul.f32 %v2780, %v1868
        %v3115 = vmul.f32 %v2782, %v1869
        %v3116 = vmul.f32 %v2784, %v1870
        %v3117 = vmul.f32 %v2786, %v1871
        %v3118 = vmul.f32 %v2788, %v1872
        %v3119 = vmul.f32 %v2790, %v1873
        %v3120 = vmul.f32 %v2792, %v1874
        %v3121 = vmul.f32 %v2794, %v1875
        %v3122 = vmul.f32 %v2796, %v1876
        %v3123 = vmul.f32 %v2798, %v1877
        %v3124 = vmul.f32 %v2800, %v1878
        %v3125 = vmul.f32 %v2802, %v1879
        %v3126 = vmul.f32 %v2804, %v1880
        %v3127 = vmul.f32 %v2806, %v1881
        %v3128 = vmul.f32 %v2808, %v1882
        %v3129 = vmul.f32 %v2810, %v1883
        %v3130 = vmul.f32 %v2812, %v1884
        %v3131 = vmul.f32 %v2814, %v1885
        %v3132 = vmul.f32 %v2816, %v1886
        %v3133 = vmul.f32 %v2818, %v1887
        %v3134 = vmul.f32 %v2820, %v1888
        %v3135 = vmul.f32 %v2822, %v1889
        %v3136 = vmul.f32 %v2824, %v1890
        %v3137 = vmul.f32 %v2826, %v1891
        %v3138 = vmul.f32 %v2828, %v1892
        %v3139 = vmul.f32 %v2830, %v1893
        %v3140 = vmul.f32 %v2832, %v1894
        %v3141 = vmul.f32 %v2834, %v1895
        %v3142 = vmul.f32 %v2836, %v1896
        %v3143 = vmul.f32 %v2838, %v1897
        %v3144 = vmul.f32 %v2840, %v1898
        %3145 = vrot.lane.b32.xlu0 %v3113, 32
        %v3146 = vpop.permute.xlu0 %3145
        %3147 = vrot.lane.b32.xlu0 %v3115, 32
        %v3148 = vpop.permute.xlu0 %3147
        %3149 = vrot.lane.b32.xlu0 %v3117, 32
        %v3150 = vpop.permute.xlu0 %3149
        %3151 = vrot.lane.b32.xlu0 %v3119, 32
        %v3152 = vpop.permute.xlu0 %3151
        %3153 = vrot.lane.b32.xlu0 %v3121, 32
        %v3154 = vpop.permute.xlu0 %3153
        %3155 = vrot.lane.b32.xlu0 %v3123, 32
        %v3156 = vpop.permute.xlu0 %3155
        %3157 = vrot.lane.b32.xlu0 %v3125, 32
        %v3158 = vpop.permute.xlu0 %3157
        %3159 = vrot.lane.b32.xlu0 %v3127, 32
        %v3160 = vpop.permute.xlu0 %3159
        %3161 = vrot.lane.b32.xlu0 %v3129, 32
        %v3162 = vpop.permute.xlu0 %3161
        %3163 = vrot.lane.b32.xlu0 %v3131, 32
        %v3164 = vpop.permute.xlu0 %3163
        %3165 = vrot.lane.b32.xlu0 %v3133, 32
        %v3166 = vpop.permute.xlu0 %3165
        %3167 = vrot.lane.b32.xlu0 %v3135, 32
        %v3168 = vpop.permute.xlu0 %3167
        %3169 = vrot.lane.b32.xlu0 %v3137, 32
        %v3170 = vpop.permute.xlu0 %3169
        %3171 = vrot.lane.b32.xlu0 %v3139, 32
        %v3172 = vpop.permute.xlu0 %3171
        %3173 = vrot.lane.b32.xlu0 %v3141, 32
        %v3174 = vpop.permute.xlu0 %3173
        %3175 = vrot.lane.b32.xlu0 %v3143, 32
        %v3176 = vpop.permute.xlu0 %3175
        %3177 = vrot.lane.b32.xlu0 %v3114, 32
        %v3178 = vpop.permute.xlu0 %3177
        %3179 = vrot.lane.b32.xlu0 %v3116, 32
        %v3180 = vpop.permute.xlu0 %3179
        %3181 = vrot.lane.b32.xlu0 %v3118, 32
        %v3182 = vpop.permute.xlu0 %3181
        %3183 = vrot.lane.b32.xlu0 %v3120, 32
        %v3184 = vpop.permute.xlu0 %3183
        %3185 = vrot.lane.b32.xlu0 %v3122, 32
        %v3186 = vpop.permute.xlu0 %3185
        %3187 = vrot.lane.b32.xlu0 %v3124, 32
        %v3188 = vpop.permute.xlu0 %3187
        %3189 = vrot.lane.b32.xlu0 %v3126, 32
        %v3190 = vpop.permute.xlu0 %3189
        %3191 = vrot.lane.b32.xlu0 %v3128, 32
        %v3192 = vpop.permute.xlu0 %3191
        %3193 = vrot.lane.b32.xlu0 %v3130, 32
        %v3194 = vpop.permute.xlu0 %3193
        %3195 = vrot.lane.b32.xlu0 %v3132, 32
        %v3196 = vpop.permute.xlu0 %3195
        %3197 = vrot.lane.b32.xlu0 %v3134, 32
        %v3198 = vpop.permute.xlu0 %3197
        %3199 = vrot.lane.b32.xlu0 %v3136, 32
        %v3200 = vpop.permute.xlu0 %3199
        %3201 = vrot.lane.b32.xlu0 %v3138, 32
        %v3202 = vpop.permute.xlu0 %3201
        %3203 = vrot.lane.b32.xlu0 %v3140, 32
        %v3204 = vpop.permute.xlu0 %3203
        %3205 = vrot.lane.b32.xlu0 %v3142, 32
        %v3206 = vpop.permute.xlu0 %3205
        %3207 = vrot.lane.b32.xlu0 %v3144, 32
        %v3208 = vpop.permute.xlu0 %3207
        %v3209 = vsel %vm2535, %v3146, %v3178
        %v3210 = vsel %vm2535, %v3148, %v3180
        %v3211 = vsel %vm2535, %v3150, %v3182
        %v3212 = vsel %vm2535, %v3152, %v3184
        %v3213 = vsel %vm2535, %v3154, %v3186
        %v3214 = vsel %vm2535, %v3156, %v3188
        %v3215 = vsel %vm2535, %v3158, %v3190
        %v3216 = vsel %vm2535, %v3160, %v3192
        %v3217 = vsel %vm2535, %v3162, %v3194
        %v3218 = vsel %vm2535, %v3164, %v3196
        %v3219 = vsel %vm2535, %v3166, %v3198
        %v3220 = vsel %vm2535, %v3168, %v3200
        %v3221 = vsel %vm2535, %v3170, %v3202
        %v3222 = vsel %vm2535, %v3172, %v3204
        %v3223 = vsel %vm2535, %v3174, %v3206
        %v3224 = vsel %vm2535, %v3176, %v3208
        %v3225 = vsel %vm2535, %v3178, %v3146
        %v3226 = vsel %vm2535, %v3180, %v3148
        %v3227 = vsel %vm2535, %v3182, %v3150
        %v3228 = vsel %vm2535, %v3184, %v3152
        %v3229 = vsel %vm2535, %v3186, %v3154
        %v3230 = vsel %vm2535, %v3188, %v3156
        %v3231 = vsel %vm2535, %v3190, %v3158
        %v3232 = vsel %vm2535, %v3192, %v3160
        %v3233 = vsel %vm2535, %v3194, %v3162
        %v3234 = vsel %vm2535, %v3196, %v3164
        %v3235 = vsel %vm2535, %v3198, %v3166
        %v3236 = vsel %vm2535, %v3200, %v3168
        %v3237 = vsel %vm2535, %v3202, %v3170
        %v3238 = vsel %vm2535, %v3204, %v3172
        %v3239 = vsel %vm2535, %v3206, %v3174
        %v3240 = vsel %vm2535, %v3208, %v3176
        %v3241 = vadd.f32 %v3113, %v3225
        %v3242 = vadd.f32 %v3114, %v3209
        %v3243 = vadd.f32 %v3115, %v3226
        %v3244 = vadd.f32 %v3116, %v3210
        %v3245 = vadd.f32 %v3117, %v3227
        %v3246 = vadd.f32 %v3118, %v3211
        %v3247 = vadd.f32 %v3119, %v3228
        %v3248 = vadd.f32 %v3120, %v3212
        %v3249 = vadd.f32 %v3121, %v3229
        %v3250 = vadd.f32 %v3122, %v3213
        %v3251 = vadd.f32 %v3123, %v3230
        %v3252 = vadd.f32 %v3124, %v3214
        %v3253 = vadd.f32 %v3125, %v3231
        %v3254 = vadd.f32 %v3126, %v3215
        %v3255 = vadd.f32 %v3127, %v3232
        %v3256 = vadd.f32 %v3128, %v3216
        %v3257 = vadd.f32 %v3129, %v3233
        %v3258 = vadd.f32 %v3130, %v3217
        %v3259 = vadd.f32 %v3131, %v3234
        %v3260 = vadd.f32 %v3132, %v3218
        %v3261 = vadd.f32 %v3133, %v3235
        %v3262 = vadd.f32 %v3134, %v3219
        %v3263 = vadd.f32 %v3135, %v3236
        %v3264 = vadd.f32 %v3136, %v3220
        %v3265 = vadd.f32 %v3137, %v3237
        %v3266 = vadd.f32 %v3138, %v3221
        %v3267 = vadd.f32 %v3139, %v3238
        %v3268 = vadd.f32 %v3140, %v3222
        %v3269 = vadd.f32 %v3141, %v3239
        %v3270 = vadd.f32 %v3142, %v3223
        %v3271 = vadd.f32 %v3143, %v3240
        %v3272 = vadd.f32 %v3144, %v3224
        %3273 = vrot.lane.b32.xlu0 %v3241, 64
        %v3274 = vpop.permute.xlu0 %3273
        %3275 = vrot.lane.b32.xlu0 %v3243, 64
        %v3276 = vpop.permute.xlu0 %3275
        %3277 = vrot.lane.b32.xlu0 %v3245, 64
        %v3278 = vpop.permute.xlu0 %3277
        %3279 = vrot.lane.b32.xlu0 %v3247, 64
        %v3280 = vpop.permute.xlu0 %3279
        %3281 = vrot.lane.b32.xlu0 %v3249, 64
        %v3282 = vpop.permute.xlu0 %3281
        %3283 = vrot.lane.b32.xlu0 %v3251, 64
        %v3284 = vpop.permute.xlu0 %3283
        %3285 = vrot.lane.b32.xlu0 %v3253, 64
        %v3286 = vpop.permute.xlu0 %3285
        %3287 = vrot.lane.b32.xlu0 %v3255, 64
        %v3288 = vpop.permute.xlu0 %3287
        %3289 = vrot.lane.b32.xlu0 %v3257, 64
        %v3290 = vpop.permute.xlu0 %3289
        %3291 = vrot.lane.b32.xlu0 %v3259, 64
        %v3292 = vpop.permute.xlu0 %3291
        %3293 = vrot.lane.b32.xlu0 %v3261, 64
        %v3294 = vpop.permute.xlu0 %3293
        %3295 = vrot.lane.b32.xlu0 %v3263, 64
        %v3296 = vpop.permute.xlu0 %3295
        %3297 = vrot.lane.b32.xlu0 %v3265, 64
        %v3298 = vpop.permute.xlu0 %3297
        %3299 = vrot.lane.b32.xlu0 %v3267, 64
        %v3300 = vpop.permute.xlu0 %3299
        %3301 = vrot.lane.b32.xlu0 %v3269, 64
        %v3302 = vpop.permute.xlu0 %3301
        %3303 = vrot.lane.b32.xlu0 %v3271, 64
        %v3304 = vpop.permute.xlu0 %3303
        %3305 = vrot.lane.b32.xlu0 %v3242, 64
        %v3306 = vpop.permute.xlu0 %3305
        %3307 = vrot.lane.b32.xlu0 %v3244, 64
        %v3308 = vpop.permute.xlu0 %3307
        %3309 = vrot.lane.b32.xlu0 %v3246, 64
        %v3310 = vpop.permute.xlu0 %3309
        %3311 = vrot.lane.b32.xlu0 %v3248, 64
        %v3312 = vpop.permute.xlu0 %3311
        %3313 = vrot.lane.b32.xlu0 %v3250, 64
        %v3314 = vpop.permute.xlu0 %3313
        %3315 = vrot.lane.b32.xlu0 %v3252, 64
        %v3316 = vpop.permute.xlu0 %3315
        %3317 = vrot.lane.b32.xlu0 %v3254, 64
        %v3318 = vpop.permute.xlu0 %3317
        %3319 = vrot.lane.b32.xlu0 %v3256, 64
        %v3320 = vpop.permute.xlu0 %3319
        %3321 = vrot.lane.b32.xlu0 %v3258, 64
        %v3322 = vpop.permute.xlu0 %3321
        %3323 = vrot.lane.b32.xlu0 %v3260, 64
        %v3324 = vpop.permute.xlu0 %3323
        %3325 = vrot.lane.b32.xlu0 %v3262, 64
        %v3326 = vpop.permute.xlu0 %3325
        %3327 = vrot.lane.b32.xlu0 %v3264, 64
        %v3328 = vpop.permute.xlu0 %3327
        %3329 = vrot.lane.b32.xlu0 %v3266, 64
        %v3330 = vpop.permute.xlu0 %3329
        %3331 = vrot.lane.b32.xlu0 %v3268, 64
        %v3332 = vpop.permute.xlu0 %3331
        %3333 = vrot.lane.b32.xlu0 %v3270, 64
        %v3334 = vpop.permute.xlu0 %3333
        %3335 = vrot.lane.b32.xlu0 %v3272, 64
        %v3336 = vpop.permute.xlu0 %3335
        %v3337 = vsel %vm2664, %v3274, %v3306
        %v3338 = vsel %vm2664, %v3276, %v3308
        %v3339 = vsel %vm2664, %v3278, %v3310
        %v3340 = vsel %vm2664, %v3280, %v3312
        %v3341 = vsel %vm2664, %v3282, %v3314
        %v3342 = vsel %vm2664, %v3284, %v3316
        %v3343 = vsel %vm2664, %v3286, %v3318
        %v3344 = vsel %vm2664, %v3288, %v3320
        %v3345 = vsel %vm2664, %v3290, %v3322
        %v3346 = vsel %vm2664, %v3292, %v3324
        %v3347 = vsel %vm2664, %v3294, %v3326
        %v3348 = vsel %vm2664, %v3296, %v3328
        %v3349 = vsel %vm2664, %v3298, %v3330
        %v3350 = vsel %vm2664, %v3300, %v3332
        %v3351 = vsel %vm2664, %v3302, %v3334
        %v3352 = vsel %vm2664, %v3304, %v3336
        %v3353 = vsel %vm2664, %v3306, %v3274
        %v3354 = vsel %vm2664, %v3308, %v3276
        %v3355 = vsel %vm2664, %v3310, %v3278
        %v3356 = vsel %vm2664, %v3312, %v3280
        %v3357 = vsel %vm2664, %v3314, %v3282
        %v3358 = vsel %vm2664, %v3316, %v3284
        %v3359 = vsel %vm2664, %v3318, %v3286
        %v3360 = vsel %vm2664, %v3320, %v3288
        %v3361 = vsel %vm2664, %v3322, %v3290
        %v3362 = vsel %vm2664, %v3324, %v3292
        %v3363 = vsel %vm2664, %v3326, %v3294
        %v3364 = vsel %vm2664, %v3328, %v3296
        %v3365 = vsel %vm2664, %v3330, %v3298
        %v3366 = vsel %vm2664, %v3332, %v3300
        %v3367 = vsel %vm2664, %v3334, %v3302
        %v3368 = vsel %vm2664, %v3336, %v3304
        %v3369 = vadd.f32 %v3241, %v3353
        %v3370 = vadd.f32 %v3242, %v3337
        %v3371 = vadd.f32 %v3243, %v3354
        %v3372 = vadd.f32 %v3244, %v3338
        %v3373 = vadd.f32 %v3245, %v3355
        %v3374 = vadd.f32 %v3246, %v3339
        %v3375 = vadd.f32 %v3247, %v3356
        %v3376 = vadd.f32 %v3248, %v3340
        %v3377 = vadd.f32 %v3249, %v3357
        %v3378 = vadd.f32 %v3250, %v3341
        %v3379 = vadd.f32 %v3251, %v3358
        %v3380 = vadd.f32 %v3252, %v3342
        %v3381 = vadd.f32 %v3253, %v3359
        %v3382 = vadd.f32 %v3254, %v3343
        %v3383 = vadd.f32 %v3255, %v3360
        %v3384 = vadd.f32 %v3256, %v3344
        %v3385 = vadd.f32 %v3257, %v3361
        %v3386 = vadd.f32 %v3258, %v3345
        %v3387 = vadd.f32 %v3259, %v3362
        %v3388 = vadd.f32 %v3260, %v3346
        %v3389 = vadd.f32 %v3261, %v3363
        %v3390 = vadd.f32 %v3262, %v3347
        %v3391 = vadd.f32 %v3263, %v3364
        %v3392 = vadd.f32 %v3264, %v3348
        %v3393 = vadd.f32 %v3265, %v3365
        %v3394 = vadd.f32 %v3266, %v3349
        %v3395 = vadd.f32 %v3267, %v3366
        %v3396 = vadd.f32 %v3268, %v3350
        %v3397 = vadd.f32 %v3269, %v3367
        %v3398 = vadd.f32 %v3270, %v3351
        %v3399 = vadd.f32 %v3271, %v3368
        %v3400 = vadd.f32 %v3272, %v3352
        %v3401 = vadd.f32 %v3369, %v3370
        %v3402 = vadd.f32 %v3371, %v3372
        %v3403 = vadd.f32 %v3373, %v3374
        %v3404 = vadd.f32 %v3375, %v3376
        %v3405 = vadd.f32 %v3377, %v3378
        %v3406 = vadd.f32 %v3379, %v3380
        %v3407 = vadd.f32 %v3381, %v3382
        %v3408 = vadd.f32 %v3383, %v3384
        %v3409 = vadd.f32 %v3385, %v3386
        %v3410 = vadd.f32 %v3387, %v3388
        %v3411 = vadd.f32 %v3389, %v3390
        %v3412 = vadd.f32 %v3391, %v3392
        %v3413 = vadd.f32 %v3393, %v3394
        %v3414 = vadd.f32 %v3395, %v3396
        %v3415 = vadd.f32 %v3397, %v3398
        %v3416 = vadd.f32 %v3399, %v3400
        %v3417 = vrcp.pop %v3097
        %v3418 = vmul.f32 %v3401, %v3417
        %v3419 = vrcp.pop %v3098
        %v3420 = vmul.f32 %v3402, %v3419
        %v3421 = vrcp.pop %v3099
        %v3422 = vmul.f32 %v3403, %v3421
        %v3423 = vrcp.pop %v3100
        %v3424 = vmul.f32 %v3404, %v3423
        %v3425 = vrcp.pop %v3101
        %v3426 = vmul.f32 %v3405, %v3425
        %v3427 = vrcp.pop %v3102
        %v3428 = vmul.f32 %v3406, %v3427
        %v3429 = vrcp.pop %v3103
        %v3430 = vmul.f32 %v3407, %v3429
        %v3431 = vrcp.pop %v3104
        %v3432 = vmul.f32 %v3408, %v3431
        %v3433 = vrcp.pop %v3105
        %v3434 = vmul.f32 %v3409, %v3433
        %v3435 = vrcp.pop %v3106
        %v3436 = vmul.f32 %v3410, %v3435
        %v3437 = vrcp.pop %v3107
        %v3438 = vmul.f32 %v3411, %v3437
        %v3439 = vrcp.pop %v3108
        %v3440 = vmul.f32 %v3412, %v3439
        %v3441 = vrcp.pop %v3109
        %v3442 = vmul.f32 %v3413, %v3441
        %v3443 = vrcp.pop %v3110
        %v3444 = vmul.f32 %v3414, %v3443
        %v3445 = vrcp.pop %v3111
        %v3446 = vmul.f32 %v3415, %v3445
        %v3447 = vrcp.pop %v3112
        %v3448 = vmul.f32 %v3416, %v3447
        %3449 = vst.msk [vmem:[%s602] sm:$0xff] %vm1153, %v3418
        %3450 = vst.msk [vmem:[%s602 + $0x8] sm:$0xff] %vm1153, %v3420
        %3451 = vst.msk [vmem:[%s602 + $0x10] sm:$0xff] %vm1153, %v3422
        %3452 = vst.msk [vmem:[%s602 + $0x18] sm:$0xff] %vm1153, %v3424
        %3453 = vst.msk [vmem:[%s602 + $0x20] sm:$0xff] %vm1153, %v3426
        %3454 = vst.msk [vmem:[%s602 + $0x28] sm:$0xff] %vm1153, %v3428
        %3455 = vst.msk [vmem:[%s602 + $0x30] sm:$0xff] %vm1153, %v3430
        %3456 = vst.msk [vmem:[%s602 + $0x38] sm:$0xff] %vm1153, %v3432
        %3457 = vst.msk [vmem:[%s602 + $0x40] sm:$0xff] %vm1153, %v3434
        %3458 = vst.msk [vmem:[%s602 + $0x48] sm:$0xff] %vm1153, %v3436
        %3459 = vst.msk [vmem:[%s602 + $0x50] sm:$0xff] %vm1153, %v3438
        %3460 = vst.msk [vmem:[%s602 + $0x58] sm:$0xff] %vm1153, %v3440
        %3461 = vst.msk [vmem:[%s602 + $0x60] sm:$0xff] %vm1153, %v3442
        %3462 = vst.msk [vmem:[%s602 + $0x68] sm:$0xff] %vm1153, %v3444
        %3463 = vst.msk [vmem:[%s602 + $0x70] sm:$0xff] %vm1153, %v3446
        %3464 = vst.msk [vmem:[%s602 + $0x78] sm:$0xff] %vm1153, %v3448
        %s3465 = smul.u32 16, %s29
        %p3466 = scmp.lt.s32.totalorder %s3465, 63
        %s3467 = scalar_select %p3466, %s3465, 63
        %s3468 = smul.addr %s3467, 8
        %s3469 = scalar_lea.vmem %s15, %s3468
        // Predicated region
        $region97: #{tpu_custom_call.1} parent=79 // pred_check
          %p3470 = pneg %p377
        $region98: #{tpu_custom_call.1} parent=79 // pred_check_branch
          %3472 = sbr.rel (%p3470) target = $region100
        $region99: #{tpu_custom_call.1} parent=79 // pred_region
          %s3473 = smul.u32 16, %s29
        $region100: #{tpu_custom_call.1} parent=79 // pred_fallthru
          _
      $region80: #{tpu_custom_call.1} parent=5 // pred_fallthru
        _
      %p3474 = scmp.le.s32.totalorder 2, %s24
      // Predicated region
      $region101: #{tpu_custom_call.1} parent=5 // pred_check
        %p3475 = pneg %p3474
      $region102: #{tpu_custom_call.1} parent=5 // pred_check_branch
        %3477 = sbr.rel (%p3475) target = $region104
      $region103: #{tpu_custom_call.1} parent=5 // pred_region
        %s3478 = ssub.s32 %s24, 2
        // Predicated region
        $region105: #{tpu_custom_call.1} parent=103 // pred_check
          %p3479 = pneg %p383
        $region106: #{tpu_custom_call.1} parent=103 // pred_check_branch
          %3481 = sbr.rel (%p3479) target = $region108
        $region107: #{tpu_custom_call.1} parent=103 // pred_region
          %s3482 = smul.u32 16, %s30
          %p3483 = scmp.lt.s32.totalorder %s3482, 63
          %s3484 = scalar_select %p3483, %s3482, 63
          %s3485 = smul.addr %s3484, 8
          %s3486 = scalar_lea.vmem %s15, %s3485
        $region108: #{tpu_custom_call.1} parent=103 // pred_fallthru
          _
      $region104: #{tpu_custom_call.1} parent=5 // pred_fallthru
        _
    $region6: #{tpu_custom_call.1} parent=1 // loop_footer
      %s28 = sadd.s32 1, %s24
    $region7: #{tpu_custom_call.1} parent=1 // loop_footer_branch
      %23 = sbr.rel target = $region3
    $region8: #{tpu_custom_call.1} parent=1 // loop_exit
      _
    %3487 = vsyncpa [#allocation3], 1
    %s3488 = scalar_lea.sflag [#allocation3], 1
    %3489 = vsyncpa %s3488, 1
    %3490 = vsyncpa [#allocation5], 1
    %3491 = vsyncpa [#allocation8], 1

</llo_original>
